<compile_context>
chip_gen: v7x
topology: tpu7x:2x2x1
jax: 0.10.0
libtpu: 0.0.40
codegen_flags: <defaults>
</compile_context>

<pallas_src>
import functools

import jax
import jax.numpy as jnp
import numpy as np
from jax.experimental import pallas as pl
from jax.experimental.pallas import tpu as pltpu

_BN_EPS = 1e-5
_CPAD = 128          # lane-dense padding applied to every channel-like dim


# --------------------------------------------------------------------------- #
# Pass 1: depthwise KxK conv + per-sample BatchNorm partial statistics
# --------------------------------------------------------------------------- #
def _dw_stats_kernel(x_ref, w_ref, act_ref, stats_ref, acc_ref, *,
                     ksize, out_h, out_w):
    hw = out_h * out_w
    c = w_ref.shape[-1]
    w_all = w_ref[...]                                        # (K*K, C)

    # K*K shifted-window per-channel FMAs, accumulated in an f32 VMEM scratch
    # slab (keeps the live accumulator out of vregs, stays lane-dense).
    for tap in range(ksize * ksize):
        ky, kx = divmod(tap, ksize)
        patch = x_ref[:, ky:ky + out_h, kx:kx + out_w, :].reshape(hw, c)
        contrib = patch * w_all[tap]
        if tap == 0:
            acc_ref[...] = contrib
        else:
            acc_ref[...] += contrib

    dw = acc_ref[...]                                         # (HW, C) f32

    # bf16 activation written to HBM (halves intermediate traffic); BN stats
    # below are taken from the f32 accumulator, so statistics stay exact.
    act_ref[...] = dw.astype(act_ref.dtype).reshape(act_ref.shape)

    # Per-sample partial (sum, sum-of-squares) via MXU ones-matmuls (keeps the
    # row reduction off the XLU).  Partials are combined globally in the
    # wrapper so BatchNorm statistics remain exact over the whole batch.
    ones_row = jnp.ones((1, hw), dtype=jnp.float32)
    ssum = jnp.dot(ones_row, dw, preferred_element_type=jnp.float32)
    ssq = jnp.dot(ones_row, dw * dw, preferred_element_type=jnp.float32)
    stats_ref[...] = jnp.concatenate([ssum, ssq], axis=0).reshape(stats_ref.shape)


# --------------------------------------------------------------------------- #
# Pass 2: BN affine + ReLU -> SqueezeExcitation -> pointwise 1x1 conv (+bias)
# --------------------------------------------------------------------------- #
def _bn_se_pw_kernel(act_ref, scale_ref, shift_ref, fc1w_ref, fc1b_ref,
                     fc2w_ref, fc2b_ref, pww_ref, pwb_ref, o_ref, y_ref):
    hw, c = y_ref.shape

    # BatchNorm (global batch stats pre-folded into per-channel scale/shift)
    # + ReLU, staged in an f32 VMEM scratch slab (read twice below).
    a = act_ref[...].reshape(hw, c).astype(jnp.float32)
    y_ref[...] = jnp.maximum(a * scale_ref[...] + shift_ref[...], 0.0)

    # Squeeze: per-sample global average pool as a single MXU ones-matmul.
    pool_row = jnp.full((1, hw), 1.0 / hw, dtype=jnp.float32)
    pooled = jnp.dot(pool_row, y_ref[...], preferred_element_type=jnp.float32)

    # Excite: fc1 -> ReLU -> fc2 -> sigmoid (exp on EUP + approx reciprocal).
    s = jnp.dot(pooled, fc1w_ref[...],
                preferred_element_type=jnp.float32) + fc1b_ref[...]
    s = jnp.maximum(s, 0.0)
    s = jnp.dot(s, fc2w_ref[...],
                preferred_element_type=jnp.float32) + fc2b_ref[...]
    s = pl.reciprocal(1.0 + jnp.exp(-s), approx=True)         # sigmoid

    # Per-channel re-scale + pointwise 1x1 conv: one bf16 MXU matmul, f32 acc.
    y_scaled = (y_ref[...] * s).astype(jnp.bfloat16)
    out = jnp.dot(y_scaled, pww_ref[...], preferred_element_type=jnp.float32)
    o_ref[...] = (out + pwb_ref[...]).reshape(o_ref.shape)


# --------------------------------------------------------------------------- #
# Wrapper
# --------------------------------------------------------------------------- #
def _pad2d(a, rows, cols):
    return jnp.zeros((rows, cols), a.dtype).at[:a.shape[0], :a.shape[1]].set(a)


@functools.partial(jax.jit, static_argnames=("ksize",))
def depthwise_separable_conv(x, dw_w, gamma, beta, fc1_w, fc1_b, fc2_w, fc2_b,
                             pw_w, pw_b, *, ksize=3):
    n, cin, h, w = x.shape
    cout = pw_w.shape[0]
    cmid = fc1_w.shape[0]
    pad = ksize // 2
    hw = h * w
    cpad = _CPAD

    # glue: NCHW -> NHWC, spatial zero-pad, channels zero-padded to 128 lanes
    x_nhwc = jnp.transpose(x, (0, 2, 3, 1)).astype(jnp.float32)
    x_pad = jnp.pad(x_nhwc, ((0, 0), (pad, pad), (pad, pad), (0, cpad - cin)))
    dw_kc = _pad2d(dw_w.reshape(cin, ksize * ksize).T.astype(jnp.float32),
                   ksize * ksize, cpad)                        # (K*K, 128)

    # ---- pass 1: depthwise conv + per-sample BN partial stats ----------------
    k1 = functools.partial(_dw_stats_kernel, ksize=ksize, out_h=h, out_w=w)
    act, stats = pl.pallas_call(
        k1,
        grid=(n,),
        in_specs=[
            pl.BlockSpec((1, h + 2 * pad, w + 2 * pad, cpad),
                         lambda i: (i, 0, 0, 0)),
            pl.BlockSpec((ksize * ksize, cpad), lambda i: (0, 0)),
        ],
        out_specs=[
            pl.BlockSpec((1, hw, cpad), lambda i: (i, 0, 0)),
            pl.BlockSpec((1, 2, cpad), lambda i: (i, 0, 0)),
        ],
        out_shape=[
            jax.ShapeDtypeStruct((n, hw, cpad), jnp.bfloat16),
            jax.ShapeDtypeStruct((n, 2, cpad), jnp.float32),
        ],
        scratch_shapes=[pltpu.VMEM((hw, cpad), jnp.float32)],
        compiler_params=pltpu.CompilerParams(
            dimension_semantics=("parallel",)),
    )(x_pad, dw_kc)

    # ---- global training-mode BN scale/shift from the per-sample partials ----
    # TODO(synk): running-stats buffer update (module state mutation) is not
    # represented; normalization uses exact batch statistics as in train mode.
    tot = stats.sum(axis=0)                                    # (2, 128)
    count = float(n * hw)
    mean = tot[0] / count
    var = jnp.maximum(tot[1] / count - mean * mean, 0.0)       # biased variance
    g = jnp.pad(gamma.astype(jnp.float32), (0, cpad - cin))
    b = jnp.pad(beta.astype(jnp.float32), (0, cpad - cin))
    bn_scale = g * jax.lax.rsqrt(var + _BN_EPS)
    bn_shift = b - mean * bn_scale
    bn_scale = bn_scale.reshape(1, cpad)
    bn_shift = bn_shift.reshape(1, cpad)

    # ---- SE / pointwise parameters, zero-padded to the 128-lane layout -------
    fc1_wp = _pad2d(fc1_w.T.astype(jnp.float32), cpad, cpad)
    fc1_bp = jnp.pad(fc1_b.astype(jnp.float32), (0, cpad - cmid)).reshape(1, cpad)
    fc2_wp = _pad2d(fc2_w.T.astype(jnp.float32), cpad, cpad)
    fc2_bp = jnp.pad(fc2_b.astype(jnp.float32), (0, cpad - cin)).reshape(1, cpad)
    pw_wp = _pad2d(pw_w.T.astype(jnp.bfloat16), cpad, cpad)    # bf16 MXU operand
    pw_bp = jnp.pad(pw_b.astype(jnp.float32), (0, cpad - cout)).reshape(1, cpad)

    # ---- pass 2: BN + ReLU + SqueezeExcitation + pointwise 1x1 conv ----------
    par = pl.BlockSpec((1, cpad), lambda i: (0, 0))
    mat = pl.BlockSpec((cpad, cpad), lambda i: (0, 0))
    out_flat = pl.pallas_call(
        _bn_se_pw_kernel,
        grid=(n,),
        in_specs=[
            pl.BlockSpec((1, hw, cpad), lambda i: (i, 0, 0)),
            par, par, mat, par, mat, par, mat, par,
        ],
        out_specs=pl.BlockSpec((1, hw, cpad), lambda i: (i, 0, 0)),
        out_shape=jax.ShapeDtypeStruct((n, hw, cpad), jnp.float32),
        scratch_shapes=[pltpu.VMEM((hw, cpad), jnp.float32)],
        compiler_params=pltpu.CompilerParams(
            dimension_semantics=("parallel",)),
    )(act, bn_scale, bn_shift, fc1_wp, fc1_bp, fc2_wp, fc2_bp, pw_wp, pw_bp)

    # glue: strip channel padding, back to NCHW
    out = out_flat[:, :, :cout].reshape(n, h, w, cout)
    return jnp.transpose(out, (0, 3, 1, 2))


# --------------------------------------------------------------------------- #
# Pure-JAX reference (f32) of the PyTorch module's forward pass
# --------------------------------------------------------------------------- #
def _reference(x, dw_w, gamma, beta, fc1_w, fc1_b, fc2_w, fc2_b, pw_w, pw_b):
    cin = x.shape[1]
    y = jax.lax.conv_general_dilated(
        x, dw_w, window_strides=(1, 1), padding="SAME",
        dimension_numbers=("NCHW", "OIHW", "NCHW"),
        feature_group_count=cin)
    mean = y.mean(axis=(0, 2, 3), keepdims=True)
    var = ((y - mean) ** 2).mean(axis=(0, 2, 3), keepdims=True)
    y = (y - mean) / jnp.sqrt(var + _BN_EPS)
    y = y * gamma[None, :, None, None] + beta[None, :, None, None]
    y = jnp.maximum(y, 0.0)                                    # ReLU
    pooled = y.mean(axis=(2, 3))                               # (N, Cin)
    s = jnp.maximum(pooled @ fc1_w.T + fc1_b, 0.0)
    s = jax.nn.sigmoid(s @ fc2_w.T + fc2_b)                    # (N, Cin)
    y = y * s[:, :, None, None]
    return jnp.einsum("nchw,oc->nohw", y, pw_w) + pw_b[None, :, None, None]


if __name__ == "__main__":
    # Module config: in_channels=4, out_channels=32, kernel_size=3, se_ratio=2.
    N, CIN, H, W = 2, 4, 16, 16
    COUT, K, SE_RATIO = 32, 3, 2
    CMID = max(CIN // SE_RATIO, 1)

    keys = jax.random.split(jax.random.PRNGKey(0), 10)
    x = jax.random.normal(keys[0], (N, CIN, H, W), jnp.float32)
    dw_w = 0.3 * jax.random.normal(keys[1], (CIN, 1, K, K), jnp.float32)
    gamma = 1.0 + 0.1 * jax.random.normal(keys[2], (CIN,), jnp.float32)
    beta = 0.1 * jax.random.normal(keys[3], (CIN,), jnp.float32)
    fc1_w = 0.3 * jax.random.normal(keys[4], (CMID, CIN), jnp.float32)
    fc1_b = 0.05 * jax.random.normal(keys[5], (CMID,), jnp.float32)
    fc2_w = 0.3 * jax.random.normal(keys[6], (CIN, CMID), jnp.float32)
    fc2_b = 0.05 * jax.random.normal(keys[7], (CIN,), jnp.float32)
    pw_w = 0.2 * jax.random.normal(keys[8], (COUT, CIN), jnp.float32)
    pw_b = 0.05 * jax.random.normal(keys[9], (COUT,), jnp.float32)

    out = depthwise_separable_conv(x, dw_w, gamma, beta, fc1_w, fc1_b,
                                   fc2_w, fc2_b, pw_w, pw_b, ksize=K)
    out = jax.block_until_ready(out)

    ref = jax.block_until_ready(
        _reference(x, dw_w, gamma, beta, fc1_w, fc1_b, fc2_w, fc2_b, pw_w, pw_b))
    assert out.shape == (N, COUT, H, W), out.shape
    # bf16 intermediate activation + bf16 pointwise matmul + approx-reciprocal
    # sigmoid -> a few 1e-3 abs error.
    np.testing.assert_allclose(np.asarray(out), np.asarray(ref),
                               atol=1e-2, rtol=1e-2)
    print("KERNEL_OK")
</pallas_src>

<mosaic_0001>
module attributes {stable_mosaic.version = 11 : i64} {
  func.func @_bn_se_pw_kernel(%arg0: i32, %arg1: memref<1x256x128xbf16, #tpu.memory_space<vmem>>, %arg2: memref<1x128xf32, #tpu.memory_space<vmem>>, %arg3: memref<1x128xf32, #tpu.memory_space<vmem>>, %arg4: memref<128x128xf32, #tpu.memory_space<vmem>>, %arg5: memref<1x128xf32, #tpu.memory_space<vmem>>, %arg6: memref<128x128xf32, #tpu.memory_space<vmem>>, %arg7: memref<1x128xf32, #tpu.memory_space<vmem>>, %arg8: memref<128x128xbf16, #tpu.memory_space<vmem>>, %arg9: memref<1x128xf32, #tpu.memory_space<vmem>>, %arg10: memref<1x256x128xf32, #tpu.memory_space<vmem>>, %arg11: memref<256x128xf32, #tpu.memory_space<vmem>>) attributes {dimension_semantics = [#tpu.dimension_semantics<parallel>], iteration_bounds = array<i64: 2>, scalar_prefetch = 0 : i64, scratch_operands = 1 : i64, tpu.core_type = #tpu.core_type<tc>, window_params = [{transform_indices = @transform_0, window_bounds = array<i64: 1, 256, 128>}, {pipeline_mode = #tpu.pipeline_mode<synchronous>, transform_indices = @transform_1, window_bounds = array<i64: 1, 128>}, {pipeline_mode = #tpu.pipeline_mode<synchronous>, transform_indices = @transform_2, window_bounds = array<i64: 1, 128>}, {pipeline_mode = #tpu.pipeline_mode<synchronous>, transform_indices = @transform_3, window_bounds = array<i64: 128, 128>}, {pipeline_mode = #tpu.pipeline_mode<synchronous>, transform_indices = @transform_4, window_bounds = array<i64: 1, 128>}, {pipeline_mode = #tpu.pipeline_mode<synchronous>, transform_indices = @transform_5, window_bounds = array<i64: 128, 128>}, {pipeline_mode = #tpu.pipeline_mode<synchronous>, transform_indices = @transform_6, window_bounds = array<i64: 1, 128>}, {pipeline_mode = #tpu.pipeline_mode<synchronous>, transform_indices = @transform_7, window_bounds = array<i64: 128, 128>}, {pipeline_mode = #tpu.pipeline_mode<synchronous>, transform_indices = @transform_8, window_bounds = array<i64: 1, 128>}, {transform_indices = @transform_9, window_bounds = array<i64: 1, 256, 128>}]} {
    %c0 = arith.constant 0 : index
    %c0_0 = arith.constant 0 : index
    %c0_1 = arith.constant 0 : index
    %0 = vector.load %arg1[%c0, %c0_0, %c0_1] : memref<1x256x128xbf16, #tpu.memory_space<vmem>>, vector<1x256x128xbf16>
    %1 = vector.shape_cast %0 : vector<1x256x128xbf16> to vector<256x128xbf16>
    %2 = arith.extf %1 : vector<256x128xbf16> to vector<256x128xf32>
    %c0_2 = arith.constant 0 : index
    %c0_3 = arith.constant 0 : index
    %3 = vector.load %arg2[%c0_2, %c0_3] : memref<1x128xf32, #tpu.memory_space<vmem>>, vector<1x128xf32>
    %4 = vector.broadcast %3 : vector<1x128xf32> to vector<256x128xf32>
    %5 = arith.mulf %2, %4 : vector<256x128xf32>
    %c0_4 = arith.constant 0 : index
    %c0_5 = arith.constant 0 : index
    %6 = vector.load %arg3[%c0_4, %c0_5] : memref<1x128xf32, #tpu.memory_space<vmem>>, vector<1x128xf32>
    %7 = vector.broadcast %6 : vector<1x128xf32> to vector<256x128xf32>
    %8 = arith.addf %5, %7 : vector<256x128xf32>
    %cst = arith.constant 0.000000e+00 : f32
    %9 = vector.broadcast %cst : f32 to vector<256x128xf32>
    %10 = arith.maximumf %8, %9 : vector<256x128xf32>
    %c0_6 = arith.constant 0 : index
    %c0_7 = arith.constant 0 : index
    %11 = vector.load %arg11[%c0_6, %c0_7] : memref<256x128xf32, #tpu.memory_space<vmem>>, vector<256x128xf32>
    tpu.vector_store %arg11[%c0_6, %c0_7], %10 {strides = array<i32>} : memref<256x128xf32, #tpu.memory_space<vmem>>, vector<256x128xf32>,
    %cst_8 = arith.constant 3.906250e-03 : f32
    %12 = vector.broadcast %cst_8 : f32 to vector<1x256xf32>
    %c0_9 = arith.constant 0 : index
    %c0_10 = arith.constant 0 : index
    %13 = vector.load %arg11[%c0_9, %c0_10] : memref<256x128xf32, #tpu.memory_space<vmem>>, vector<256x128xf32>
    %cst_11 = arith.constant dense<0.000000e+00> : vector<1x128xf32>
    %14 = tpu.matmul %12, %13, %cst_11 {dimension_numbers = #tpu.dot_dimension_numbers<[1], [0], [0], [1], [0, 0, 1, 1], [], []>} : vector<1x256xf32>, vector<256x128xf32>, vector<1x128xf32> -> vector<1x128xf32>
    %c0_12 = arith.constant 0 : index
    %c0_13 = arith.constant 0 : index
    %15 = vector.load %arg4[%c0_12, %c0_13] : memref<128x128xf32, #tpu.memory_space<vmem>>, vector<128x128xf32>
    %cst_14 = arith.constant dense<0.000000e+00> : vector<1x128xf32>
    %16 = tpu.matmul %14, %15, %cst_14 {dimension_numbers = #tpu.dot_dimension_numbers<[1], [0], [0], [1], [0, 0, 1, 1], [], []>} : vector<1x128xf32>, vector<128x128xf32>, vector<1x128xf32> -> vector<1x128xf32>
    %c0_15 = arith.constant 0 : index
    %c0_16 = arith.constant 0 : index
    %17 = vector.load %arg5[%c0_15, %c0_16] : memref<1x128xf32, #tpu.memory_space<vmem>>, vector<1x128xf32>
    %18 = arith.addf %16, %17 : vector<1x128xf32>
    %cst_17 = arith.constant 0.000000e+00 : f32
    %19 = vector.broadcast %cst_17 : f32 to vector<1x128xf32>
    %20 = arith.maximumf %18, %19 : vector<1x128xf32>
    %c0_18 = arith.constant 0 : index
    %c0_19 = arith.constant 0 : index
    %21 = vector.load %arg6[%c0_18, %c0_19] : memref<128x128xf32, #tpu.memory_space<vmem>>, vector<128x128xf32>
    %cst_20 = arith.constant dense<0.000000e+00> : vector<1x128xf32>
    %22 = tpu.matmul %20, %21, %cst_20 {dimension_numbers = #tpu.dot_dimension_numbers<[1], [0], [0], [1], [0, 0, 1, 1], [], []>} : vector<1x128xf32>, vector<128x128xf32>, vector<1x128xf32> -> vector<1x128xf32>
    %c0_21 = arith.constant 0 : index
    %c0_22 = arith.constant 0 : index
    %23 = vector.load %arg7[%c0_21, %c0_22] : memref<1x128xf32, #tpu.memory_space<vmem>>, vector<1x128xf32>
    %24 = arith.addf %22, %23 : vector<1x128xf32>
    %cst_23 = arith.constant 0.000000e+00 : f32
    %25 = vector.broadcast %cst_23 : f32 to vector<1x128xf32>
    %26 = arith.subf %25, %24 : vector<1x128xf32>
    %27 = math.exp %26 : vector<1x128xf32>
    %cst_24 = arith.constant 1.000000e+00 : f32
    %28 = vector.broadcast %cst_24 : f32 to vector<1x128xf32>
    %29 = arith.addf %28, %27 : vector<1x128xf32>
    %30 = tpu.reciprocal %29 {approx = true} : vector<1x128xf32> -> vector<1x128xf32>
    %c0_25 = arith.constant 0 : index
    %c0_26 = arith.constant 0 : index
    %31 = vector.load %arg11[%c0_25, %c0_26] : memref<256x128xf32, #tpu.memory_space<vmem>>, vector<256x128xf32>
    %32 = vector.broadcast %30 : vector<1x128xf32> to vector<256x128xf32>
    %33 = arith.mulf %31, %32 : vector<256x128xf32>
    %34 = arith.truncf %33 : vector<256x128xf32> to vector<256x128xbf16>
    %c0_27 = arith.constant 0 : index
    %c0_28 = arith.constant 0 : index
    %35 = vector.load %arg8[%c0_27, %c0_28] : memref<128x128xbf16, #tpu.memory_space<vmem>>, vector<128x128xbf16>
    %cst_29 = arith.constant dense<0.000000e+00> : vector<256x128xf32>
    %36 = tpu.matmul %34, %35, %cst_29 {dimension_numbers = #tpu.dot_dimension_numbers<[1], [0], [0], [1], [0, 0, 1, 1], [], []>} : vector<256x128xbf16>, vector<128x128xbf16>, vector<256x128xf32> -> vector<256x128xf32>
    %c0_30 = arith.constant 0 : index
    %c0_31 = arith.constant 0 : index
    %37 = vector.load %arg9[%c0_30, %c0_31] : memref<1x128xf32, #tpu.memory_space<vmem>>, vector<1x128xf32>
    %38 = vector.broadcast %37 : vector<1x128xf32> to vector<256x128xf32>
    %39 = arith.addf %36, %38 : vector<256x128xf32>
    %40 = vector.shape_cast %39 : vector<256x128xf32> to vector<1x256x128xf32>
    %c0_32 = arith.constant 0 : index
    %c0_33 = arith.constant 0 : index
    %c0_34 = arith.constant 0 : index
    %41 = vector.load %arg10[%c0_32, %c0_33, %c0_34] : memref<1x256x128xf32, #tpu.memory_space<vmem>>, vector<1x256x128xf32>
    tpu.vector_store %arg10[%c0_32, %c0_33, %c0_34], %40 {strides = array<i32>} : memref<1x256x128xf32, #tpu.memory_space<vmem>>, vector<1x256x128xf32>,
    return
  }
  func.func @transform_0(%arg0: i32) -> (i32, i32, i32) {
    %c0_i32 = arith.constant 0 : i32
    %c0_i32_0 = arith.constant 0 : i32
    %c0_i32_1 = arith.constant 0 : i32
    return %arg0, %c0_i32, %c0_i32_0 : i32, i32, i32
  }
  func.func @transform_1(%arg0: i32) -> (i32, i32) {
    %c0_i32 = arith.constant 0 : i32
    %c0_i32_0 = arith.constant 0 : i32
    %c0_i32_1 = arith.constant 0 : i32
    return %c0_i32, %c0_i32_0 : i32, i32
  }
  func.func @transform_2(%arg0: i32) -> (i32, i32) {
    %c0_i32 = arith.constant 0 : i32
    %c0_i32_0 = arith.constant 0 : i32
    %c0_i32_1 = arith.constant 0 : i32
    return %c0_i32, %c0_i32_0 : i32, i32
  }
  func.func @transform_3(%arg0: i32) -> (i32, i32) {
    %c0_i32 = arith.constant 0 : i32
    %c0_i32_0 = arith.constant 0 : i32
    %c0_i32_1 = arith.constant 0 : i32
    return %c0_i32, %c0_i32_0 : i32, i32
  }
  func.func @transform_4(%arg0: i32) -> (i32, i32) {
    %c0_i32 = arith.constant 0 : i32
    %c0_i32_0 = arith.constant 0 : i32
    %c0_i32_1 = arith.constant 0 : i32
    return %c0_i32, %c0_i32_0 : i32, i32
  }
  func.func @transform_5(%arg0: i32) -> (i32, i32) {
    %c0_i32 = arith.constant 0 : i32
    %c0_i32_0 = arith.constant 0 : i32
    %c0_i32_1 = arith.constant 0 : i32
    return %c0_i32, %c0_i32_0 : i32, i32
  }
  func.func @transform_6(%arg0: i32) -> (i32, i32) {
    %c0_i32 = arith.constant 0 : i32
    %c0_i32_0 = arith.constant 0 : i32
    %c0_i32_1 = arith.constant 0 : i32
    return %c0_i32, %c0_i32_0 : i32, i32
  }
  func.func @transform_7(%arg0: i32) -> (i32, i32) {
    %c0_i32 = arith.constant 0 : i32
    %c0_i32_0 = arith.constant 0 : i32
    %c0_i32_1 = arith.constant 0 : i32
    return %c0_i32, %c0_i32_0 : i32, i32
  }
  func.func @transform_8(%arg0: i32) -> (i32, i32) {
    %c0_i32 = arith.constant 0 : i32
    %c0_i32_0 = arith.constant 0 : i32
    %c0_i32_1 = arith.constant 0 : i32
    return %c0_i32, %c0_i32_0 : i32, i32
  }
  func.func @transform_9(%arg0: i32) -> (i32, i32, i32) {
    %c0_i32 = arith.constant 0 : i32
    %c0_i32_0 = arith.constant 0 : i32
    %c0_i32_1 = arith.constant 0 : i32
    return %arg0, %c0_i32, %c0_i32_0 : i32, i32, i32
  }
}

module attributes {stable_mosaic.version = 11 : i64} {
  func.func @_dw_stats_kernel(%arg0: i32, %arg1: memref<1x18x18x128xf32, #tpu.memory_space<vmem>>, %arg2: memref<9x128xf32, #tpu.memory_space<vmem>>, %arg3: memref<1x256x128xbf16, #tpu.memory_space<vmem>>, %arg4: memref<1x2x128xf32, #tpu.memory_space<vmem>>, %arg5: memref<256x128xf32, #tpu.memory_space<vmem>>) attributes {dimension_semantics = [#tpu.dimension_semantics<parallel>], iteration_bounds = array<i64: 2>, scalar_prefetch = 0 : i64, scratch_operands = 1 : i64, tpu.core_type = #tpu.core_type<tc>, window_params = [{transform_indices = @transform_0, window_bounds = array<i64: 1, 18, 18, 128>}, {pipeline_mode = #tpu.pipeline_mode<synchronous>, transform_indices = @transform_1, window_bounds = array<i64: 9, 128>}, {transform_indices = @transform_2, window_bounds = array<i64: 1, 256, 128>}, {transform_indices = @transform_3, window_bounds = array<i64: 1, 2, 128>}]} {
    %c0 = arith.constant 0 : index
    %c0_0 = arith.constant 0 : index
    %0 = vector.load %arg2[%c0, %c0_0] : memref<9x128xf32, #tpu.memory_space<vmem>>, vector<9x128xf32>
    %c0_1 = arith.constant 0 : index
    %c0_2 = arith.constant 0 : index
    %c0_3 = arith.constant 0 : index
    %c0_4 = arith.constant 0 : index
    %1 = vector.load %arg1[%c0_1, %c0_2, %c0_3, %c0_4] : memref<1x18x18x128xf32, #tpu.memory_space<vmem>>, vector<1x16x16x128xf32>
    %2 = vector.shape_cast %1 : vector<1x16x16x128xf32> to vector<256x128xf32>
    %3 = vector.extract_strided_slice %0 {offsets = [0, 0], sizes = [1, 128], strides = [1, 1]} : vector<9x128xf32> to vector<1x128xf32>
    %4 = vector.shape_cast %3 : vector<1x128xf32> to vector<128xf32>
    %5 = vector.shape_cast %4 : vector<128xf32> to vector<1x128xf32>
    %6 = vector.broadcast %5 : vector<1x128xf32> to vector<256x128xf32>
    %7 = arith.mulf %2, %6 : vector<256x128xf32>
    %c0_5 = arith.constant 0 : index
    %c0_6 = arith.constant 0 : index
    %8 = vector.load %arg5[%c0_5, %c0_6] : memref<256x128xf32, #tpu.memory_space<vmem>>, vector<256x128xf32>
    tpu.vector_store %arg5[%c0_5, %c0_6], %7 {strides = array<i32>} : memref<256x128xf32, #tpu.memory_space<vmem>>, vector<256x128xf32>,
    %c0_7 = arith.constant 0 : index
    %c0_8 = arith.constant 0 : index
    %c1 = arith.constant 1 : index
    %c0_9 = arith.constant 0 : index
    %9 = vector.load %arg1[%c0_7, %c0_8, %c1, %c0_9] : memref<1x18x18x128xf32, #tpu.memory_space<vmem>>, vector<1x16x16x128xf32>
    %10 = vector.shape_cast %9 : vector<1x16x16x128xf32> to vector<256x128xf32>
    %11 = vector.extract_strided_slice %0 {offsets = [1, 0], sizes = [1, 128], strides = [1, 1]} : vector<9x128xf32> to vector<1x128xf32>
    %12 = vector.shape_cast %11 : vector<1x128xf32> to vector<128xf32>
    %13 = vector.shape_cast %12 : vector<128xf32> to vector<1x128xf32>
    %14 = vector.broadcast %13 : vector<1x128xf32> to vector<256x128xf32>
    %15 = arith.mulf %10, %14 : vector<256x128xf32>
    %c0_10 = arith.constant 0 : index
    %c0_11 = arith.constant 0 : index
    %16 = vector.load %arg5[%c0_10, %c0_11] : memref<256x128xf32, #tpu.memory_space<vmem>>, vector<256x128xf32>
    %17 = arith.addf %16, %15 : vector<256x128xf32>
    %c0_12 = arith.constant 0 : index
    %c0_13 = arith.constant 0 : index
    %18 = vector.load %arg5[%c0_12, %c0_13] : memref<256x128xf32, #tpu.memory_space<vmem>>, vector<256x128xf32>
    tpu.vector_store %arg5[%c0_12, %c0_13], %17 {strides = array<i32>} : memref<256x128xf32, #tpu.memory_space<vmem>>, vector<256x128xf32>,
    %c0_14 = arith.constant 0 : index
    %c0_15 = arith.constant 0 : index
    %c2 = arith.constant 2 : index
    %c0_16 = arith.constant 0 : index
    %19 = vector.load %arg1[%c0_14, %c0_15, %c2, %c0_16] : memref<1x18x18x128xf32, #tpu.memory_space<vmem>>, vector<1x16x16x128xf32>
    %20 = vector.shape_cast %19 : vector<1x16x16x128xf32> to vector<256x128xf32>
    %21 = vector.extract_strided_slice %0 {offsets = [2, 0], sizes = [1, 128], strides = [1, 1]} : vector<9x128xf32> to vector<1x128xf32>
    %22 = vector.shape_cast %21 : vector<1x128xf32> to vector<128xf32>
    %23 = vector.shape_cast %22 : vector<128xf32> to vector<1x128xf32>
    %24 = vector.broadcast %23 : vector<1x128xf32> to vector<256x128xf32>
    %25 = arith.mulf %20, %24 : vector<256x128xf32>
    %c0_17 = arith.constant 0 : index
    %c0_18 = arith.constant 0 : index
    %26 = vector.load %arg5[%c0_17, %c0_18] : memref<256x128xf32, #tpu.memory_space<vmem>>, vector<256x128xf32>
    %27 = arith.addf %26, %25 : vector<256x128xf32>
    %c0_19 = arith.constant 0 : index
    %c0_20 = arith.constant 0 : index
    %28 = vector.load %arg5[%c0_19, %c0_20] : memref<256x128xf32, #tpu.memory_space<vmem>>, vector<256x128xf32>
    tpu.vector_store %arg5[%c0_19, %c0_20], %27 {strides = array<i32>} : memref<256x128xf32, #tpu.memory_space<vmem>>, vector<256x128xf32>,
    %c0_21 = arith.constant 0 : index
    %c1_22 = arith.constant 1 : index
    %c0_23 = arith.constant 0 : index
    %c0_24 = arith.constant 0 : index
    %29 = vector.load %arg1[%c0_21, %c1_22, %c0_23, %c0_24] : memref<1x18x18x128xf32, #tpu.memory_space<vmem>>, vector<1x16x16x128xf32>
    %30 = vector.shape_cast %29 : vector<1x16x16x128xf32> to vector<256x128xf32>
    %31 = vector.extract_strided_slice %0 {offsets = [3, 0], sizes = [1, 128], strides = [1, 1]} : vector<9x128xf32> to vector<1x128xf32>
    %32 = vector.shape_cast %31 : vector<1x128xf32> to vector<128xf32>
    %33 = vector.shape_cast %32 : vector<128xf32> to vector<1x128xf32>
    %34 = vector.broadcast %33 : vector<1x128xf32> to vector<256x128xf32>
    %35 = arith.mulf %30, %34 : vector<256x128xf32>
    %c0_25 = arith.constant 0 : index
    %c0_26 = arith.constant 0 : index
    %36 = vector.load %arg5[%c0_25, %c0_26] : memref<256x128xf32, #tpu.memory_space<vmem>>, vector<256x128xf32>
    %37 = arith.addf %36, %35 : vector<256x128xf32>
    %c0_27 = arith.constant 0 : index
    %c0_28 = arith.constant 0 : index
    %38 = vector.load %arg5[%c0_27, %c0_28] : memref<256x128xf32, #tpu.memory_space<vmem>>, vector<256x128xf32>
    tpu.vector_store %arg5[%c0_27, %c0_28], %37 {strides = array<i32>} : memref<256x128xf32, #tpu.memory_space<vmem>>, vector<256x128xf32>,
    %c0_29 = arith.constant 0 : index
    %c1_30 = arith.constant 1 : index
    %c1_31 = arith.constant 1 : index
    %c0_32 = arith.constant 0 : index
    %39 = vector.load %arg1[%c0_29, %c1_30, %c1_31, %c0_32] : memref<1x18x18x128xf32, #tpu.memory_space<vmem>>, vector<1x16x16x128xf32>
    %40 = vector.shape_cast %39 : vector<1x16x16x128xf32> to vector<256x128xf32>
    %41 = vector.extract_strided_slice %0 {offsets = [4, 0], sizes = [1, 128], strides = [1, 1]} : vector<9x128xf32> to vector<1x128xf32>
    %42 = vector.shape_cast %41 : vector<1x128xf32> to vector<128xf32>
    %43 = vector.shape_cast %42 : vector<128xf32> to vector<1x128xf32>
    %44 = vector.broadcast %43 : vector<1x128xf32> to vector<256x128xf32>
    %45 = arith.mulf %40, %44 : vector<256x128xf32>
    %c0_33 = arith.constant 0 : index
    %c0_34 = arith.constant 0 : index
    %46 = vector.load %arg5[%c0_33, %c0_34] : memref<256x128xf32, #tpu.memory_space<vmem>>, vector<256x128xf32>
    %47 = arith.addf %46, %45 : vector<256x128xf32>
    %c0_35 = arith.constant 0 : index
    %c0_36 = arith.constant 0 : index
    %48 = vector.load %arg5[%c0_35, %c0_36] : memref<256x128xf32, #tpu.memory_space<vmem>>, vector<256x128xf32>
    tpu.vector_store %arg5[%c0_35, %c0_36], %47 {strides = array<i32>} : memref<256x128xf32, #tpu.memory_space<vmem>>, vector<256x128xf32>,
    %c0_37 = arith.constant 0 : index
    %c1_38 = arith.constant 1 : index
    %c2_39 = arith.constant 2 : index
    %c0_40 = arith.constant 0 : index
    %49 = vector.load %arg1[%c0_37, %c1_38, %c2_39, %c0_40] : memref<1x18x18x128xf32, #tpu.memory_space<vmem>>, vector<1x16x16x128xf32>
    %50 = vector.shape_cast %49 : vector<1x16x16x128xf32> to vector<256x128xf32>
    %51 = vector.extract_strided_slice %0 {offsets = [5, 0], sizes = [1, 128], strides = [1, 1]} : vector<9x128xf32> to vector<1x128xf32>
    %52 = vector.shape_cast %51 : vector<1x128xf32> to vector<128xf32>
    %53 = vector.shape_cast %52 : vector<128xf32> to vector<1x128xf32>
    %54 = vector.broadcast %53 : vector<1x128xf32> to vector<256x128xf32>
    %55 = arith.mulf %50, %54 : vector<256x128xf32>
    %c0_41 = arith.constant 0 : index
    %c0_42 = arith.constant 0 : index
    %56 = vector.load %arg5[%c0_41, %c0_42] : memref<256x128xf32, #tpu.memory_space<vmem>>, vector<256x128xf32>
    %57 = arith.addf %56, %55 : vector<256x128xf32>
    %c0_43 = arith.constant 0 : index
    %c0_44 = arith.constant 0 : index
    %58 = vector.load %arg5[%c0_43, %c0_44] : memref<256x128xf32, #tpu.memory_space<vmem>>, vector<256x128xf32>
    tpu.vector_store %arg5[%c0_43, %c0_44], %57 {strides = array<i32>} : memref<256x128xf32, #tpu.memory_space<vmem>>, vector<256x128xf32>,
    %c0_45 = arith.constant 0 : index
    %c2_46 = arith.constant 2 : index
    %c0_47 = arith.constant 0 : index
    %c0_48 = arith.constant 0 : index
    %59 = vector.load %arg1[%c0_45, %c2_46, %c0_47, %c0_48] : memref<1x18x18x128xf32, #tpu.memory_space<vmem>>, vector<1x16x16x128xf32>
    %60 = vector.shape_cast %59 : vector<1x16x16x128xf32> to vector<256x128xf32>
    %61 = vector.extract_strided_slice %0 {offsets = [6, 0], sizes = [1, 128], strides = [1, 1]} : vector<9x128xf32> to vector<1x128xf32>
    %62 = vector.shape_cast %61 : vector<1x128xf32> to vector<128xf32>
    %63 = vector.shape_cast %62 : vector<128xf32> to vector<1x128xf32>
    %64 = vector.broadcast %63 : vector<1x128xf32> to vector<256x128xf32>
    %65 = arith.mulf %60, %64 : vector<256x128xf32>
    %c0_49 = arith.constant 0 : index
    %c0_50 = arith.constant 0 : index
    %66 = vector.load %arg5[%c0_49, %c0_50] : memref<256x128xf32, #tpu.memory_space<vmem>>, vector<256x128xf32>
    %67 = arith.addf %66, %65 : vector<256x128xf32>
    %c0_51 = arith.constant 0 : index
    %c0_52 = arith.constant 0 : index
    %68 = vector.load %arg5[%c0_51, %c0_52] : memref<256x128xf32, #tpu.memory_space<vmem>>, vector<256x128xf32>
    tpu.vector_store %arg5[%c0_51, %c0_52], %67 {strides = array<i32>} : memref<256x128xf32, #tpu.memory_space<vmem>>, vector<256x128xf32>,
    %c0_53 = arith.constant 0 : index
    %c2_54 = arith.constant 2 : index
    %c1_55 = arith.constant 1 : index
    %c0_56 = arith.constant 0 : index
    %69 = vector.load %arg1[%c0_53, %c2_54, %c1_55, %c0_56] : memref<1x18x18x128xf32, #tpu.memory_space<vmem>>, vector<1x16x16x128xf32>
    %70 = vector.shape_cast %69 : vector<1x16x16x128xf32> to vector<256x128xf32>
    %71 = vector.extract_strided_slice %0 {offsets = [7, 0], sizes = [1, 128], strides = [1, 1]} : vector<9x128xf32> to vector<1x128xf32>
    %72 = vector.shape_cast %71 : vector<1x128xf32> to vector<128xf32>
    %73 = vector.shape_cast %72 : vector<128xf32> to vector<1x128xf32>
    %74 = vector.broadcast %73 : vector<1x128xf32> to vector<256x128xf32>
    %75 = arith.mulf %70, %74 : vector<256x128xf32>
    %c0_57 = arith.constant 0 : index
    %c0_58 = arith.constant 0 : index
    %76 = vector.load %arg5[%c0_57, %c0_58] : memref<256x128xf32, #tpu.memory_space<vmem>>, vector<256x128xf32>
    %77 = arith.addf %76, %75 : vector<256x128xf32>
    %c0_59 = arith.constant 0 : index
    %c0_60 = arith.constant 0 : index
    %78 = vector.load %arg5[%c0_59, %c0_60] : memref<256x128xf32, #tpu.memory_space<vmem>>, vector<256x128xf32>
    tpu.vector_store %arg5[%c0_59, %c0_60], %77 {strides = array<i32>} : memref<256x128xf32, #tpu.memory_space<vmem>>, vector<256x128xf32>,
    %c0_61 = arith.constant 0 : index
    %c2_62 = arith.constant 2 : index
    %c2_63 = arith.constant 2 : index
    %c0_64 = arith.constant 0 : index
    %79 = vector.load %arg1[%c0_61, %c2_62, %c2_63, %c0_64] : memref<1x18x18x128xf32, #tpu.memory_space<vmem>>, vector<1x16x16x128xf32>
    %80 = vector.shape_cast %79 : vector<1x16x16x128xf32> to vector<256x128xf32>
    %81 = vector.extract_strided_slice %0 {offsets = [8, 0], sizes = [1, 128], strides = [1, 1]} : vector<9x128xf32> to vector<1x128xf32>
    %82 = vector.shape_cast %81 : vector<1x128xf32> to vector<128xf32>
    %83 = vector.shape_cast %82 : vector<128xf32> to vector<1x128xf32>
    %84 = vector.broadcast %83 : vector<1x128xf32> to vector<256x128xf32>
    %85 = arith.mulf %80, %84 : vector<256x128xf32>
    %c0_65 = arith.constant 0 : index
    %c0_66 = arith.constant 0 : index
    %86 = vector.load %arg5[%c0_65, %c0_66] : memref<256x128xf32, #tpu.memory_space<vmem>>, vector<256x128xf32>
    %87 = arith.addf %86, %85 : vector<256x128xf32>
    %c0_67 = arith.constant 0 : index
    %c0_68 = arith.constant 0 : index
    %88 = vector.load %arg5[%c0_67, %c0_68] : memref<256x128xf32, #tpu.memory_space<vmem>>, vector<256x128xf32>
    tpu.vector_store %arg5[%c0_67, %c0_68], %87 {strides = array<i32>} : memref<256x128xf32, #tpu.memory_space<vmem>>, vector<256x128xf32>,
    %c0_69 = arith.constant 0 : index
    %c0_70 = arith.constant 0 : index
    %89 = vector.load %arg5[%c0_69, %c0_70] : memref<256x128xf32, #tpu.memory_space<vmem>>, vector<256x128xf32>
    %90 = arith.truncf %89 : vector<256x128xf32> to vector<256x128xbf16>
    %91 = vector.shape_cast %90 : vector<256x128xbf16> to vector<1x256x128xbf16>
    %c0_71 = arith.constant 0 : index
    %c0_72 = arith.constant 0 : index
    %c0_73 = arith.constant 0 : index
    %92 = vector.load %arg3[%c0_71, %c0_72, %c0_73] : memref<1x256x128xbf16, #tpu.memory_space<vmem>>, vector<1x256x128xbf16>
    tpu.vector_store %arg3[%c0_71, %c0_72, %c0_73], %91 {strides = array<i32>} : memref<1x256x128xbf16, #tpu.memory_space<vmem>>, vector<1x256x128xbf16>,
    %cst = arith.constant 1.000000e+00 : f32
    %93 = vector.broadcast %cst : f32 to vector<1x256xf32>
    %cst_74 = arith.constant dense<0.000000e+00> : vector<1x128xf32>
    %94 = tpu.matmul %93, %89, %cst_74 {dimension_numbers = #tpu.dot_dimension_numbers<[1], [0], [0], [1], [0, 0, 1, 1], [], []>} : vector<1x256xf32>, vector<256x128xf32>, vector<1x128xf32> -> vector<1x128xf32>
    %95 = arith.mulf %89, %89 : vector<256x128xf32>
    %cst_75 = arith.constant dense<0.000000e+00> : vector<1x128xf32>
    %96 = tpu.matmul %93, %95, %cst_75 {dimension_numbers = #tpu.dot_dimension_numbers<[1], [0], [0], [1], [0, 0, 1, 1], [], []>} : vector<1x256xf32>, vector<256x128xf32>, vector<1x128xf32> -> vector<1x128xf32>
    %97 = tpu.concatenate %94, %96 in 0 : vector<1x128xf32>, vector<1x128xf32> -> vector<2x128xf32>
    %98 = vector.shape_cast %97 : vector<2x128xf32> to vector<1x2x128xf32>
    %c0_76 = arith.constant 0 : index
    %c0_77 = arith.constant 0 : index
    %c0_78 = arith.constant 0 : index
    %99 = vector.load %arg4[%c0_76, %c0_77, %c0_78] : memref<1x2x128xf32, #tpu.memory_space<vmem>>, vector<1x2x128xf32>
    tpu.vector_store %arg4[%c0_76, %c0_77, %c0_78], %98 {strides = array<i32>} : memref<1x2x128xf32, #tpu.memory_space<vmem>>, vector<1x2x128xf32>,
    return
  }
  func.func @transform_0(%arg0: i32) -> (i32, i32, i32, i32) {
    %c0_i32 = arith.constant 0 : i32
    %c0_i32_0 = arith.constant 0 : i32
    %c0_i32_1 = arith.constant 0 : i32
    %c0_i32_2 = arith.constant 0 : i32
    return %arg0, %c0_i32, %c0_i32_0, %c0_i32_1 : i32, i32, i32, i32
  }
  func.func @transform_1(%arg0: i32) -> (i32, i32) {
    %c0_i32 = arith.constant 0 : i32
    %c0_i32_0 = arith.constant 0 : i32
    %c0_i32_1 = arith.constant 0 : i32
    return %c0_i32, %c0_i32_0 : i32, i32
  }
  func.func @transform_2(%arg0: i32) -> (i32, i32, i32) {
    %c0_i32 = arith.constant 0 : i32
    %c0_i32_0 = arith.constant 0 : i32
    %c0_i32_1 = arith.constant 0 : i32
    return %arg0, %c0_i32, %c0_i32_0 : i32, i32, i32
  }
  func.func @transform_3(%arg0: i32) -> (i32, i32, i32) {
    %c0_i32 = arith.constant 0 : i32
    %c0_i32_0 = arith.constant 0 : i32
    %c0_i32_1 = arith.constant 0 : i32
    return %arg0, %c0_i32, %c0_i32_0 : i32, i32, i32
  }
}

</mosaic_0001>

<llo_original>
// kernel: depthwise_separable_conv.3
$region0: #{depthwise_separable_conv.3}
  #allocation0 [shape = 'u32[]', space=smem, size = 0x4, offset = 0x4, fixed_abs, tag = 'smem constant byte address 0x4 - core index']
  #allocation1 [shape = 'u32[144,128]{1,0:T(1,128)}', space=vmem, size = 0x12000, scoped, tag = 'internal scratch']
  #allocation2 [shape = 'f32[256,128]{1,0:T(8,128)}', space=vmem, size = 0x20000, scoped, tag = 'scratch operand']
  %s0 = inlined_call_operand.vmem [shape: bf16[2,256,128], index: 0, kind: input, shape index: {}]
  %s1 = inlined_call_operand.vmem [shape: f32[1,128], index: 1, kind: input, shape index: {}]
  %s2 = inlined_call_operand.vmem [shape: f32[1,128], index: 2, kind: input, shape index: {}]
  %s3 = inlined_call_operand.vmem [shape: f32[128,128], index: 3, kind: input, shape index: {}]
  %s4 = inlined_call_operand.vmem [shape: f32[1,128], index: 4, kind: input, shape index: {}]
  %s5 = inlined_call_operand.vmem [shape: f32[128,128], index: 5, kind: input, shape index: {}]
  %s6 = inlined_call_operand.vmem [shape: f32[1,128], index: 6, kind: input, shape index: {}]
  %s7 = inlined_call_operand.vmem [shape: bf16[128,128], index: 7, kind: input, shape index: {}]
  %s8 = inlined_call_operand.vmem [shape: f32[1,128], index: 8, kind: input, shape index: {}]
  %s9 = inlined_call_operand.hbm [shape: f32[2,256,128], index: 9, kind: output, shape index: {}]
  %s10 = sld [smem:[#allocation0]]
  $region69: #{depthwise_separable_conv.3} parent=0
    _
  %s12 = ssub.s32 1, %s10
  %s13 = scalar_select 0, %s12, %s10
  $region1: #{depthwise_separable_conv.3} parent=0
    #allocation3 [shape = 'u8[262144]{0}', space=vmem, size = 0x40000, scoped, tag = 'output window, operand 0']
    #allocation4 [shape = 's32[2]{0}', space=sflag, size = 0x8, scoped, tag = 'scoped memory for depthwise_separable_conv.3']
    %14 = vsyncpa [#allocation4], 0
    %s15 = scalar_lea.sflag [#allocation4], 1
    %16 = vsyncpa %s15, 0
    loop: start=0, step=1, limit=4
    $region2: #{depthwise_separable_conv.3} parent=1 // loop_pre_header
      _
    $region3: #{depthwise_separable_conv.3} parent=1 // loop_header
      %s18 = sphi 0, %s22
      %p19 = scmp.ge.s32.totalorder %s18, 4
      %s28 = sphi 0, %s30
      %s31 = sphi 0, %s28
      %s32 = sphi 0, %s31
      %s48 = sphi 0, %s32
      %s52 = sphi 0, %s52
      %s54 = sphi 0, %s52
      %s55 = sphi 0, %s54
      %s69 = sphi 0, %s55
      %s73 = sphi 0, %s73
      %s75 = sphi 0, %s73
      %s76 = sphi 0, %s75
      %s90 = sphi 0, %s76
      %s94 = sphi 0, %s94
      %s96 = sphi 0, %s94
      %s97 = sphi 0, %s96
      %s111 = sphi 0, %s97
      %s115 = sphi 0, %s115
      %s117 = sphi 0, %s115
      %s118 = sphi 0, %s117
      %s132 = sphi 0, %s118
      %s136 = sphi 0, %s136
      %s138 = sphi 0, %s136
      %s139 = sphi 0, %s138
      %s153 = sphi 0, %s139
      %s157 = sphi 0, %s157
      %s159 = sphi 0, %s157
      %s160 = sphi 0, %s159
      %s174 = sphi 0, %s160
      %s178 = sphi 0, %s178
      %s180 = sphi 0, %s178
      %s181 = sphi 0, %s180
      %s195 = sphi 0, %s181
      %s199 = sphi 0, %s199
      %s201 = sphi 0, %s199
      %s202 = sphi 0, %s201
      %s216 = sphi 0, %s202
      %s222 = sphi 0, %s224
      %s225 = sphi 0, %s222
      %s226 = sphi 0, %s225
      %s242 = sphi 0, %s226
    $region4: #{depthwise_separable_conv.3} parent=1 // loop_header_branch
      %21 = sbr.rel (%p19) target = $region8
    $region5: #{depthwise_separable_conv.3} parent=1 // loop_body
      %s23 = ssub.s32 %s18, 1
      %s24 = ssub.s32 %s18, 2
      %s25 = sadd.s32 %s18, 1
      %s26 = ssub.s32 %s18, %s25
      %p27 = scmp.eq.s32.totalorder %s26, 0
      %s29 = sadd.s32 %s28, 1
      %s30 = scalar_select %p27, %s28, %s29
      %p33 = pneg %p27
      %p34 = scmp.eq.s32.totalorder %s18, 1
      %p35 = por %p33, %p34
      %p36 = scmp.ne.s32.totalorder %s28, %s31
      %p37 = scmp.eq.s32.totalorder %s18, 0
      %p38 = por %p36, %p37
      %p39 = scmp.ne.s32.totalorder %s28, %s31
      %p40 = scmp.eq.s32.totalorder %s23, 1
      %p41 = por %p39, %p40
      %p42 = scmp.ne.s32.totalorder %s31, %s32
      %p43 = scmp.eq.s32.totalorder %s23, 0
      %p44 = por %p42, %p43
      %p45 = scmp.ne.s32.totalorder %s31, %s32
      %p46 = scmp.eq.s32.totalorder %s24, 1
      %p47 = por %p45, %p46
      %p49 = scmp.ne.s32.totalorder %s32, %s48
      %p50 = scmp.eq.s32.totalorder %s24, 0
      %p51 = por %p49, %p50
      %s53 = sadd.s32 %s52, 1
      %p56 = scmp.eq.s32.totalorder %s18, 1
      %p57 = scmp.ne.s32.totalorder %s52, %s54
      %p58 = scmp.eq.s32.totalorder %s18, 0
      %p59 = por %p57, %p58
      %p60 = scmp.ne.s32.totalorder %s52, %s54
      %p61 = scmp.eq.s32.totalorder %s23, 1
      %p62 = por %p60, %p61
      %p63 = scmp.ne.s32.totalorder %s54, %s55
      %p64 = scmp.eq.s32.totalorder %s23, 0
      %p65 = por %p63, %p64
      %p66 = scmp.ne.s32.totalorder %s54, %s55
      %p67 = scmp.eq.s32.totalorder %s24, 1
      %p68 = por %p66, %p67
      %p70 = scmp.ne.s32.totalorder %s55, %s69
      %p71 = scmp.eq.s32.totalorder %s24, 0
      %p72 = por %p70, %p71
      %s74 = sadd.s32 %s73, 1
      %p77 = scmp.eq.s32.totalorder %s18, 1
      %p78 = scmp.ne.s32.totalorder %s73, %s75
      %p79 = scmp.eq.s32.totalorder %s18, 0
      %p80 = por %p78, %p79
      %p81 = scmp.ne.s32.totalorder %s73, %s75
      %p82 = scmp.eq.s32.totalorder %s23, 1
      %p83 = por %p81, %p82
      %p84 = scmp.ne.s32.totalorder %s75, %s76
      %p85 = scmp.eq.s32.totalorder %s23, 0
      %p86 = por %p84, %p85
      %p87 = scmp.ne.s32.totalorder %s75, %s76
      %p88 = scmp.eq.s32.totalorder %s24, 1
      %p89 = por %p87, %p88
      %p91 = scmp.ne.s32.totalorder %s76, %s90
      %p92 = scmp.eq.s32.totalorder %s24, 0
      %p93 = por %p91, %p92
      %s95 = sadd.s32 %s94, 1
      %p98 = scmp.eq.s32.totalorder %s18, 1
      %p99 = scmp.ne.s32.totalorder %s94, %s96
      %p100 = scmp.eq.s32.totalorder %s18, 0
      %p101 = por %p99, %p100
      %p102 = scmp.ne.s32.totalorder %s94, %s96
      %p103 = scmp.eq.s32.totalorder %s23, 1
      %p104 = por %p102, %p103
      %p105 = scmp.ne.s32.totalorder %s96, %s97
      %p106 = scmp.eq.s32.totalorder %s23, 0
      %p107 = por %p105, %p106
      %p108 = scmp.ne.s32.totalorder %s96, %s97
      %p109 = scmp.eq.s32.totalorder %s24, 1
      %p110 = por %p108, %p109
      %p112 = scmp.ne.s32.totalorder %s97, %s111
      %p113 = scmp.eq.s32.totalorder %s24, 0
      %p114 = por %p112, %p113
      %s116 = sadd.s32 %s115, 1
      %p119 = scmp.eq.s32.totalorder %s18, 1
      %p120 = scmp.ne.s32.totalorder %s115, %s117
      %p121 = scmp.eq.s32.totalorder %s18, 0
      %p122 = por %p120, %p121
      %p123 = scmp.ne.s32.totalorder %s115, %s117
      %p124 = scmp.eq.s32.totalorder %s23, 1
      %p125 = por %p123, %p124
      %p126 = scmp.ne.s32.totalorder %s117, %s118
      %p127 = scmp.eq.s32.totalorder %s23, 0
      %p128 = por %p126, %p127
      %p129 = scmp.ne.s32.totalorder %s117, %s118
      %p130 = scmp.eq.s32.totalorder %s24, 1
      %p131 = por %p129, %p130
      %p133 = scmp.ne.s32.totalorder %s118, %s132
      %p134 = scmp.eq.s32.totalorder %s24, 0
      %p135 = por %p133, %p134
      %s137 = sadd.s32 %s136, 1
      %p140 = scmp.eq.s32.totalorder %s18, 1
      %p141 = scmp.ne.s32.totalorder %s136, %s138
      %p142 = scmp.eq.s32.totalorder %s18, 0
      %p143 = por %p141, %p142
      %p144 = scmp.ne.s32.totalorder %s136, %s138
      %p145 = scmp.eq.s32.totalorder %s23, 1
      %p146 = por %p144, %p145
      %p147 = scmp.ne.s32.totalorder %s138, %s139
      %p148 = scmp.eq.s32.totalorder %s23, 0
      %p149 = por %p147, %p148
      %p150 = scmp.ne.s32.totalorder %s138, %s139
      %p151 = scmp.eq.s32.totalorder %s24, 1
      %p152 = por %p150, %p151
      %p154 = scmp.ne.s32.totalorder %s139, %s153
      %p155 = scmp.eq.s32.totalorder %s24, 0
      %p156 = por %p154, %p155
      %s158 = sadd.s32 %s157, 1
      %p161 = scmp.eq.s32.totalorder %s18, 1
      %p162 = scmp.ne.s32.totalorder %s157, %s159
      %p163 = scmp.eq.s32.totalorder %s18, 0
      %p164 = por %p162, %p163
      %p165 = scmp.ne.s32.totalorder %s157, %s159
      %p166 = scmp.eq.s32.totalorder %s23, 1
      %p167 = por %p165, %p166
      %p168 = scmp.ne.s32.totalorder %s159, %s160
      %p169 = scmp.eq.s32.totalorder %s23, 0
      %p170 = por %p168, %p169
      %p171 = scmp.ne.s32.totalorder %s159, %s160
      %p172 = scmp.eq.s32.totalorder %s24, 1
      %p173 = por %p171, %p172
      %p175 = scmp.ne.s32.totalorder %s160, %s174
      %p176 = scmp.eq.s32.totalorder %s24, 0
      %p177 = por %p175, %p176
      %s179 = sadd.s32 %s178, 1
      %p182 = scmp.eq.s32.totalorder %s18, 1
      %p183 = scmp.ne.s32.totalorder %s178, %s180
      %p184 = scmp.eq.s32.totalorder %s18, 0
      %p185 = por %p183, %p184
      %p186 = scmp.ne.s32.totalorder %s178, %s180
      %p187 = scmp.eq.s32.totalorder %s23, 1
      %p188 = por %p186, %p187
      %p189 = scmp.ne.s32.totalorder %s180, %s181
      %p190 = scmp.eq.s32.totalorder %s23, 0
      %p191 = por %p189, %p190
      %p192 = scmp.ne.s32.totalorder %s180, %s181
      %p193 = scmp.eq.s32.totalorder %s24, 1
      %p194 = por %p192, %p193
      %p196 = scmp.ne.s32.totalorder %s181, %s195
      %p197 = scmp.eq.s32.totalorder %s24, 0
      %p198 = por %p196, %p197
      %s200 = sadd.s32 %s199, 1
      %p203 = scmp.eq.s32.totalorder %s18, 1
      %p204 = scmp.ne.s32.totalorder %s199, %s201
      %p205 = scmp.eq.s32.totalorder %s18, 0
      %p206 = por %p204, %p205
      %p207 = scmp.ne.s32.totalorder %s199, %s201
      %p208 = scmp.eq.s32.totalorder %s23, 1
      %p209 = por %p207, %p208
      %p210 = scmp.ne.s32.totalorder %s201, %s202
      %p211 = scmp.eq.s32.totalorder %s23, 0
      %p212 = por %p210, %p211
      %p213 = scmp.ne.s32.totalorder %s201, %s202
      %p214 = scmp.eq.s32.totalorder %s24, 1
      %p215 = por %p213, %p214
      %p217 = scmp.ne.s32.totalorder %s202, %s216
      %p218 = scmp.eq.s32.totalorder %s24, 0
      %p219 = por %p217, %p218
      %s220 = ssub.s32 %s18, %s25
      %p221 = scmp.eq.s32.totalorder %s220, 0
      %s223 = sadd.s32 %s222, 1
      %s224 = scalar_select %p221, %s222, %s223
      %p227 = pneg %p221
      %p228 = scmp.eq.s32.totalorder %s18, 1
      %p229 = por %p227, %p228
      %p230 = scmp.ne.s32.totalorder %s222, %s225
      %p231 = scmp.eq.s32.totalorder %s18, 0
      %p232 = por %p230, %p231
      %p233 = scmp.ne.s32.totalorder %s222, %s225
      %p234 = scmp.eq.s32.totalorder %s23, 1
      %p235 = por %p233, %p234
      %p236 = scmp.ne.s32.totalorder %s225, %s226
      %p237 = scmp.eq.s32.totalorder %s23, 0
      %p238 = por %p236, %p237
      %p239 = scmp.ne.s32.totalorder %s225, %s226
      %p240 = scmp.eq.s32.totalorder %s24, 1
      %p241 = por %p239, %p240
      %p243 = scmp.ne.s32.totalorder %s226, %s242
      %p244 = scmp.eq.s32.totalorder %s24, 0
      %p245 = por %p243, %p244
      %p246 = scmp.le.s32.totalorder 1, %s18
      %p247 = scmp.lt.s32.totalorder %s18, 3
      %p248 = pnand %p246, %p247
      %p249 = pneg %p248
      // Predicated region
      $region9: #{depthwise_separable_conv.3} parent=5 // pred_check
        _
      $region10: #{depthwise_separable_conv.3} parent=5 // pred_check_branch
        %251 = sbr.rel (%p248) target = $region12
      $region11: #{depthwise_separable_conv.3} parent=5 // pred_region
        %s252 = ssub.s32 %s18, 1
        // Predicated region
        $region13: #{depthwise_separable_conv.3} parent=11 // pred_check
          %p253 = pneg %p65
        $region14: #{depthwise_separable_conv.3} parent=11 // pred_check_branch
          %255 = sbr.rel (%p253) target = $region16
        $region15: #{depthwise_separable_conv.3} parent=11 // pred_region
          _
        $region16: #{depthwise_separable_conv.3} parent=11 // pred_fallthru
          _
        // Predicated region
        $region17: #{depthwise_separable_conv.3} parent=11 // pred_check
          %p256 = pneg %p86
        $region18: #{depthwise_separable_conv.3} parent=11 // pred_check_branch
          %258 = sbr.rel (%p256) target = $region20
        $region19: #{depthwise_separable_conv.3} parent=11 // pred_region
          _
        $region20: #{depthwise_separable_conv.3} parent=11 // pred_fallthru
          _
        // Predicated region
        $region21: #{depthwise_separable_conv.3} parent=11 // pred_check
          %p259 = pneg %p107
        $region22: #{depthwise_separable_conv.3} parent=11 // pred_check_branch
          %261 = sbr.rel (%p259) target = $region24
        $region23: #{depthwise_separable_conv.3} parent=11 // pred_region
          _
        $region24: #{depthwise_separable_conv.3} parent=11 // pred_fallthru
          _
        // Predicated region
        $region25: #{depthwise_separable_conv.3} parent=11 // pred_check
          %p262 = pneg %p128
        $region26: #{depthwise_separable_conv.3} parent=11 // pred_check_branch
          %264 = sbr.rel (%p262) target = $region28
        $region27: #{depthwise_separable_conv.3} parent=11 // pred_region
          _
        $region28: #{depthwise_separable_conv.3} parent=11 // pred_fallthru
          _
        // Predicated region
        $region29: #{depthwise_separable_conv.3} parent=11 // pred_check
          %p265 = pneg %p149
        $region30: #{depthwise_separable_conv.3} parent=11 // pred_check_branch
          %267 = sbr.rel (%p265) target = $region32
        $region31: #{depthwise_separable_conv.3} parent=11 // pred_region
          _
        $region32: #{depthwise_separable_conv.3} parent=11 // pred_fallthru
          _
        // Predicated region
        $region33: #{depthwise_separable_conv.3} parent=11 // pred_check
          %p268 = pneg %p170
        $region34: #{depthwise_separable_conv.3} parent=11 // pred_check_branch
          %270 = sbr.rel (%p268) target = $region36
        $region35: #{depthwise_separable_conv.3} parent=11 // pred_region
          _
        $region36: #{depthwise_separable_conv.3} parent=11 // pred_fallthru
          _
        // Predicated region
        $region37: #{depthwise_separable_conv.3} parent=11 // pred_check
          %p271 = pneg %p191
        $region38: #{depthwise_separable_conv.3} parent=11 // pred_check_branch
          %273 = sbr.rel (%p271) target = $region40
        $region39: #{depthwise_separable_conv.3} parent=11 // pred_region
          _
        $region40: #{depthwise_separable_conv.3} parent=11 // pred_fallthru
          _
        // Predicated region
        $region41: #{depthwise_separable_conv.3} parent=11 // pred_check
          %p274 = pneg %p212
        $region42: #{depthwise_separable_conv.3} parent=11 // pred_check_branch
          %276 = sbr.rel (%p274) target = $region44
        $region43: #{depthwise_separable_conv.3} parent=11 // pred_region
          _
        $region44: #{depthwise_separable_conv.3} parent=11 // pred_fallthru
          _
      $region12: #{depthwise_separable_conv.3} parent=5 // pred_fallthru
        _
      %p277 = scmp.lt.s32.totalorder %s18, 2
      // Predicated region
      $region45: #{depthwise_separable_conv.3} parent=5 // pred_check
        %p278 = pneg %p277
      $region46: #{depthwise_separable_conv.3} parent=5 // pred_check_branch
        %280 = sbr.rel (%p278) target = $region48
      $region47: #{depthwise_separable_conv.3} parent=5 // pred_region
        // Predicated region
        $region49: #{depthwise_separable_conv.3} parent=47 // pred_check
          %p281 = pneg %p38
        $region50: #{depthwise_separable_conv.3} parent=47 // pred_check_branch
          %283 = sbr.rel (%p281) target = $region52
        $region51: #{depthwise_separable_conv.3} parent=47 // pred_region
          %p284 = scmp.lt.s32.totalorder %s18, 1
          %s285 = scalar_select %p284, %s18, 1
          %s286 = smul.addr %s285, 32
          %s287 = smul.addr %s286, 4
          %s288 = scalar_lea.vmem %s0, %s287
        $region52: #{depthwise_separable_conv.3} parent=47 // pred_fallthru
          _
      $region48: #{depthwise_separable_conv.3} parent=5 // pred_fallthru
        _
      %p289 = scmp.le.s32.totalorder 1, %s18
      %p290 = scmp.lt.s32.totalorder %s18, 3
      %p291 = pnand %p289, %p290
      %p292 = pneg %p291
      // Predicated region
      $region53: #{depthwise_separable_conv.3} parent=5 // pred_check
        _
      $region54: #{depthwise_separable_conv.3} parent=5 // pred_check_branch
        %294 = sbr.rel (%p291) target = $region56
      $region55: #{depthwise_separable_conv.3} parent=5 // pred_region
        %s295 = ssub.s32 %s18, 1
        %p296 = scmp.lt.s32.totalorder %s23, 1
        %s297 = scalar_select %p296, %s23, 1
        %s298 = smul.addr %s297, 32
        %s299 = smul.addr %s298, 4
        %s300 = scalar_lea.vmem %s0, %s299
        %p301 = pneg %p44
        %p302 = pneg %p41
        %p303 = pneg %p65
        %p304 = pneg %p62
        %p305 = pneg %p86
        %p306 = pneg %p83
        %p307 = pneg %p107
        %p308 = pneg %p104
        %p309 = pneg %p128
        %p310 = pneg %p125
        %p311 = pneg %p149
        %p312 = pneg %p146
        %p313 = pneg %p170
        %p314 = pneg %p167
        %p315 = pneg %p191
        %p316 = pneg %p188
        %p317 = pneg %p212
        %p318 = pneg %p209
        %p319 = pneg %p238
        %p320 = pneg %p235
        %s321 = sand.u32 %s225, 1
        %s322 = scalar_lea.sflag [#allocation4], %s321
        %s323 = sand.u32 %s225, 1
        %s324 = smul.addr %s323, 256
        %s325 = scalar_lea.vmem [#allocation3], %s324
        %p326 = scmp.lt.s32.totalorder %s23, 1
        %s327 = scalar_select %p326, %s23, 1
        %s328 = smul.addr %s327, 32
        %s329 = smul.addr %s328, 4
        %s330 = scalar_lea.vmem %s0, %s329
        %v332 = vld [vmem:[%s330] sm:$0xf]
        %v333 = vld [vmem:[%s330 + $0x4] sm:$0xf]
        %v334 = vld [vmem:[%s330 + $0x8] sm:$0xf]
        %v335 = vld [vmem:[%s330 + $0xc] sm:$0xf]
        %v336 = vld [vmem:[%s330 + $0x10] sm:$0xf]
        %v337 = vld [vmem:[%s330 + $0x14] sm:$0xf]
        %v338 = vld [vmem:[%s330 + $0x18] sm:$0xf]
        %v339 = vld [vmem:[%s330 + $0x1c] sm:$0xf]
        %v340 = vld [vmem:[%s330 + $0x20] sm:$0xf]
        %v341 = vld [vmem:[%s330 + $0x24] sm:$0xf]
        %v342 = vld [vmem:[%s330 + $0x28] sm:$0xf]
        %v343 = vld [vmem:[%s330 + $0x2c] sm:$0xf]
        %v344 = vld [vmem:[%s330 + $0x30] sm:$0xf]
        %v345 = vld [vmem:[%s330 + $0x34] sm:$0xf]
        %v346 = vld [vmem:[%s330 + $0x38] sm:$0xf]
        %v347 = vld [vmem:[%s330 + $0x3c] sm:$0xf]
        %v348 = vld [vmem:[%s330 + $0x40] sm:$0xf]
        %v349 = vld [vmem:[%s330 + $0x44] sm:$0xf]
        %v350 = vld [vmem:[%s330 + $0x48] sm:$0xf]
        %v351 = vld [vmem:[%s330 + $0x4c] sm:$0xf]
        %v352 = vld [vmem:[%s330 + $0x50] sm:$0xf]
        %v353 = vld [vmem:[%s330 + $0x54] sm:$0xf]
        %v354 = vld [vmem:[%s330 + $0x58] sm:$0xf]
        %v355 = vld [vmem:[%s330 + $0x5c] sm:$0xf]
        %v356 = vld [vmem:[%s330 + $0x60] sm:$0xf]
        %v357 = vld [vmem:[%s330 + $0x64] sm:$0xf]
        %v358 = vld [vmem:[%s330 + $0x68] sm:$0xf]
        %v359 = vld [vmem:[%s330 + $0x6c] sm:$0xf]
        %v360 = vld [vmem:[%s330 + $0x70] sm:$0xf]
        %v361 = vld [vmem:[%s330 + $0x74] sm:$0xf]
        %v362 = vld [vmem:[%s330 + $0x78] sm:$0xf]
        %v363 = vld [vmem:[%s330 + $0x7c] sm:$0xf]
        %v364 = vunpack.c.l.bf16 %v332
        %v365 = vunpack.c.l.bf16 %v333
        %v366 = vunpack.c.l.bf16 %v334
        %v367 = vunpack.c.l.bf16 %v335
        %v368 = vunpack.c.l.bf16 %v336
        %v369 = vunpack.c.l.bf16 %v337
        %v370 = vunpack.c.l.bf16 %v338
        %v371 = vunpack.c.l.bf16 %v339
        %v372 = vunpack.c.l.bf16 %v340
        %v373 = vunpack.c.l.bf16 %v341
        %v374 = vunpack.c.l.bf16 %v342
        %v375 = vunpack.c.l.bf16 %v343
        %v376 = vunpack.c.l.bf16 %v344
        %v377 = vunpack.c.l.bf16 %v345
        %v378 = vunpack.c.l.bf16 %v346
        %v379 = vunpack.c.l.bf16 %v347
        %v380 = vunpack.c.l.bf16 %v348
        %v381 = vunpack.c.l.bf16 %v349
        %v382 = vunpack.c.l.bf16 %v350
        %v383 = vunpack.c.l.bf16 %v351
        %v384 = vunpack.c.l.bf16 %v352
        %v385 = vunpack.c.l.bf16 %v353
        %v386 = vunpack.c.l.bf16 %v354
        %v387 = vunpack.c.l.bf16 %v355
        %v388 = vunpack.c.l.bf16 %v356
        %v389 = vunpack.c.l.bf16 %v357
        %v390 = vunpack.c.l.bf16 %v358
        %v391 = vunpack.c.l.bf16 %v359
        %v392 = vunpack.c.l.bf16 %v360
        %v393 = vunpack.c.l.bf16 %v361
        %v394 = vunpack.c.l.bf16 %v362
        %v395 = vunpack.c.l.bf16 %v363
        %v396 = vld [vmem:[%s1] sm:$0x1]
        %v398 = vlaneseq
        %v399 = vshrl.u32 %v398, 7
        %v400 = vsub.s32 0, %v399
        %v401 = vrot.slane %v396, %v400
        %v403 = vmul.f32 %v364, %v401
        %v404 = vmul.f32 %v365, %v401
        %v405 = vmul.f32 %v366, %v401
        %v406 = vmul.f32 %v367, %v401
        %v407 = vmul.f32 %v368, %v401
        %v408 = vmul.f32 %v369, %v401
        %v409 = vmul.f32 %v370, %v401
        %v410 = vmul.f32 %v371, %v401
        %v411 = vmul.f32 %v372, %v401
        %v412 = vmul.f32 %v373, %v401
        %v413 = vmul.f32 %v374, %v401
        %v414 = vmul.f32 %v375, %v401
        %v415 = vmul.f32 %v376, %v401
        %v416 = vmul.f32 %v377, %v401
        %v417 = vmul.f32 %v378, %v401
        %v418 = vmul.f32 %v379, %v401
        %v419 = vmul.f32 %v380, %v401
        %v420 = vmul.f32 %v381, %v401
        %v421 = vmul.f32 %v382, %v401
        %v422 = vmul.f32 %v383, %v401
        %v423 = vmul.f32 %v384, %v401
        %v424 = vmul.f32 %v385, %v401
        %v425 = vmul.f32 %v386, %v401
        %v426 = vmul.f32 %v387, %v401
        %v427 = vmul.f32 %v388, %v401
        %v428 = vmul.f32 %v389, %v401
        %v429 = vmul.f32 %v390, %v401
        %v430 = vmul.f32 %v391, %v401
        %v431 = vmul.f32 %v392, %v401
        %v432 = vmul.f32 %v393, %v401
        %v433 = vmul.f32 %v394, %v401
        %v434 = vmul.f32 %v395, %v401
        %v435 = vld [vmem:[%s2] sm:$0x1]
        %v437 = vlaneseq
        %v438 = vshrl.u32 %v437, 7
        %v439 = vsub.s32 0, %v438
        %v440 = vrot.slane %v435, %v439
        %v442 = vadd.f32 %v403, %v440
        %v443 = vadd.f32 %v404, %v440
        %v444 = vadd.f32 %v405, %v440
        %v445 = vadd.f32 %v406, %v440
        %v446 = vadd.f32 %v407, %v440
        %v447 = vadd.f32 %v408, %v440
        %v448 = vadd.f32 %v409, %v440
        %v449 = vadd.f32 %v410, %v440
        %v450 = vadd.f32 %v411, %v440
        %v451 = vadd.f32 %v412, %v440
        %v452 = vadd.f32 %v413, %v440
        %v453 = vadd.f32 %v414, %v440
        %v454 = vadd.f32 %v415, %v440
        %v455 = vadd.f32 %v416, %v440
        %v456 = vadd.f32 %v417, %v440
        %v457 = vadd.f32 %v418, %v440
        %v458 = vadd.f32 %v419, %v440
        %v459 = vadd.f32 %v420, %v440
        %v460 = vadd.f32 %v421, %v440
        %v461 = vadd.f32 %v422, %v440
        %v462 = vadd.f32 %v423, %v440
        %v463 = vadd.f32 %v424, %v440
        %v464 = vadd.f32 %v425, %v440
        %v465 = vadd.f32 %v426, %v440
        %v466 = vadd.f32 %v427, %v440
        %v467 = vadd.f32 %v428, %v440
        %v468 = vadd.f32 %v429, %v440
        %v469 = vadd.f32 %v430, %v440
        %v470 = vadd.f32 %v431, %v440
        %v471 = vadd.f32 %v432, %v440
        %v472 = vadd.f32 %v433, %v440
        %v473 = vadd.f32 %v434, %v440
        %v474 = vmax.f32 %v442, 0.0
        %v475 = vmax.f32 %v443, 0.0
        %v476 = vmax.f32 %v444, 0.0
        %v477 = vmax.f32 %v445, 0.0
        %v478 = vmax.f32 %v446, 0.0
        %v479 = vmax.f32 %v447, 0.0
        %v480 = vmax.f32 %v448, 0.0
        %v481 = vmax.f32 %v449, 0.0
        %v482 = vmax.f32 %v450, 0.0
        %v483 = vmax.f32 %v451, 0.0
        %v484 = vmax.f32 %v452, 0.0
        %v485 = vmax.f32 %v453, 0.0
        %v486 = vmax.f32 %v454, 0.0
        %v487 = vmax.f32 %v455, 0.0
        %v488 = vmax.f32 %v456, 0.0
        %v489 = vmax.f32 %v457, 0.0
        %v490 = vmax.f32 %v458, 0.0
        %v491 = vmax.f32 %v459, 0.0
        %v492 = vmax.f32 %v460, 0.0
        %v493 = vmax.f32 %v461, 0.0
        %v494 = vmax.f32 %v462, 0.0
        %v495 = vmax.f32 %v463, 0.0
        %v496 = vmax.f32 %v464, 0.0
        %v497 = vmax.f32 %v465, 0.0
        %v498 = vmax.f32 %v466, 0.0
        %v499 = vmax.f32 %v467, 0.0
        %v500 = vmax.f32 %v468, 0.0
        %v501 = vmax.f32 %v469, 0.0
        %v502 = vmax.f32 %v470, 0.0
        %v503 = vmax.f32 %v471, 0.0
        %v504 = vmax.f32 %v472, 0.0
        %v505 = vmax.f32 %v473, 0.0
        %506 = vst [vmem:[#allocation2] sm:$0xff] %v474
        %507 = vst [vmem:[#allocation2 + $0x8] sm:$0xff] %v475
        %508 = vst [vmem:[#allocation2 + $0x10] sm:$0xff] %v476
        %509 = vst [vmem:[#allocation2 + $0x18] sm:$0xff] %v477
        %510 = vst [vmem:[#allocation2 + $0x20] sm:$0xff] %v478
        %511 = vst [vmem:[#allocation2 + $0x28] sm:$0xff] %v479
        %512 = vst [vmem:[#allocation2 + $0x30] sm:$0xff] %v480
        %513 = vst [vmem:[#allocation2 + $0x38] sm:$0xff] %v481
        %514 = vst [vmem:[#allocation2 + $0x40] sm:$0xff] %v482
        %515 = vst [vmem:[#allocation2 + $0x48] sm:$0xff] %v483
        %516 = vst [vmem:[#allocation2 + $0x50] sm:$0xff] %v484
        %517 = vst [vmem:[#allocation2 + $0x58] sm:$0xff] %v485
        %518 = vst [vmem:[#allocation2 + $0x60] sm:$0xff] %v486
        %519 = vst [vmem:[#allocation2 + $0x68] sm:$0xff] %v487
        %520 = vst [vmem:[#allocation2 + $0x70] sm:$0xff] %v488
        %521 = vst [vmem:[#allocation2 + $0x78] sm:$0xff] %v489
        %522 = vst [vmem:[#allocation2 + $0x80] sm:$0xff] %v490
        %523 = vst [vmem:[#allocation2 + $0x88] sm:$0xff] %v491
        %524 = vst [vmem:[#allocation2 + $0x90] sm:$0xff] %v492
        %525 = vst [vmem:[#allocation2 + $0x98] sm:$0xff] %v493
        %526 = vst [vmem:[#allocation2 + $0xa0] sm:$0xff] %v494
        %527 = vst [vmem:[#allocation2 + $0xa8] sm:$0xff] %v495
        %528 = vst [vmem:[#allocation2 + $0xb0] sm:$0xff] %v496
        %529 = vst [vmem:[#allocation2 + $0xb8] sm:$0xff] %v497
        %530 = vst [vmem:[#allocation2 + $0xc0] sm:$0xff] %v498
        %531 = vst [vmem:[#allocation2 + $0xc8] sm:$0xff] %v499
        %532 = vst [vmem:[#allocation2 + $0xd0] sm:$0xff] %v500
        %533 = vst [vmem:[#allocation2 + $0xd8] sm:$0xff] %v501
        %534 = vst [vmem:[#allocation2 + $0xe0] sm:$0xff] %v502
        %535 = vst [vmem:[#allocation2 + $0xe8] sm:$0xff] %v503
        %536 = vst [vmem:[#allocation2 + $0xf0] sm:$0xff] %v504
        %537 = vst [vmem:[#allocation2 + $0xf8] sm:$0xff] %v505
        %v538 = vld [vmem:[#allocation2] sm:$0xff]
        %v539 = vld [vmem:[#allocation2 + $0x8] sm:$0xff]
        %v540 = vld [vmem:[#allocation2 + $0x10] sm:$0xff]
        %v541 = vld [vmem:[#allocation2 + $0x18] sm:$0xff]
        %v542 = vld [vmem:[#allocation2 + $0x20] sm:$0xff]
        %v543 = vld [vmem:[#allocation2 + $0x28] sm:$0xff]
        %v544 = vld [vmem:[#allocation2 + $0x30] sm:$0xff]
        %v545 = vld [vmem:[#allocation2 + $0x38] sm:$0xff]
        %v546 = vld [vmem:[#allocation2 + $0x40] sm:$0xff]
        %v547 = vld [vmem:[#allocation2 + $0x48] sm:$0xff]
        %v548 = vld [vmem:[#allocation2 + $0x50] sm:$0xff]
        %v549 = vld [vmem:[#allocation2 + $0x58] sm:$0xff]
        %v550 = vld [vmem:[#allocation2 + $0x60] sm:$0xff]
        %v551 = vld [vmem:[#allocation2 + $0x68] sm:$0xff]
        %v552 = vld [vmem:[#allocation2 + $0x70] sm:$0xff]
        %v553 = vld [vmem:[#allocation2 + $0x78] sm:$0xff]
        %v554 = vld [vmem:[#allocation2 + $0x80] sm:$0xff]
        %v555 = vld [vmem:[#allocation2 + $0x88] sm:$0xff]
        %v556 = vld [vmem:[#allocation2 + $0x90] sm:$0xff]
        %v557 = vld [vmem:[#allocation2 + $0x98] sm:$0xff]
        %v558 = vld [vmem:[#allocation2 + $0xa0] sm:$0xff]
        %v559 = vld [vmem:[#allocation2 + $0xa8] sm:$0xff]
        %v560 = vld [vmem:[#allocation2 + $0xb0] sm:$0xff]
        %v561 = vld [vmem:[#allocation2 + $0xb8] sm:$0xff]
        %v562 = vld [vmem:[#allocation2 + $0xc0] sm:$0xff]
        %v563 = vld [vmem:[#allocation2 + $0xc8] sm:$0xff]
        %v564 = vld [vmem:[#allocation2 + $0xd0] sm:$0xff]
        %v565 = vld [vmem:[#allocation2 + $0xd8] sm:$0xff]
        %v566 = vld [vmem:[#allocation2 + $0xe0] sm:$0xff]
        %v567 = vld [vmem:[#allocation2 + $0xe8] sm:$0xff]
        %v568 = vld [vmem:[#allocation2 + $0xf0] sm:$0xff]
        %v569 = vld [vmem:[#allocation2 + $0xf8] sm:$0xff]
        %570 = vmatprep.subr.mxu0 0.0
        %571 = vmatpush1.msra.mxu0 %v538
        %572 = vmatprep.subr.mxu0 0.0
        %573 = vmatpush1.msra.mxu0 %v539
        %574 = vmatprep.subr.mxu0 0.0
        %575 = vmatpush1.msra.mxu0 %v540
        %576 = vmatprep.subr.mxu0 0.0
        %577 = vmatpush1.msra.mxu0 %v541
        %578 = vmatprep.subr.mxu0 0.0
        %579 = vmatpush1.msra.mxu0 %v542
        %580 = vmatprep.subr.mxu0 0.0
        %581 = vmatpush1.msra.mxu0 %v543
        %582 = vmatprep.subr.mxu0 0.0
        %583 = vmatpush1.msra.mxu0 %v544
        %584 = vmatprep.subr.mxu0 0.0
        %585 = vmatpush1.msra.mxu0 %v545
        %586 = vmatprep.subr.mxu0 0.0
        %587 = vmatpush1.msra.mxu0 %v546
        %588 = vmatprep.subr.mxu0 0.0
        %589 = vmatpush1.msra.mxu0 %v547
        %590 = vmatprep.subr.mxu0 0.0
        %591 = vmatpush1.msra.mxu0 %v548
        %592 = vmatprep.subr.mxu0 0.0
        %593 = vmatpush1.msra.mxu0 %v549
        %594 = vmatprep.subr.mxu0 0.0
        %595 = vmatpush1.msra.mxu0 %v550
        %596 = vmatprep.subr.mxu0 0.0
        %597 = vmatpush1.msra.mxu0 %v551
        %598 = vmatprep.subr.mxu0 0.0
        %599 = vmatpush1.msra.mxu0 %v552
        %600 = vmatprep.subr.mxu0 0.0
        %601 = vmatpush1.msra.mxu0 %v553
        %602 = vmatprep.subr.mxu0 0.0
        %603 = vmatpush1.msra.mxu0 %v554
        %604 = vmatprep.subr.mxu0 0.0
        %605 = vmatpush1.msra.mxu0 %v555
        %606 = vmatprep.subr.mxu0 0.0
        %607 = vmatpush1.msra.mxu0 %v556
        %608 = vmatprep.subr.mxu0 0.0
        %609 = vmatpush1.msra.mxu0 %v557
        %610 = vmatprep.subr.mxu0 0.0
        %611 = vmatpush1.msra.mxu0 %v558
        %612 = vmatprep.subr.mxu0 0.0
        %613 = vmatpush1.msra.mxu0 %v559
        %614 = vmatprep.subr.mxu0 0.0
        %615 = vmatpush1.msra.mxu0 %v560
        %616 = vmatprep.subr.mxu0 0.0
        %617 = vmatpush1.msra.mxu0 %v561
        %618 = vmatprep.subr.mxu0 0.0
        %619 = vmatpush1.msra.mxu0 %v562
        %620 = vmatprep.subr.mxu0 0.0
        %621 = vmatpush1.msra.mxu0 %v563
        %622 = vmatprep.subr.mxu0 0.0
        %623 = vmatpush1.msra.mxu0 %v564
        %624 = vmatprep.subr.mxu0 0.0
        %625 = vmatpush1.msra.mxu0 %v565
        %626 = vmatprep.subr.mxu0 0.0
        %627 = vmatpush1.msra.mxu0 %v566
        %628 = vmatprep.subr.mxu0 0.0
        %629 = vmatpush1.msra.mxu0 %v567
        %630 = vmatprep.subr.mxu0 0.0
        %631 = vmatpush1.msra.mxu0 %v568
        %632 = vmatprep.subr.mxu0 0.0
        %633 = vmatpush1.msra.mxu0 %v569
        %634 = vmatprep.mubr.f32.mxu0 0.00390625
        %635 = vmatmul.mubr.f32.gmra.mrb[0].mxu0 0.00390625
        %v636 = vpop.f32.mrb[0].mxu0
        %v637 = vadd.f32 0.0, %v636
        %v638 = vpop.f32.mrb[0].mxu0
        %639 = vdwg.mxu0
        %v640 = vld [vmem:[%s3] sm:$0xff]
        %v641 = vld [vmem:[%s3 + $0x8] sm:$0xff]
        %v642 = vld [vmem:[%s3 + $0x10] sm:$0xff]
        %v643 = vld [vmem:[%s3 + $0x18] sm:$0xff]
        %v644 = vld [vmem:[%s3 + $0x20] sm:$0xff]
        %v645 = vld [vmem:[%s3 + $0x28] sm:$0xff]
        %v646 = vld [vmem:[%s3 + $0x30] sm:$0xff]
        %v647 = vld [vmem:[%s3 + $0x38] sm:$0xff]
        %v648 = vld [vmem:[%s3 + $0x40] sm:$0xff]
        %v649 = vld [vmem:[%s3 + $0x48] sm:$0xff]
        %v650 = vld [vmem:[%s3 + $0x50] sm:$0xff]
        %v651 = vld [vmem:[%s3 + $0x58] sm:$0xff]
        %v652 = vld [vmem:[%s3 + $0x60] sm:$0xff]
        %v653 = vld [vmem:[%s3 + $0x68] sm:$0xff]
        %v654 = vld [vmem:[%s3 + $0x70] sm:$0xff]
        %v655 = vld [vmem:[%s3 + $0x78] sm:$0xff]
        %v656 = vld [vmem:[%s4] sm:$0x1]
        %657 = vmatprep.subr.mxu0 0.0
        %658 = vmatpush1.msra.mxu0 %v640
        %659 = vmatprep.subr.mxu0 0.0
        %660 = vmatpush1.msra.mxu0 %v641
        %661 = vmatprep.subr.mxu0 0.0
        %662 = vmatpush1.msra.mxu0 %v642
        %663 = vmatprep.subr.mxu0 0.0
        %664 = vmatpush1.msra.mxu0 %v643
        %665 = vmatprep.subr.mxu0 0.0
        %666 = vmatpush1.msra.mxu0 %v644
        %667 = vmatprep.subr.mxu0 0.0
        %668 = vmatpush1.msra.mxu0 %v645
        %669 = vmatprep.subr.mxu0 0.0
        %670 = vmatpush1.msra.mxu0 %v646
        %671 = vmatprep.subr.mxu0 0.0
        %672 = vmatpush1.msra.mxu0 %v647
        %673 = vmatprep.subr.mxu0 0.0
        %674 = vmatpush1.msra.mxu0 %v648
        %675 = vmatprep.subr.mxu0 0.0
        %676 = vmatpush1.msra.mxu0 %v649
        %677 = vmatprep.subr.mxu0 0.0
        %678 = vmatpush1.msra.mxu0 %v650
        %679 = vmatprep.subr.mxu0 0.0
        %680 = vmatpush1.msra.mxu0 %v651
        %681 = vmatprep.subr.mxu0 0.0
        %682 = vmatpush1.msra.mxu0 %v652
        %683 = vmatprep.subr.mxu0 0.0
        %684 = vmatpush1.msra.mxu0 %v653
        %685 = vmatprep.subr.mxu0 0.0
        %686 = vmatpush1.msra.mxu0 %v654
        %687 = vmatprep.subr.mxu0 0.0
        %688 = vmatpush1.msra.mxu0 %v655
        %689 = vmatprep.subr.mxu0 0.0
        %690 = vmatpush1.msra.mxu0 0.0
        %691 = vmatprep.subr.mxu0 0.0
        %692 = vmatpush1.msra.mxu0 0.0
        %693 = vmatprep.subr.mxu0 0.0
        %694 = vmatpush1.msra.mxu0 0.0
        %695 = vmatprep.subr.mxu0 0.0
        %696 = vmatpush1.msra.mxu0 0.0
        %697 = vmatprep.subr.mxu0 0.0
        %698 = vmatpush1.msra.mxu0 0.0
        %699 = vmatprep.subr.mxu0 0.0
        %700 = vmatpush1.msra.mxu0 0.0
        %701 = vmatprep.subr.mxu0 0.0
        %702 = vmatpush1.msra.mxu0 0.0
        %703 = vmatprep.subr.mxu0 0.0
        %704 = vmatpush1.msra.mxu0 0.0
        %705 = vmatprep.subr.mxu0 0.0
        %706 = vmatpush1.msra.mxu0 0.0
        %707 = vmatprep.subr.mxu0 0.0
        %708 = vmatpush1.msra.mxu0 0.0
        %709 = vmatprep.subr.mxu0 0.0
        %710 = vmatpush1.msra.mxu0 0.0
        %711 = vmatprep.subr.mxu0 0.0
        %712 = vmatpush1.msra.mxu0 0.0
        %713 = vmatprep.subr.mxu0 0.0
        %714 = vmatpush1.msra.mxu0 0.0
        %715 = vmatprep.subr.mxu0 0.0
        %716 = vmatpush1.msra.mxu0 0.0
        %717 = vmatprep.subr.mxu0 0.0
        %718 = vmatpush1.msra.mxu0 0.0
        %719 = vmatprep.subr.mxu0 0.0
        %720 = vmatpush1.msra.mxu0 0.0
        %721 = vmatprep.mubr.f32.mxu0 0.0
        %722 = vmatmul.mubr.f32.gmra.mrb[0].mxu0 %v637
        %v723 = vpop.f32.mrb[0].mxu0
        %v724 = vadd.f32 %v656, %v723
        %v725 = vpop.f32.mrb[0].mxu0
        %726 = vdwg.mxu0
        %v727 = vmax.f32 %v724, 0.0
        %v728 = vld [vmem:[%s5] sm:$0xff]
        %v729 = vld [vmem:[%s5 + $0x8] sm:$0xff]
        %v730 = vld [vmem:[%s5 + $0x10] sm:$0xff]
        %v731 = vld [vmem:[%s5 + $0x18] sm:$0xff]
        %v732 = vld [vmem:[%s5 + $0x20] sm:$0xff]
        %v733 = vld [vmem:[%s5 + $0x28] sm:$0xff]
        %v734 = vld [vmem:[%s5 + $0x30] sm:$0xff]
        %v735 = vld [vmem:[%s5 + $0x38] sm:$0xff]
        %v736 = vld [vmem:[%s5 + $0x40] sm:$0xff]
        %v737 = vld [vmem:[%s5 + $0x48] sm:$0xff]
        %v738 = vld [vmem:[%s5 + $0x50] sm:$0xff]
        %v739 = vld [vmem:[%s5 + $0x58] sm:$0xff]
        %v740 = vld [vmem:[%s5 + $0x60] sm:$0xff]
        %v741 = vld [vmem:[%s5 + $0x68] sm:$0xff]
        %v742 = vld [vmem:[%s5 + $0x70] sm:$0xff]
        %v743 = vld [vmem:[%s5 + $0x78] sm:$0xff]
        %v744 = vld [vmem:[%s6] sm:$0x1]
        %745 = vmatprep.subr.mxu0 0.0
        %746 = vmatpush1.msra.mxu0 %v728
        %747 = vmatprep.subr.mxu0 0.0
        %748 = vmatpush1.msra.mxu0 %v729
        %749 = vmatprep.subr.mxu0 0.0
        %750 = vmatpush1.msra.mxu0 %v730
        %751 = vmatprep.subr.mxu0 0.0
        %752 = vmatpush1.msra.mxu0 %v731
        %753 = vmatprep.subr.mxu0 0.0
        %754 = vmatpush1.msra.mxu0 %v732
        %755 = vmatprep.subr.mxu0 0.0
        %756 = vmatpush1.msra.mxu0 %v733
        %757 = vmatprep.subr.mxu0 0.0
        %758 = vmatpush1.msra.mxu0 %v734
        %759 = vmatprep.subr.mxu0 0.0
        %760 = vmatpush1.msra.mxu0 %v735
        %761 = vmatprep.subr.mxu0 0.0
        %762 = vmatpush1.msra.mxu0 %v736
        %763 = vmatprep.subr.mxu0 0.0
        %764 = vmatpush1.msra.mxu0 %v737
        %765 = vmatprep.subr.mxu0 0.0
        %766 = vmatpush1.msra.mxu0 %v738
        %767 = vmatprep.subr.mxu0 0.0
        %768 = vmatpush1.msra.mxu0 %v739
        %769 = vmatprep.subr.mxu0 0.0
        %770 = vmatpush1.msra.mxu0 %v740
        %771 = vmatprep.subr.mxu0 0.0
        %772 = vmatpush1.msra.mxu0 %v741
        %773 = vmatprep.subr.mxu0 0.0
        %774 = vmatpush1.msra.mxu0 %v742
        %775 = vmatprep.subr.mxu0 0.0
        %776 = vmatpush1.msra.mxu0 %v743
        %777 = vmatprep.subr.mxu0 0.0
        %778 = vmatpush1.msra.mxu0 0.0
        %779 = vmatprep.subr.mxu0 0.0
        %780 = vmatpush1.msra.mxu0 0.0
        %781 = vmatprep.subr.mxu0 0.0
        %782 = vmatpush1.msra.mxu0 0.0
        %783 = vmatprep.subr.mxu0 0.0
        %784 = vmatpush1.msra.mxu0 0.0
        %785 = vmatprep.subr.mxu0 0.0
        %786 = vmatpush1.msra.mxu0 0.0
        %787 = vmatprep.subr.mxu0 0.0
        %788 = vmatpush1.msra.mxu0 0.0
        %789 = vmatprep.subr.mxu0 0.0
        %790 = vmatpush1.msra.mxu0 0.0
        %791 = vmatprep.subr.mxu0 0.0
        %792 = vmatpush1.msra.mxu0 0.0
        %793 = vmatprep.subr.mxu0 0.0
        %794 = vmatpush1.msra.mxu0 0.0
        %795 = vmatprep.subr.mxu0 0.0
        %796 = vmatpush1.msra.mxu0 0.0
        %797 = vmatprep.subr.mxu0 0.0
        %798 = vmatpush1.msra.mxu0 0.0
        %799 = vmatprep.subr.mxu0 0.0
        %800 = vmatpush1.msra.mxu0 0.0
        %801 = vmatprep.subr.mxu0 0.0
        %802 = vmatpush1.msra.mxu0 0.0
        %803 = vmatprep.subr.mxu0 0.0
        %804 = vmatpush1.msra.mxu0 0.0
        %805 = vmatprep.subr.mxu0 0.0
        %806 = vmatpush1.msra.mxu0 0.0
        %807 = vmatprep.subr.mxu0 0.0
        %808 = vmatpush1.msra.mxu0 0.0
        %809 = vmatprep.mubr.f32.mxu0 0.0
        %810 = vmatmul.mubr.f32.gmra.mrb[0].mxu0 %v727
        %v811 = vpop.f32.mrb[0].mxu0
        %v812 = vadd.f32 %v744, %v811
        %v813 = vpop.f32.mrb[0].mxu0
        %814 = vdwg.mxu0
        %v815 = vsub.f32 0.0, %v812
        %v816 = vmul.f32 %v815, 1.442695
        %v817 = vpow.pop %v816
        %v818 = vadd.f32 %v817, 1.0
        %v819 = vrcp.pop %v818
        %v820 = vlaneseq
        %v821 = vshrl.u32 %v820, 7
        %v822 = vsub.s32 0, %v821
        %v823 = vrot.slane %v819, %v822
        %v824 = vmul.f32 %v538, %v823
        %v825 = vmul.f32 %v539, %v823
        %v826 = vmul.f32 %v540, %v823
        %v827 = vmul.f32 %v541, %v823
        %v828 = vmul.f32 %v542, %v823
        %v829 = vmul.f32 %v543, %v823
        %v830 = vmul.f32 %v544, %v823
        %v831 = vmul.f32 %v545, %v823
        %v832 = vmul.f32 %v546, %v823
        %v833 = vmul.f32 %v547, %v823
        %v834 = vmul.f32 %v548, %v823
        %v835 = vmul.f32 %v549, %v823
        %v836 = vmul.f32 %v550, %v823
        %v837 = vmul.f32 %v551, %v823
        %v838 = vmul.f32 %v552, %v823
        %v839 = vmul.f32 %v553, %v823
        %v840 = vmul.f32 %v554, %v823
        %v841 = vmul.f32 %v555, %v823
        %v842 = vmul.f32 %v556, %v823
        %v843 = vmul.f32 %v557, %v823
        %v844 = vmul.f32 %v558, %v823
        %v845 = vmul.f32 %v559, %v823
        %v846 = vmul.f32 %v560, %v823
        %v847 = vmul.f32 %v561, %v823
        %v848 = vmul.f32 %v562, %v823
        %v849 = vmul.f32 %v563, %v823
        %v850 = vmul.f32 %v564, %v823
        %v851 = vmul.f32 %v565, %v823
        %v852 = vmul.f32 %v566, %v823
        %v853 = vmul.f32 %v567, %v823
        %v854 = vmul.f32 %v568, %v823
        %v855 = vmul.f32 %v569, %v823
        %v856 = vpack.c.bf16 %v825, %v824
        %v857 = vpack.c.bf16 %v827, %v826
        %v858 = vpack.c.bf16 %v829, %v828
        %v859 = vpack.c.bf16 %v831, %v830
        %v860 = vpack.c.bf16 %v833, %v832
        %v861 = vpack.c.bf16 %v835, %v834
        %v862 = vpack.c.bf16 %v837, %v836
        %v863 = vpack.c.bf16 %v839, %v838
        %v864 = vpack.c.bf16 %v841, %v840
        %v865 = vpack.c.bf16 %v843, %v842
        %v866 = vpack.c.bf16 %v845, %v844
        %v867 = vpack.c.bf16 %v847, %v846
        %v868 = vpack.c.bf16 %v849, %v848
        %v869 = vpack.c.bf16 %v851, %v850
        %v870 = vpack.c.bf16 %v853, %v852
        %v871 = vpack.c.bf16 %v855, %v854
        %v872 = vld [vmem:[%s7] sm:$0xf]
        %v873 = vld [vmem:[%s7 + $0x4] sm:$0xf]
        %v874 = vld [vmem:[%s7 + $0x8] sm:$0xf]
        %v875 = vld [vmem:[%s7 + $0xc] sm:$0xf]
        %v876 = vld [vmem:[%s7 + $0x10] sm:$0xf]
        %v877 = vld [vmem:[%s7 + $0x14] sm:$0xf]
        %v878 = vld [vmem:[%s7 + $0x18] sm:$0xf]
        %v879 = vld [vmem:[%s7 + $0x1c] sm:$0xf]
        %v880 = vld [vmem:[%s7 + $0x20] sm:$0xf]
        %v881 = vld [vmem:[%s7 + $0x24] sm:$0xf]
        %v882 = vld [vmem:[%s7 + $0x28] sm:$0xf]
        %v883 = vld [vmem:[%s7 + $0x2c] sm:$0xf]
        %v884 = vld [vmem:[%s7 + $0x30] sm:$0xf]
        %v885 = vld [vmem:[%s7 + $0x34] sm:$0xf]
        %v886 = vld [vmem:[%s7 + $0x38] sm:$0xf]
        %v887 = vld [vmem:[%s7 + $0x3c] sm:$0xf]
        %v888 = vld [vmem:[%s8] sm:$0x1]
        %v890 = vlaneseq
        %v891 = vshrl.u32 %v890, 7
        %v892 = vsub.s32 0, %v891
        %v893 = vrot.slane %v888, %v892
        %v911 = vunpack.c.l.b16 %v872
        %v912 = vunpack.c.l.b16 %v873
        %v913 = vunpack.c.l.b16 %v874
        %v914 = vunpack.c.l.b16 %v875
        %v915 = vunpack.c.l.b16 %v876
        %v916 = vunpack.c.l.b16 %v877
        %v917 = vunpack.c.l.b16 %v878
        %v918 = vunpack.c.l.b16 %v879
        %v919 = vunpack.c.l.b16 %v880
        %v920 = vunpack.c.l.b16 %v881
        %v921 = vunpack.c.l.b16 %v882
        %v922 = vunpack.c.l.b16 %v883
        %v923 = vunpack.c.l.b16 %v884
        %v924 = vunpack.c.l.b16 %v885
        %v925 = vunpack.c.l.b16 %v886
        %v926 = vunpack.c.l.b16 %v887
        %v927 = vpack.c.b16 %v912, %v911
        %v928 = vpack.c.b16 %v914, %v913
        %v929 = vpack.c.b16 %v916, %v915
        %v930 = vpack.c.b16 %v918, %v917
        %v931 = vpack.c.b16 %v920, %v919
        %v932 = vpack.c.b16 %v922, %v921
        %v933 = vpack.c.b16 %v924, %v923
        %v934 = vpack.c.b16 %v926, %v925
        %943 = vmatprep.subr.bf16.mxu0 0
        %944 = vmatpush1.bf16.msra.mxu0 %v927
        %945 = vmatprep.subr.bf16.mxu0 0
        %946 = vmatpush1.bf16.msra.mxu0 %v928
        %947 = vmatprep.subr.bf16.mxu0 0
        %948 = vmatpush1.bf16.msra.mxu0 %v929
        %949 = vmatprep.subr.bf16.mxu0 0
        %950 = vmatpush1.bf16.msra.mxu0 %v930
        %951 = vmatprep.subr.bf16.mxu0 0
        %952 = vmatpush1.bf16.msra.mxu0 %v931
        %953 = vmatprep.subr.bf16.mxu0 0
        %954 = vmatpush1.bf16.msra.mxu0 %v932
        %955 = vmatprep.subr.bf16.mxu0 0
        %956 = vmatpush1.bf16.msra.mxu0 %v933
        %957 = vmatprep.subr.bf16.mxu0 0
        %958 = vmatpush1.bf16.msra.mxu0 %v934
        %959 = vmatprep.subr.bf16.mxu0 0
        %960 = vmatpush1.bf16.msra.mxu0 0
        %961 = vmatprep.subr.bf16.mxu0 0
        %962 = vmatpush1.bf16.msra.mxu0 0
        %963 = vmatprep.subr.bf16.mxu0 0
        %964 = vmatpush1.bf16.msra.mxu0 0
        %965 = vmatprep.subr.bf16.mxu0 0
        %966 = vmatpush1.bf16.msra.mxu0 0
        %967 = vmatprep.subr.bf16.mxu0 0
        %968 = vmatpush1.bf16.msra.mxu0 0
        %969 = vmatprep.subr.bf16.mxu0 0
        %970 = vmatpush1.bf16.msra.mxu0 0
        %971 = vmatprep.subr.bf16.mxu0 0
        %972 = vmatpush1.bf16.msra.mxu0 0
        %973 = vmatprep.subr.bf16.mxu0 0
        %974 = vmatpush1.bf16.msra.mxu0 0
        %975 = vmatprep.mubr.bf16.mxu0 0
        %976 = vmatmul.mubr.bf16.gmra.mrb[0].mxu0 %v856
        %v977 = vpop.f32.mrb[0].mxu0
        %v978 = vadd.f32 %v893, %v977
        %v979 = vpop.f32.mrb[0].mxu0
        %v980 = vpop.f32.mrb[0].mxu0
        %v981 = vadd.f32 %v893, %v980
        %v982 = vpop.f32.mrb[0].mxu0
        %983 = vmatprep.mubr.bf16.mxu0 0
        %984 = vmatmul.mubr.bf16.gmra.mrb[0].mxu0 %v857
        %v985 = vpop.f32.mrb[0].mxu0
        %v986 = vadd.f32 %v893, %v985
        %v987 = vpop.f32.mrb[0].mxu0
        %v988 = vpop.f32.mrb[0].mxu0
        %v989 = vadd.f32 %v893, %v988
        %v990 = vpop.f32.mrb[0].mxu0
        %991 = vmatprep.mubr.bf16.mxu0 0
        %992 = vmatmul.mubr.bf16.gmra.mrb[0].mxu0 %v858
        %v993 = vpop.f32.mrb[0].mxu0
        %v994 = vadd.f32 %v893, %v993
        %v995 = vpop.f32.mrb[0].mxu0
        %v996 = vpop.f32.mrb[0].mxu0
        %v997 = vadd.f32 %v893, %v996
        %v998 = vpop.f32.mrb[0].mxu0
        %999 = vmatprep.mubr.bf16.mxu0 0
        %1000 = vmatmul.mubr.bf16.gmra.mrb[0].mxu0 %v859
        %v1001 = vpop.f32.mrb[0].mxu0
        %v1002 = vadd.f32 %v893, %v1001
        %v1003 = vpop.f32.mrb[0].mxu0
        %v1004 = vpop.f32.mrb[0].mxu0
        %v1005 = vadd.f32 %v893, %v1004
        %v1006 = vpop.f32.mrb[0].mxu0
        %1007 = vmatprep.mubr.bf16.mxu0 0
        %1008 = vmatmul.mubr.bf16.gmra.mrb[0].mxu0 %v860
        %v1009 = vpop.f32.mrb[0].mxu0
        %v1010 = vadd.f32 %v893, %v1009
        %v1011 = vpop.f32.mrb[0].mxu0
        %v1012 = vpop.f32.mrb[0].mxu0
        %v1013 = vadd.f32 %v893, %v1012
        %v1014 = vpop.f32.mrb[0].mxu0
        %1015 = vmatprep.mubr.bf16.mxu0 0
        %1016 = vmatmul.mubr.bf16.gmra.mrb[0].mxu0 %v861
        %v1017 = vpop.f32.mrb[0].mxu0
        %v1018 = vadd.f32 %v893, %v1017
        %v1019 = vpop.f32.mrb[0].mxu0
        %v1020 = vpop.f32.mrb[0].mxu0
        %v1021 = vadd.f32 %v893, %v1020
        %v1022 = vpop.f32.mrb[0].mxu0
        %1023 = vmatprep.mubr.bf16.mxu0 0
        %1024 = vmatmul.mubr.bf16.gmra.mrb[0].mxu0 %v862
        %v1025 = vpop.f32.mrb[0].mxu0
        %v1026 = vadd.f32 %v893, %v1025
        %v1027 = vpop.f32.mrb[0].mxu0
        %v1028 = vpop.f32.mrb[0].mxu0
        %v1029 = vadd.f32 %v893, %v1028
        %v1030 = vpop.f32.mrb[0].mxu0
        %1031 = vmatprep.mubr.bf16.mxu0 0
        %1032 = vmatmul.mubr.bf16.gmra.mrb[0].mxu0 %v863
        %v1033 = vpop.f32.mrb[0].mxu0
        %v1034 = vadd.f32 %v893, %v1033
        %v1035 = vpop.f32.mrb[0].mxu0
        %v1036 = vpop.f32.mrb[0].mxu0
        %v1037 = vadd.f32 %v893, %v1036
        %v1038 = vpop.f32.mrb[0].mxu0
        %1039 = vmatprep.mubr.bf16.mxu0 0
        %1040 = vmatmul.mubr.bf16.gmra.mrb[0].mxu0 %v864
        %v1041 = vpop.f32.mrb[0].mxu0
        %v1042 = vadd.f32 %v893, %v1041
        %v1043 = vpop.f32.mrb[0].mxu0
        %v1044 = vpop.f32.mrb[0].mxu0
        %v1045 = vadd.f32 %v893, %v1044
        %v1046 = vpop.f32.mrb[0].mxu0
        %1047 = vmatprep.mubr.bf16.mxu0 0
        %1048 = vmatmul.mubr.bf16.gmra.mrb[0].mxu0 %v865
        %v1049 = vpop.f32.mrb[0].mxu0
        %v1050 = vadd.f32 %v893, %v1049
        %v1051 = vpop.f32.mrb[0].mxu0
        %v1052 = vpop.f32.mrb[0].mxu0
        %v1053 = vadd.f32 %v893, %v1052
        %v1054 = vpop.f32.mrb[0].mxu0
        %1055 = vmatprep.mubr.bf16.mxu0 0
        %1056 = vmatmul.mubr.bf16.gmra.mrb[0].mxu0 %v866
        %v1057 = vpop.f32.mrb[0].mxu0
        %v1058 = vadd.f32 %v893, %v1057
        %v1059 = vpop.f32.mrb[0].mxu0
        %v1060 = vpop.f32.mrb[0].mxu0
        %v1061 = vadd.f32 %v893, %v1060
        %v1062 = vpop.f32.mrb[0].mxu0
        %1063 = vmatprep.mubr.bf16.mxu0 0
        %1064 = vmatmul.mubr.bf16.gmra.mrb[0].mxu0 %v867
        %v1065 = vpop.f32.mrb[0].mxu0
        %v1066 = vadd.f32 %v893, %v1065
        %v1067 = vpop.f32.mrb[0].mxu0
        %v1068 = vpop.f32.mrb[0].mxu0
        %v1069 = vadd.f32 %v893, %v1068
        %v1070 = vpop.f32.mrb[0].mxu0
        %1071 = vmatprep.mubr.bf16.mxu0 0
        %1072 = vmatmul.mubr.bf16.gmra.mrb[0].mxu0 %v868
        %v1073 = vpop.f32.mrb[0].mxu0
        %v1074 = vadd.f32 %v893, %v1073
        %v1075 = vpop.f32.mrb[0].mxu0
        %v1076 = vpop.f32.mrb[0].mxu0
        %v1077 = vadd.f32 %v893, %v1076
        %v1078 = vpop.f32.mrb[0].mxu0
        %1079 = vmatprep.mubr.bf16.mxu0 0
        %1080 = vmatmul.mubr.bf16.gmra.mrb[0].mxu0 %v869
        %v1081 = vpop.f32.mrb[0].mxu0
        %v1082 = vadd.f32 %v893, %v1081
        %v1083 = vpop.f32.mrb[0].mxu0
        %v1084 = vpop.f32.mrb[0].mxu0
        %v1085 = vadd.f32 %v893, %v1084
        %v1086 = vpop.f32.mrb[0].mxu0
        %1087 = vmatprep.mubr.bf16.mxu0 0
        %1088 = vmatmul.mubr.bf16.gmra.mrb[0].mxu0 %v870
        %v1089 = vpop.f32.mrb[0].mxu0
        %v1090 = vadd.f32 %v893, %v1089
        %v1091 = vpop.f32.mrb[0].mxu0
        %v1092 = vpop.f32.mrb[0].mxu0
        %v1093 = vadd.f32 %v893, %v1092
        %v1094 = vpop.f32.mrb[0].mxu0
        %1095 = vmatprep.mubr.bf16.mxu0 0
        %1096 = vmatmul.mubr.bf16.gmra.mrb[0].mxu0 %v871
        %v1097 = vpop.f32.mrb[0].mxu0
        %v1098 = vadd.f32 %v893, %v1097
        %v1099 = vpop.f32.mrb[0].mxu0
        %v1100 = vpop.f32.mrb[0].mxu0
        %v1101 = vadd.f32 %v893, %v1100
        %v1102 = vpop.f32.mrb[0].mxu0
        %1103 = vdwg.mxu0
        %1104 = vst [vmem:[%s325] sm:$0xff] %v978
        %1105 = vst [vmem:[%s325 + $0x8] sm:$0xff] %v981
        %1106 = vst [vmem:[%s325 + $0x10] sm:$0xff] %v986
        %1107 = vst [vmem:[%s325 + $0x18] sm:$0xff] %v989
        %1108 = vst [vmem:[%s325 + $0x20] sm:$0xff] %v994
        %1109 = vst [vmem:[%s325 + $0x28] sm:$0xff] %v997
        %1110 = vst [vmem:[%s325 + $0x30] sm:$0xff] %v1002
        %1111 = vst [vmem:[%s325 + $0x38] sm:$0xff] %v1005
        %1112 = vst [vmem:[%s325 + $0x40] sm:$0xff] %v1010
        %1113 = vst [vmem:[%s325 + $0x48] sm:$0xff] %v1013
        %1114 = vst [vmem:[%s325 + $0x50] sm:$0xff] %v1018
        %1115 = vst [vmem:[%s325 + $0x58] sm:$0xff] %v1021
        %1116 = vst [vmem:[%s325 + $0x60] sm:$0xff] %v1026
        %1117 = vst [vmem:[%s325 + $0x68] sm:$0xff] %v1029
        %1118 = vst [vmem:[%s325 + $0x70] sm:$0xff] %v1034
        %1119 = vst [vmem:[%s325 + $0x78] sm:$0xff] %v1037
        %1120 = vst [vmem:[%s325 + $0x80] sm:$0xff] %v1042
        %1121 = vst [vmem:[%s325 + $0x88] sm:$0xff] %v1045
        %1122 = vst [vmem:[%s325 + $0x90] sm:$0xff] %v1050
        %1123 = vst [vmem:[%s325 + $0x98] sm:$0xff] %v1053
        %1124 = vst [vmem:[%s325 + $0xa0] sm:$0xff] %v1058
        %1125 = vst [vmem:[%s325 + $0xa8] sm:$0xff] %v1061
        %1126 = vst [vmem:[%s325 + $0xb0] sm:$0xff] %v1066
        %1127 = vst [vmem:[%s325 + $0xb8] sm:$0xff] %v1069
        %1128 = vst [vmem:[%s325 + $0xc0] sm:$0xff] %v1074
        %1129 = vst [vmem:[%s325 + $0xc8] sm:$0xff] %v1077
        %1130 = vst [vmem:[%s325 + $0xd0] sm:$0xff] %v1082
        %1131 = vst [vmem:[%s325 + $0xd8] sm:$0xff] %v1085
        %1132 = vst [vmem:[%s325 + $0xe0] sm:$0xff] %v1090
        %1133 = vst [vmem:[%s325 + $0xe8] sm:$0xff] %v1093
        %1134 = vst [vmem:[%s325 + $0xf0] sm:$0xff] %v1098
        %1135 = vst [vmem:[%s325 + $0xf8] sm:$0xff] %v1101
        %s1136 = sand.u32 %s225, 1
        %s1137 = scalar_lea.sflag [#allocation4], %s1136
        %s1138 = sand.u32 %s225, 1
        %s1139 = smul.addr %s1138, 256
        %s1140 = scalar_lea.vmem [#allocation3], %s1139
        // Predicated region
        $region57: #{depthwise_separable_conv.3} parent=55 // pred_check
          %p1141 = pneg %p235
        $region58: #{depthwise_separable_conv.3} parent=55 // pred_check_branch
          %1143 = sbr.rel (%p1141) target = $region60
        $region59: #{depthwise_separable_conv.3} parent=55 // pred_region
          %s1145 = ssub.s32 4096, 4096
          %1146 = vsyncadd %s1137, %s1145
          %s1147 = smul.addr %s23, 32
          %s1148 = smul.addr %s1147, 128
          %s1149 = scalar_lea.hbm %s9, %s1148
          %s1150 = sshll.u32 %s1140, 4
          %s1151 = int_to_ptr.vmem [resolvable:$true] %s1150
          %1156 = dma.vmem_to_hbm [thread:$0]  %s1151, 4096, %s1149, %s1137, 128, 128, 8
        $region60: #{depthwise_separable_conv.3} parent=55 // pred_fallthru
          _
      $region56: #{depthwise_separable_conv.3} parent=5 // pred_fallthru
        _
      %p1157 = scmp.le.s32.totalorder 2, %s18
      // Predicated region
      $region61: #{depthwise_separable_conv.3} parent=5 // pred_check
        %p1158 = pneg %p1157
      $region62: #{depthwise_separable_conv.3} parent=5 // pred_check_branch
        %1160 = sbr.rel (%p1158) target = $region64
      $region63: #{depthwise_separable_conv.3} parent=5 // pred_region
        %s1161 = ssub.s32 %s18, 2
        // Predicated region
        $region65: #{depthwise_separable_conv.3} parent=63 // pred_check
          %p1162 = pneg %p241
        $region66: #{depthwise_separable_conv.3} parent=63 // pred_check_branch
          %1164 = sbr.rel (%p1162) target = $region68
        $region67: #{depthwise_separable_conv.3} parent=63 // pred_region
          %s1165 = sand.u32 %s226, 1
          %s1166 = scalar_lea.sflag [#allocation4], %s1165
          %s1167 = sand.u32 %s226, 1
          %s1168 = smul.addr %s1167, 256
          %s1169 = scalar_lea.vmem [#allocation3], %s1168
          %1170 = dma.done %s1166, 4096
        $region68: #{depthwise_separable_conv.3} parent=63 // pred_fallthru
          _
      $region64: #{depthwise_separable_conv.3} parent=5 // pred_fallthru
        _
    $region6: #{depthwise_separable_conv.3} parent=1 // loop_footer
      %s22 = sadd.s32 1, %s18
    $region7: #{depthwise_separable_conv.3} parent=1 // loop_footer_branch
      %17 = sbr.rel target = $region3
    $region8: #{depthwise_separable_conv.3} parent=1 // loop_exit
      _
    %1171 = vsyncpa [#allocation4], 1
    %s1172 = scalar_lea.sflag [#allocation4], 1
    %1173 = vsyncpa %s1172, 1

// kernel: depthwise_separable_conv.2
$region0: #{depthwise_separable_conv.2}
  #allocation0 [shape = 'u32[]', space=smem, size = 0x4, offset = 0x4, fixed_abs, tag = 'smem constant byte address 0x4 - core index']
  #allocation1 [shape = 'u32[144,128]{1,0:T(1,128)}', space=vmem, size = 0x12000, scoped, tag = 'internal scratch']
  #allocation2 [shape = 'f32[256,128]{1,0:T(8,128)}', space=vmem, size = 0x20000, scoped, tag = 'scratch operand']
  %s0 = inlined_call_operand.vmem [shape: f32[2,18,18,128], index: 0, kind: input, shape index: {}]
  %s1 = inlined_call_operand.vmem [shape: f32[9,128], index: 1, kind: input, shape index: {}]
  %s2 = inlined_call_operand.vmem [shape: bf16[2,256,128], index: 2, kind: output, shape index: {0}]
  %s3 = inlined_call_operand.vmem [shape: f32[2,2,128], index: 3, kind: output, shape index: {1}]
  %4 = xla_tuple %s2, %s3
  %s5 = sld [smem:[#allocation0]]
  $region49: #{depthwise_separable_conv.2} parent=0
    _
  %s7 = ssub.s32 1, %s5
  %s8 = scalar_select 0, %s7, %s5
  loop: start=0, step=1, limit=4
  $region2: #{depthwise_separable_conv.2} parent=0 // loop_pre_header
    _
  $region3: #{depthwise_separable_conv.2} parent=0 // loop_header
    %s10 = sphi 0, %s14
    %p11 = scmp.ge.s32.totalorder %s10, 4
    %s20 = sphi 0, %s22
    %s23 = sphi 0, %s20
    %s24 = sphi 0, %s23
    %s40 = sphi 0, %s24
    %s44 = sphi 0, %s44
    %s46 = sphi 0, %s44
    %s47 = sphi 0, %s46
    %s61 = sphi 0, %s47
    %s67 = sphi 0, %s69
    %s70 = sphi 0, %s67
    %s71 = sphi 0, %s70
    %s87 = sphi 0, %s71
    %s93 = sphi 0, %s95
    %s96 = sphi 0, %s93
    %s97 = sphi 0, %s96
    %s113 = sphi 0, %s97
  $region4: #{depthwise_separable_conv.2} parent=0 // loop_header_branch
    %13 = sbr.rel (%p11) target = $region8
  $region5: #{depthwise_separable_conv.2} parent=0 // loop_body
    %s15 = ssub.s32 %s10, 1
    %s16 = ssub.s32 %s10, 2
    %s17 = sadd.s32 %s10, 1
    %s18 = ssub.s32 %s10, %s17
    %p19 = scmp.eq.s32.totalorder %s18, 0
    %s21 = sadd.s32 %s20, 1
    %s22 = scalar_select %p19, %s20, %s21
    %p25 = pneg %p19
    %p26 = scmp.eq.s32.totalorder %s10, 1
    %p27 = por %p25, %p26
    %p28 = scmp.ne.s32.totalorder %s20, %s23
    %p29 = scmp.eq.s32.totalorder %s10, 0
    %p30 = por %p28, %p29
    %p31 = scmp.ne.s32.totalorder %s20, %s23
    %p32 = scmp.eq.s32.totalorder %s15, 1
    %p33 = por %p31, %p32
    %p34 = scmp.ne.s32.totalorder %s23, %s24
    %p35 = scmp.eq.s32.totalorder %s15, 0
    %p36 = por %p34, %p35
    %p37 = scmp.ne.s32.totalorder %s23, %s24
    %p38 = scmp.eq.s32.totalorder %s16, 1
    %p39 = por %p37, %p38
    %p41 = scmp.ne.s32.totalorder %s24, %s40
    %p42 = scmp.eq.s32.totalorder %s16, 0
    %p43 = por %p41, %p42
    %s45 = sadd.s32 %s44, 1
    %p48 = scmp.eq.s32.totalorder %s10, 1
    %p49 = scmp.ne.s32.totalorder %s44, %s46
    %p50 = scmp.eq.s32.totalorder %s10, 0
    %p51 = por %p49, %p50
    %p52 = scmp.ne.s32.totalorder %s44, %s46
    %p53 = scmp.eq.s32.totalorder %s15, 1
    %p54 = por %p52, %p53
    %p55 = scmp.ne.s32.totalorder %s46, %s47
    %p56 = scmp.eq.s32.totalorder %s15, 0
    %p57 = por %p55, %p56
    %p58 = scmp.ne.s32.totalorder %s46, %s47
    %p59 = scmp.eq.s32.totalorder %s16, 1
    %p60 = por %p58, %p59
    %p62 = scmp.ne.s32.totalorder %s47, %s61
    %p63 = scmp.eq.s32.totalorder %s16, 0
    %p64 = por %p62, %p63
    %s65 = ssub.s32 %s10, %s17
    %p66 = scmp.eq.s32.totalorder %s65, 0
    %s68 = sadd.s32 %s67, 1
    %s69 = scalar_select %p66, %s67, %s68
    %p72 = pneg %p66
    %p73 = scmp.eq.s32.totalorder %s10, 1
    %p74 = por %p72, %p73
    %p75 = scmp.ne.s32.totalorder %s67, %s70
    %p76 = scmp.eq.s32.totalorder %s10, 0
    %p77 = por %p75, %p76
    %p78 = scmp.ne.s32.totalorder %s67, %s70
    %p79 = scmp.eq.s32.totalorder %s15, 1
    %p80 = por %p78, %p79
    %p81 = scmp.ne.s32.totalorder %s70, %s71
    %p82 = scmp.eq.s32.totalorder %s15, 0
    %p83 = por %p81, %p82
    %p84 = scmp.ne.s32.totalorder %s70, %s71
    %p85 = scmp.eq.s32.totalorder %s16, 1
    %p86 = por %p84, %p85
    %p88 = scmp.ne.s32.totalorder %s71, %s87
    %p89 = scmp.eq.s32.totalorder %s16, 0
    %p90 = por %p88, %p89
    %s91 = ssub.s32 %s10, %s17
    %p92 = scmp.eq.s32.totalorder %s91, 0
    %s94 = sadd.s32 %s93, 1
    %s95 = scalar_select %p92, %s93, %s94
    %p98 = pneg %p92
    %p99 = scmp.eq.s32.totalorder %s10, 1
    %p100 = por %p98, %p99
    %p101 = scmp.ne.s32.totalorder %s93, %s96
    %p102 = scmp.eq.s32.totalorder %s10, 0
    %p103 = por %p101, %p102
    %p104 = scmp.ne.s32.totalorder %s93, %s96
    %p105 = scmp.eq.s32.totalorder %s15, 1
    %p106 = por %p104, %p105
    %p107 = scmp.ne.s32.totalorder %s96, %s97
    %p108 = scmp.eq.s32.totalorder %s15, 0
    %p109 = por %p107, %p108
    %p110 = scmp.ne.s32.totalorder %s96, %s97
    %p111 = scmp.eq.s32.totalorder %s16, 1
    %p112 = por %p110, %p111
    %p114 = scmp.ne.s32.totalorder %s97, %s113
    %p115 = scmp.eq.s32.totalorder %s16, 0
    %p116 = por %p114, %p115
    %p117 = scmp.le.s32.totalorder 1, %s10
    %p118 = scmp.lt.s32.totalorder %s10, 3
    %p119 = pnand %p117, %p118
    %p120 = pneg %p119
    // Predicated region
    $region9: #{depthwise_separable_conv.2} parent=5 // pred_check
      _
    $region10: #{depthwise_separable_conv.2} parent=5 // pred_check_branch
      %122 = sbr.rel (%p119) target = $region12
    $region11: #{depthwise_separable_conv.2} parent=5 // pred_region
      %s123 = ssub.s32 %s10, 1
      // Predicated region
      $region13: #{depthwise_separable_conv.2} parent=11 // pred_check
        %p124 = pneg %p57
      $region14: #{depthwise_separable_conv.2} parent=11 // pred_check_branch
        %126 = sbr.rel (%p124) target = $region16
      $region15: #{depthwise_separable_conv.2} parent=11 // pred_region
        _
      $region16: #{depthwise_separable_conv.2} parent=11 // pred_fallthru
        _
    $region12: #{depthwise_separable_conv.2} parent=5 // pred_fallthru
      _
    %p127 = scmp.lt.s32.totalorder %s10, 2
    // Predicated region
    $region17: #{depthwise_separable_conv.2} parent=5 // pred_check
      %p128 = pneg %p127
    $region18: #{depthwise_separable_conv.2} parent=5 // pred_check_branch
      %130 = sbr.rel (%p128) target = $region20
    $region19: #{depthwise_separable_conv.2} parent=5 // pred_region
      // Predicated region
      $region21: #{depthwise_separable_conv.2} parent=19 // pred_check
        %p131 = pneg %p30
      $region22: #{depthwise_separable_conv.2} parent=19 // pred_check_branch
        %133 = sbr.rel (%p131) target = $region24
      $region23: #{depthwise_separable_conv.2} parent=19 // pred_region
        %p134 = scmp.lt.s32.totalorder %s10, 1
        %s135 = scalar_select %p134, %s10, 1
        %s136 = smul.addr %s135, 54
        %s137 = smul.addr %s136, 8
        %s138 = scalar_lea.vmem %s0, %s137
      $region24: #{depthwise_separable_conv.2} parent=19 // pred_fallthru
        _
    $region20: #{depthwise_separable_conv.2} parent=5 // pred_fallthru
      _
    %p139 = scmp.le.s32.totalorder 1, %s10
    %p140 = scmp.lt.s32.totalorder %s10, 3
    %p141 = pnand %p139, %p140
    %p142 = pneg %p141
    // Predicated region
    $region25: #{depthwise_separable_conv.2} parent=5 // pred_check
      _
    $region26: #{depthwise_separable_conv.2} parent=5 // pred_check_branch
      %144 = sbr.rel (%p141) target = $region28
    $region27: #{depthwise_separable_conv.2} parent=5 // pred_region
      %s145 = ssub.s32 %s10, 1
      %p146 = scmp.lt.s32.totalorder %s15, 1
      %s147 = scalar_select %p146, %s15, 1
      %s148 = smul.addr %s147, 54
      %s149 = smul.addr %s148, 8
      %s150 = scalar_lea.vmem %s0, %s149
      %p151 = pneg %p36
      %p152 = pneg %p33
      %p153 = pneg %p57
      %p154 = pneg %p54
      %p155 = pneg %p83
      %p156 = pneg %p80
      %p157 = scmp.lt.s32.totalorder %s15, 1
      %s158 = scalar_select %p157, %s15, 1
      %s159 = smul.addr %s158, 32
      %s160 = smul.addr %s159, 4
      %s161 = scalar_lea.vmem %s2, %s160
      %p162 = pneg %p109
      %p163 = pneg %p106
      %p164 = scmp.lt.s32.totalorder %s15, 1
      %s165 = scalar_select %p164, %s15, 1
      %s166 = smul.addr %s165, 2
      %s167 = scalar_lea.vmem %s3, %s166
      %p168 = scmp.lt.s32.totalorder %s15, 1
      %s169 = scalar_select %p168, %s15, 1
      %s170 = smul.addr %s169, 54
      %s171 = smul.addr %s170, 8
      %s172 = scalar_lea.vmem %s0, %s171
      %p173 = scmp.lt.s32.totalorder %s15, 1
      %s174 = scalar_select %p173, %s15, 1
      %s175 = smul.addr %s174, 32
      %s176 = smul.addr %s175, 4
      %s177 = scalar_lea.vmem %s2, %s176
      %p178 = scmp.lt.s32.totalorder %s15, 1
      %s179 = scalar_select %p178, %s15, 1
      %s180 = smul.addr %s179, 2
      %s181 = scalar_lea.vmem %s3, %s180
      %v182 = vld [vmem:[%s1] sm:$0xff]
      %v183 = vld [vmem:[%s1 + $0x8] sm:$0x1]
      %v184 = vld [vmem:[%s172] sm:$0xff]
      %v185 = vld [vmem:[%s172 + $0x8] sm:$0xff]
      %v186 = vld [vmem:[%s172 + $0x18] sm:$0xff]
      %v187 = vld [vmem:[%s172 + $0x20] sm:$0xff]
      %v188 = vld [vmem:[%s172 + $0x30] sm:$0xff]
      %v189 = vld [vmem:[%s172 + $0x38] sm:$0xff]
      %v190 = vld [vmem:[%s172 + $0x48] sm:$0xff]
      %v191 = vld [vmem:[%s172 + $0x50] sm:$0xff]
      %v192 = vld [vmem:[%s172 + $0x60] sm:$0xff]
      %v193 = vld [vmem:[%s172 + $0x68] sm:$0xff]
      %v194 = vld [vmem:[%s172 + $0x78] sm:$0xff]
      %v195 = vld [vmem:[%s172 + $0x80] sm:$0xff]
      %v196 = vld [vmem:[%s172 + $0x90] sm:$0xff]
      %v197 = vld [vmem:[%s172 + $0x98] sm:$0xff]
      %v198 = vld [vmem:[%s172 + $0xa8] sm:$0xff]
      %v199 = vld [vmem:[%s172 + $0xb0] sm:$0xff]
      %v200 = vld [vmem:[%s172 + $0xc0] sm:$0xff]
      %v201 = vld [vmem:[%s172 + $0xc8] sm:$0xff]
      %v202 = vld [vmem:[%s172 + $0xd8] sm:$0xff]
      %v203 = vld [vmem:[%s172 + $0xe0] sm:$0xff]
      %v204 = vld [vmem:[%s172 + $0xf0] sm:$0xff]
      %v205 = vld [vmem:[%s172 + $0xf8] sm:$0xff]
      %v206 = vld [vmem:[%s172 + $0x108] sm:$0xff]
      %v207 = vld [vmem:[%s172 + $0x110] sm:$0xff]
      %v208 = vld [vmem:[%s172 + $0x120] sm:$0xff]
      %v209 = vld [vmem:[%s172 + $0x128] sm:$0xff]
      %v210 = vld [vmem:[%s172 + $0x138] sm:$0xff]
      %v211 = vld [vmem:[%s172 + $0x140] sm:$0xff]
      %v212 = vld [vmem:[%s172 + $0x150] sm:$0xff]
      %v213 = vld [vmem:[%s172 + $0x158] sm:$0xff]
      %v214 = vld [vmem:[%s172 + $0x168] sm:$0xff]
      %v215 = vld [vmem:[%s172 + $0x170] sm:$0xff]
      %v216 = vlaneseq
      %v217 = vshrl.u32 %v216, 7
      %v218 = vsub.s32 0, %v217
      %v219 = vrot.slane %v182, %v218
      %v220 = vmul.f32 %v184, %v219
      %v221 = vmul.f32 %v185, %v219
      %v222 = vmul.f32 %v186, %v219
      %v223 = vmul.f32 %v187, %v219
      %v224 = vmul.f32 %v188, %v219
      %v225 = vmul.f32 %v189, %v219
      %v226 = vmul.f32 %v190, %v219
      %v227 = vmul.f32 %v191, %v219
      %v228 = vmul.f32 %v192, %v219
      %v229 = vmul.f32 %v193, %v219
      %v230 = vmul.f32 %v194, %v219
      %v231 = vmul.f32 %v195, %v219
      %v232 = vmul.f32 %v196, %v219
      %v233 = vmul.f32 %v197, %v219
      %v234 = vmul.f32 %v198, %v219
      %v235 = vmul.f32 %v199, %v219
      %v236 = vmul.f32 %v200, %v219
      %v237 = vmul.f32 %v201, %v219
      %v238 = vmul.f32 %v202, %v219
      %v239 = vmul.f32 %v203, %v219
      %v240 = vmul.f32 %v204, %v219
      %v241 = vmul.f32 %v205, %v219
      %v242 = vmul.f32 %v206, %v219
      %v243 = vmul.f32 %v207, %v219
      %v244 = vmul.f32 %v208, %v219
      %v245 = vmul.f32 %v209, %v219
      %v246 = vmul.f32 %v210, %v219
      %v247 = vmul.f32 %v211, %v219
      %v248 = vmul.f32 %v212, %v219
      %v249 = vmul.f32 %v213, %v219
      %v250 = vmul.f32 %v214, %v219
      %v251 = vmul.f32 %v215, %v219
      %252 = vst [vmem:[#allocation2] sm:$0xff] %v220
      %253 = vst [vmem:[#allocation2 + $0x8] sm:$0xff] %v221
      %254 = vst [vmem:[#allocation2 + $0x10] sm:$0xff] %v222
      %255 = vst [vmem:[#allocation2 + $0x18] sm:$0xff] %v223
      %256 = vst [vmem:[#allocation2 + $0x20] sm:$0xff] %v224
      %257 = vst [vmem:[#allocation2 + $0x28] sm:$0xff] %v225
      %258 = vst [vmem:[#allocation2 + $0x30] sm:$0xff] %v226
      %259 = vst [vmem:[#allocation2 + $0x38] sm:$0xff] %v227
      %260 = vst [vmem:[#allocation2 + $0x40] sm:$0xff] %v228
      %261 = vst [vmem:[#allocation2 + $0x48] sm:$0xff] %v229
      %262 = vst [vmem:[#allocation2 + $0x50] sm:$0xff] %v230
      %263 = vst [vmem:[#allocation2 + $0x58] sm:$0xff] %v231
      %264 = vst [vmem:[#allocation2 + $0x60] sm:$0xff] %v232
      %265 = vst [vmem:[#allocation2 + $0x68] sm:$0xff] %v233
      %266 = vst [vmem:[#allocation2 + $0x70] sm:$0xff] %v234
      %267 = vst [vmem:[#allocation2 + $0x78] sm:$0xff] %v235
      %268 = vst [vmem:[#allocation2 + $0x80] sm:$0xff] %v236
      %269 = vst [vmem:[#allocation2 + $0x88] sm:$0xff] %v237
      %270 = vst [vmem:[#allocation2 + $0x90] sm:$0xff] %v238
      %271 = vst [vmem:[#allocation2 + $0x98] sm:$0xff] %v239
      %272 = vst [vmem:[#allocation2 + $0xa0] sm:$0xff] %v240
      %273 = vst [vmem:[#allocation2 + $0xa8] sm:$0xff] %v241
      %274 = vst [vmem:[#allocation2 + $0xb0] sm:$0xff] %v242
      %275 = vst [vmem:[#allocation2 + $0xb8] sm:$0xff] %v243
      %276 = vst [vmem:[#allocation2 + $0xc0] sm:$0xff] %v244
      %277 = vst [vmem:[#allocation2 + $0xc8] sm:$0xff] %v245
      %278 = vst [vmem:[#allocation2 + $0xd0] sm:$0xff] %v246
      %279 = vst [vmem:[#allocation2 + $0xd8] sm:$0xff] %v247
      %280 = vst [vmem:[#allocation2 + $0xe0] sm:$0xff] %v248
      %281 = vst [vmem:[#allocation2 + $0xe8] sm:$0xff] %v249
      %282 = vst [vmem:[#allocation2 + $0xf0] sm:$0xff] %v250
      %283 = vst [vmem:[#allocation2 + $0xf8] sm:$0xff] %v251
      %v284 = vld [vmem:[%s172 + $0x1] sm:$0xff]
      %v285 = vld [vmem:[%s172 + $0x9] sm:$0xff]
      %v286 = vld [vmem:[%s172 + $0x19] sm:$0xff]
      %v287 = vld [vmem:[%s172 + $0x21] sm:$0xff]
      %v288 = vld [vmem:[%s172 + $0x31] sm:$0xff]
      %v289 = vld [vmem:[%s172 + $0x39] sm:$0xff]
      %v290 = vld [vmem:[%s172 + $0x49] sm:$0xff]
      %v291 = vld [vmem:[%s172 + $0x51] sm:$0xff]
      %v292 = vld [vmem:[%s172 + $0x61] sm:$0xff]
      %v293 = vld [vmem:[%s172 + $0x69] sm:$0xff]
      %v294 = vld [vmem:[%s172 + $0x79] sm:$0xff]
      %v295 = vld [vmem:[%s172 + $0x81] sm:$0xff]
      %v296 = vld [vmem:[%s172 + $0x91] sm:$0xff]
      %v297 = vld [vmem:[%s172 + $0x99] sm:$0xff]
      %v298 = vld [vmem:[%s172 + $0xa9] sm:$0xff]
      %v299 = vld [vmem:[%s172 + $0xb1] sm:$0xff]
      %v300 = vld [vmem:[%s172 + $0xc1] sm:$0xff]
      %v301 = vld [vmem:[%s172 + $0xc9] sm:$0xff]
      %v302 = vld [vmem:[%s172 + $0xd9] sm:$0xff]
      %v303 = vld [vmem:[%s172 + $0xe1] sm:$0xff]
      %v304 = vld [vmem:[%s172 + $0xf1] sm:$0xff]
      %v305 = vld [vmem:[%s172 + $0xf9] sm:$0xff]
      %v306 = vld [vmem:[%s172 + $0x109] sm:$0xff]
      %v307 = vld [vmem:[%s172 + $0x111] sm:$0xff]
      %v308 = vld [vmem:[%s172 + $0x121] sm:$0xff]
      %v309 = vld [vmem:[%s172 + $0x129] sm:$0xff]
      %v310 = vld [vmem:[%s172 + $0x139] sm:$0xff]
      %v311 = vld [vmem:[%s172 + $0x141] sm:$0xff]
      %v312 = vld [vmem:[%s172 + $0x151] sm:$0xff]
      %v313 = vld [vmem:[%s172 + $0x159] sm:$0xff]
      %v314 = vld [vmem:[%s172 + $0x169] sm:$0xff]
      %v315 = vld [vmem:[%s172 + $0x171] sm:$0xff]
      %v316 = vlaneseq
      %v317 = vshrl.u32 %v316, 7
      %v318 = vsub.s32 1, %v317
      %v319 = vrot.slane %v182, %v318
      %v320 = vmul.f32 %v284, %v319
      %v321 = vmul.f32 %v285, %v319
      %v322 = vmul.f32 %v286, %v319
      %v323 = vmul.f32 %v287, %v319
      %v324 = vmul.f32 %v288, %v319
      %v325 = vmul.f32 %v289, %v319
      %v326 = vmul.f32 %v290, %v319
      %v327 = vmul.f32 %v291, %v319
      %v328 = vmul.f32 %v292, %v319
      %v329 = vmul.f32 %v293, %v319
      %v330 = vmul.f32 %v294, %v319
      %v331 = vmul.f32 %v295, %v319
      %v332 = vmul.f32 %v296, %v319
      %v333 = vmul.f32 %v297, %v319
      %v334 = vmul.f32 %v298, %v319
      %v335 = vmul.f32 %v299, %v319
      %v336 = vmul.f32 %v300, %v319
      %v337 = vmul.f32 %v301, %v319
      %v338 = vmul.f32 %v302, %v319
      %v339 = vmul.f32 %v303, %v319
      %v340 = vmul.f32 %v304, %v319
      %v341 = vmul.f32 %v305, %v319
      %v342 = vmul.f32 %v306, %v319
      %v343 = vmul.f32 %v307, %v319
      %v344 = vmul.f32 %v308, %v319
      %v345 = vmul.f32 %v309, %v319
      %v346 = vmul.f32 %v310, %v319
      %v347 = vmul.f32 %v311, %v319
      %v348 = vmul.f32 %v312, %v319
      %v349 = vmul.f32 %v313, %v319
      %v350 = vmul.f32 %v314, %v319
      %v351 = vmul.f32 %v315, %v319
      %v352 = vld [vmem:[#allocation2] sm:$0xff]
      %v353 = vld [vmem:[#allocation2 + $0x8] sm:$0xff]
      %v354 = vld [vmem:[#allocation2 + $0x10] sm:$0xff]
      %v355 = vld [vmem:[#allocation2 + $0x18] sm:$0xff]
      %v356 = vld [vmem:[#allocation2 + $0x20] sm:$0xff]
      %v357 = vld [vmem:[#allocation2 + $0x28] sm:$0xff]
      %v358 = vld [vmem:[#allocation2 + $0x30] sm:$0xff]
      %v359 = vld [vmem:[#allocation2 + $0x38] sm:$0xff]
      %v360 = vld [vmem:[#allocation2 + $0x40] sm:$0xff]
      %v361 = vld [vmem:[#allocation2 + $0x48] sm:$0xff]
      %v362 = vld [vmem:[#allocation2 + $0x50] sm:$0xff]
      %v363 = vld [vmem:[#allocation2 + $0x58] sm:$0xff]
      %v364 = vld [vmem:[#allocation2 + $0x60] sm:$0xff]
      %v365 = vld [vmem:[#allocation2 + $0x68] sm:$0xff]
      %v366 = vld [vmem:[#allocation2 + $0x70] sm:$0xff]
      %v367 = vld [vmem:[#allocation2 + $0x78] sm:$0xff]
      %v368 = vld [vmem:[#allocation2 + $0x80] sm:$0xff]
      %v369 = vld [vmem:[#allocation2 + $0x88] sm:$0xff]
      %v370 = vld [vmem:[#allocation2 + $0x90] sm:$0xff]
      %v371 = vld [vmem:[#allocation2 + $0x98] sm:$0xff]
      %v372 = vld [vmem:[#allocation2 + $0xa0] sm:$0xff]
      %v373 = vld [vmem:[#allocation2 + $0xa8] sm:$0xff]
      %v374 = vld [vmem:[#allocation2 + $0xb0] sm:$0xff]
      %v375 = vld [vmem:[#allocation2 + $0xb8] sm:$0xff]
      %v376 = vld [vmem:[#allocation2 + $0xc0] sm:$0xff]
      %v377 = vld [vmem:[#allocation2 + $0xc8] sm:$0xff]
      %v378 = vld [vmem:[#allocation2 + $0xd0] sm:$0xff]
      %v379 = vld [vmem:[#allocation2 + $0xd8] sm:$0xff]
      %v380 = vld [vmem:[#allocation2 + $0xe0] sm:$0xff]
      %v381 = vld [vmem:[#allocation2 + $0xe8] sm:$0xff]
      %v382 = vld [vmem:[#allocation2 + $0xf0] sm:$0xff]
      %v383 = vld [vmem:[#allocation2 + $0xf8] sm:$0xff]
      %v384 = vadd.f32 %v352, %v320
      %v385 = vadd.f32 %v353, %v321
      %v386 = vadd.f32 %v354, %v322
      %v387 = vadd.f32 %v355, %v323
      %v388 = vadd.f32 %v356, %v324
      %v389 = vadd.f32 %v357, %v325
      %v390 = vadd.f32 %v358, %v326
      %v391 = vadd.f32 %v359, %v327
      %v392 = vadd.f32 %v360, %v328
      %v393 = vadd.f32 %v361, %v329
      %v394 = vadd.f32 %v362, %v330
      %v395 = vadd.f32 %v363, %v331
      %v396 = vadd.f32 %v364, %v332
      %v397 = vadd.f32 %v365, %v333
      %v398 = vadd.f32 %v366, %v334
      %v399 = vadd.f32 %v367, %v335
      %v400 = vadd.f32 %v368, %v336
      %v401 = vadd.f32 %v369, %v337
      %v402 = vadd.f32 %v370, %v338
      %v403 = vadd.f32 %v371, %v339
      %v404 = vadd.f32 %v372, %v340
      %v405 = vadd.f32 %v373, %v341
      %v406 = vadd.f32 %v374, %v342
      %v407 = vadd.f32 %v375, %v343
      %v408 = vadd.f32 %v376, %v344
      %v409 = vadd.f32 %v377, %v345
      %v410 = vadd.f32 %v378, %v346
      %v411 = vadd.f32 %v379, %v347
      %v412 = vadd.f32 %v380, %v348
      %v413 = vadd.f32 %v381, %v349
      %v414 = vadd.f32 %v382, %v350
      %v415 = vadd.f32 %v383, %v351
      %416 = vst [vmem:[#allocation2] sm:$0xff] %v384
      %417 = vst [vmem:[#allocation2 + $0x8] sm:$0xff] %v385
      %418 = vst [vmem:[#allocation2 + $0x10] sm:$0xff] %v386
      %419 = vst [vmem:[#allocation2 + $0x18] sm:$0xff] %v387
      %420 = vst [vmem:[#allocation2 + $0x20] sm:$0xff] %v388
      %421 = vst [vmem:[#allocation2 + $0x28] sm:$0xff] %v389
      %422 = vst [vmem:[#allocation2 + $0x30] sm:$0xff] %v390
      %423 = vst [vmem:[#allocation2 + $0x38] sm:$0xff] %v391
      %424 = vst [vmem:[#allocation2 + $0x40] sm:$0xff] %v392
      %425 = vst [vmem:[#allocation2 + $0x48] sm:$0xff] %v393
      %426 = vst [vmem:[#allocation2 + $0x50] sm:$0xff] %v394
      %427 = vst [vmem:[#allocation2 + $0x58] sm:$0xff] %v395
      %428 = vst [vmem:[#allocation2 + $0x60] sm:$0xff] %v396
      %429 = vst [vmem:[#allocation2 + $0x68] sm:$0xff] %v397
      %430 = vst [vmem:[#allocation2 + $0x70] sm:$0xff] %v398
      %431 = vst [vmem:[#allocation2 + $0x78] sm:$0xff] %v399
      %432 = vst [vmem:[#allocation2 + $0x80] sm:$0xff] %v400
      %433 = vst [vmem:[#allocation2 + $0x88] sm:$0xff] %v401
      %434 = vst [vmem:[#allocation2 + $0x90] sm:$0xff] %v402
      %435 = vst [vmem:[#allocation2 + $0x98] sm:$0xff] %v403
      %436 = vst [vmem:[#allocation2 + $0xa0] sm:$0xff] %v404
      %437 = vst [vmem:[#allocation2 + $0xa8] sm:$0xff] %v405
      %438 = vst [vmem:[#allocation2 + $0xb0] sm:$0xff] %v406
      %439 = vst [vmem:[#allocation2 + $0xb8] sm:$0xff] %v407
      %440 = vst [vmem:[#allocation2 + $0xc0] sm:$0xff] %v408
      %441 = vst [vmem:[#allocation2 + $0xc8] sm:$0xff] %v409
      %442 = vst [vmem:[#allocation2 + $0xd0] sm:$0xff] %v410
      %443 = vst [vmem:[#allocation2 + $0xd8] sm:$0xff] %v411
      %444 = vst [vmem:[#allocation2 + $0xe0] sm:$0xff] %v412
      %445 = vst [vmem:[#allocation2 + $0xe8] sm:$0xff] %v413
      %446 = vst [vmem:[#allocation2 + $0xf0] sm:$0xff] %v414
      %447 = vst [vmem:[#allocation2 + $0xf8] sm:$0xff] %v415
      %v448 = vld [vmem:[%s172 + $0x2] sm:$0xff]
      %v449 = vld [vmem:[%s172 + $0xa] sm:$0xff]
      %v450 = vld [vmem:[%s172 + $0x1a] sm:$0xff]
      %v451 = vld [vmem:[%s172 + $0x22] sm:$0xff]
      %v452 = vld [vmem:[%s172 + $0x32] sm:$0xff]
      %v453 = vld [vmem:[%s172 + $0x3a] sm:$0xff]
      %v454 = vld [vmem:[%s172 + $0x4a] sm:$0xff]
      %v455 = vld [vmem:[%s172 + $0x52] sm:$0xff]
      %v456 = vld [vmem:[%s172 + $0x62] sm:$0xff]
      %v457 = vld [vmem:[%s172 + $0x6a] sm:$0xff]
      %v458 = vld [vmem:[%s172 + $0x7a] sm:$0xff]
      %v459 = vld [vmem:[%s172 + $0x82] sm:$0xff]
      %v460 = vld [vmem:[%s172 + $0x92] sm:$0xff]
      %v461 = vld [vmem:[%s172 + $0x9a] sm:$0xff]
      %v462 = vld [vmem:[%s172 + $0xaa] sm:$0xff]
      %v463 = vld [vmem:[%s172 + $0xb2] sm:$0xff]
      %v464 = vld [vmem:[%s172 + $0xc2] sm:$0xff]
      %v465 = vld [vmem:[%s172 + $0xca] sm:$0xff]
      %v466 = vld [vmem:[%s172 + $0xda] sm:$0xff]
      %v467 = vld [vmem:[%s172 + $0xe2] sm:$0xff]
      %v468 = vld [vmem:[%s172 + $0xf2] sm:$0xff]
      %v469 = vld [vmem:[%s172 + $0xfa] sm:$0xff]
      %v470 = vld [vmem:[%s172 + $0x10a] sm:$0xff]
      %v471 = vld [vmem:[%s172 + $0x112] sm:$0xff]
      %v472 = vld [vmem:[%s172 + $0x122] sm:$0xff]
      %v473 = vld [vmem:[%s172 + $0x12a] sm:$0xff]
      %v474 = vld [vmem:[%s172 + $0x13a] sm:$0xff]
      %v475 = vld [vmem:[%s172 + $0x142] sm:$0xff]
      %v476 = vld [vmem:[%s172 + $0x152] sm:$0xff]
      %v477 = vld [vmem:[%s172 + $0x15a] sm:$0xff]
      %v478 = vld [vmem:[%s172 + $0x16a] sm:$0xff]
      %v479 = vld [vmem:[%s172 + $0x172] sm:$0xff]
      %v480 = vlaneseq
      %v481 = vshrl.u32 %v480, 7
      %v482 = vsub.s32 2, %v481
      %v483 = vrot.slane %v182, %v482
      %v484 = vmul.f32 %v448, %v483
      %v485 = vmul.f32 %v449, %v483
      %v486 = vmul.f32 %v450, %v483
      %v487 = vmul.f32 %v451, %v483
      %v488 = vmul.f32 %v452, %v483
      %v489 = vmul.f32 %v453, %v483
      %v490 = vmul.f32 %v454, %v483
      %v491 = vmul.f32 %v455, %v483
      %v492 = vmul.f32 %v456, %v483
      %v493 = vmul.f32 %v457, %v483
      %v494 = vmul.f32 %v458, %v483
      %v495 = vmul.f32 %v459, %v483
      %v496 = vmul.f32 %v460, %v483
      %v497 = vmul.f32 %v461, %v483
      %v498 = vmul.f32 %v462, %v483
      %v499 = vmul.f32 %v463, %v483
      %v500 = vmul.f32 %v464, %v483
      %v501 = vmul.f32 %v465, %v483
      %v502 = vmul.f32 %v466, %v483
      %v503 = vmul.f32 %v467, %v483
      %v504 = vmul.f32 %v468, %v483
      %v505 = vmul.f32 %v469, %v483
      %v506 = vmul.f32 %v470, %v483
      %v507 = vmul.f32 %v471, %v483
      %v508 = vmul.f32 %v472, %v483
      %v509 = vmul.f32 %v473, %v483
      %v510 = vmul.f32 %v474, %v483
      %v511 = vmul.f32 %v475, %v483
      %v512 = vmul.f32 %v476, %v483
      %v513 = vmul.f32 %v477, %v483
      %v514 = vmul.f32 %v478, %v483
      %v515 = vmul.f32 %v479, %v483
      %v516 = vld [vmem:[#allocation2] sm:$0xff]
      %v517 = vld [vmem:[#allocation2 + $0x8] sm:$0xff]
      %v518 = vld [vmem:[#allocation2 + $0x10] sm:$0xff]
      %v519 = vld [vmem:[#allocation2 + $0x18] sm:$0xff]
      %v520 = vld [vmem:[#allocation2 + $0x20] sm:$0xff]
      %v521 = vld [vmem:[#allocation2 + $0x28] sm:$0xff]
      %v522 = vld [vmem:[#allocation2 + $0x30] sm:$0xff]
      %v523 = vld [vmem:[#allocation2 + $0x38] sm:$0xff]
      %v524 = vld [vmem:[#allocation2 + $0x40] sm:$0xff]
      %v525 = vld [vmem:[#allocation2 + $0x48] sm:$0xff]
      %v526 = vld [vmem:[#allocation2 + $0x50] sm:$0xff]
      %v527 = vld [vmem:[#allocation2 + $0x58] sm:$0xff]
      %v528 = vld [vmem:[#allocation2 + $0x60] sm:$0xff]
      %v529 = vld [vmem:[#allocation2 + $0x68] sm:$0xff]
      %v530 = vld [vmem:[#allocation2 + $0x70] sm:$0xff]
      %v531 = vld [vmem:[#allocation2 + $0x78] sm:$0xff]
      %v532 = vld [vmem:[#allocation2 + $0x80] sm:$0xff]
      %v533 = vld [vmem:[#allocation2 + $0x88] sm:$0xff]
      %v534 = vld [vmem:[#allocation2 + $0x90] sm:$0xff]
      %v535 = vld [vmem:[#allocation2 + $0x98] sm:$0xff]
      %v536 = vld [vmem:[#allocation2 + $0xa0] sm:$0xff]
      %v537 = vld [vmem:[#allocation2 + $0xa8] sm:$0xff]
      %v538 = vld [vmem:[#allocation2 + $0xb0] sm:$0xff]
      %v539 = vld [vmem:[#allocation2 + $0xb8] sm:$0xff]
      %v540 = vld [vmem:[#allocation2 + $0xc0] sm:$0xff]
      %v541 = vld [vmem:[#allocation2 + $0xc8] sm:$0xff]
      %v542 = vld [vmem:[#allocation2 + $0xd0] sm:$0xff]
      %v543 = vld [vmem:[#allocation2 + $0xd8] sm:$0xff]
      %v544 = vld [vmem:[#allocation2 + $0xe0] sm:$0xff]
      %v545 = vld [vmem:[#allocation2 + $0xe8] sm:$0xff]
      %v546 = vld [vmem:[#allocation2 + $0xf0] sm:$0xff]
      %v547 = vld [vmem:[#allocation2 + $0xf8] sm:$0xff]
      %v548 = vadd.f32 %v516, %v484
      %v549 = vadd.f32 %v517, %v485
      %v550 = vadd.f32 %v518, %v486
      %v551 = vadd.f32 %v519, %v487
      %v552 = vadd.f32 %v520, %v488
      %v553 = vadd.f32 %v521, %v489
      %v554 = vadd.f32 %v522, %v490
      %v555 = vadd.f32 %v523, %v491
      %v556 = vadd.f32 %v524, %v492
      %v557 = vadd.f32 %v525, %v493
      %v558 = vadd.f32 %v526, %v494
      %v559 = vadd.f32 %v527, %v495
      %v560 = vadd.f32 %v528, %v496
      %v561 = vadd.f32 %v529, %v497
      %v562 = vadd.f32 %v530, %v498
      %v563 = vadd.f32 %v531, %v499
      %v564 = vadd.f32 %v532, %v500
      %v565 = vadd.f32 %v533, %v501
      %v566 = vadd.f32 %v534, %v502
      %v567 = vadd.f32 %v535, %v503
      %v568 = vadd.f32 %v536, %v504
      %v569 = vadd.f32 %v537, %v505
      %v570 = vadd.f32 %v538, %v506
      %v571 = vadd.f32 %v539, %v507
      %v572 = vadd.f32 %v540, %v508
      %v573 = vadd.f32 %v541, %v509
      %v574 = vadd.f32 %v542, %v510
      %v575 = vadd.f32 %v543, %v511
      %v576 = vadd.f32 %v544, %v512
      %v577 = vadd.f32 %v545, %v513
      %v578 = vadd.f32 %v546, %v514
      %v579 = vadd.f32 %v547, %v515
      %580 = vst [vmem:[#allocation2] sm:$0xff] %v548
      %581 = vst [vmem:[#allocation2 + $0x8] sm:$0xff] %v549
      %582 = vst [vmem:[#allocation2 + $0x10] sm:$0xff] %v550
      %583 = vst [vmem:[#allocation2 + $0x18] sm:$0xff] %v551
      %584 = vst [vmem:[#allocation2 + $0x20] sm:$0xff] %v552
      %585 = vst [vmem:[#allocation2 + $0x28] sm:$0xff] %v553
      %586 = vst [vmem:[#allocation2 + $0x30] sm:$0xff] %v554
      %587 = vst [vmem:[#allocation2 + $0x38] sm:$0xff] %v555
      %588 = vst [vmem:[#allocation2 + $0x40] sm:$0xff] %v556
      %589 = vst [vmem:[#allocation2 + $0x48] sm:$0xff] %v557
      %590 = vst [vmem:[#allocation2 + $0x50] sm:$0xff] %v558
      %591 = vst [vmem:[#allocation2 + $0x58] sm:$0xff] %v559
      %592 = vst [vmem:[#allocation2 + $0x60] sm:$0xff] %v560
      %593 = vst [vmem:[#allocation2 + $0x68] sm:$0xff] %v561
      %594 = vst [vmem:[#allocation2 + $0x70] sm:$0xff] %v562
      %595 = vst [vmem:[#allocation2 + $0x78] sm:$0xff] %v563
      %596 = vst [vmem:[#allocation2 + $0x80] sm:$0xff] %v564
      %597 = vst [vmem:[#allocation2 + $0x88] sm:$0xff] %v565
      %598 = vst [vmem:[#allocation2 + $0x90] sm:$0xff] %v566
      %599 = vst [vmem:[#allocation2 + $0x98] sm:$0xff] %v567
      %600 = vst [vmem:[#allocation2 + $0xa0] sm:$0xff] %v568
      %601 = vst [vmem:[#allocation2 + $0xa8] sm:$0xff] %v569
      %602 = vst [vmem:[#allocation2 + $0xb0] sm:$0xff] %v570
      %603 = vst [vmem:[#allocation2 + $0xb8] sm:$0xff] %v571
      %604 = vst [vmem:[#allocation2 + $0xc0] sm:$0xff] %v572
      %605 = vst [vmem:[#allocation2 + $0xc8] sm:$0xff] %v573
      %606 = vst [vmem:[#allocation2 + $0xd0] sm:$0xff] %v574
      %607 = vst [vmem:[#allocation2 + $0xd8] sm:$0xff] %v575
      %608 = vst [vmem:[#allocation2 + $0xe0] sm:$0xff] %v576
      %609 = vst [vmem:[#allocation2 + $0xe8] sm:$0xff] %v577
      %610 = vst [vmem:[#allocation2 + $0xf0] sm:$0xff] %v578
      %611 = vst [vmem:[#allocation2 + $0xf8] sm:$0xff] %v579
      %s612 = scalar_lea.vmem %s172, 24
      %v613 = vld [vmem:[%s612] sm:$0xff]
      %v614 = vld [vmem:[%s612 + $0x8] sm:$0xff]
      %v615 = vld [vmem:[%s612 + $0x18] sm:$0xff]
      %v616 = vld [vmem:[%s612 + $0x20] sm:$0xff]
      %v617 = vld [vmem:[%s612 + $0x30] sm:$0xff]
      %v618 = vld [vmem:[%s612 + $0x38] sm:$0xff]
      %v619 = vld [vmem:[%s612 + $0x48] sm:$0xff]
      %v620 = vld [vmem:[%s612 + $0x50] sm:$0xff]
      %v621 = vld [vmem:[%s612 + $0x60] sm:$0xff]
      %v622 = vld [vmem:[%s612 + $0x68] sm:$0xff]
      %v623 = vld [vmem:[%s612 + $0x78] sm:$0xff]
      %v624 = vld [vmem:[%s612 + $0x80] sm:$0xff]
      %v625 = vld [vmem:[%s612 + $0x90] sm:$0xff]
      %v626 = vld [vmem:[%s612 + $0x98] sm:$0xff]
      %v627 = vld [vmem:[%s612 + $0xa8] sm:$0xff]
      %v628 = vld [vmem:[%s612 + $0xb0] sm:$0xff]
      %v629 = vld [vmem:[%s612 + $0xc0] sm:$0xff]
      %v630 = vld [vmem:[%s612 + $0xc8] sm:$0xff]
      %v631 = vld [vmem:[%s612 + $0xd8] sm:$0xff]
      %v632 = vld [vmem:[%s612 + $0xe0] sm:$0xff]
      %v633 = vld [vmem:[%s612 + $0xf0] sm:$0xff]
      %v634 = vld [vmem:[%s612 + $0xf8] sm:$0xff]
      %v635 = vld [vmem:[%s612 + $0x108] sm:$0xff]
      %v636 = vld [vmem:[%s612 + $0x110] sm:$0xff]
      %v637 = vld [vmem:[%s612 + $0x120] sm:$0xff]
      %v638 = vld [vmem:[%s612 + $0x128] sm:$0xff]
      %v639 = vld [vmem:[%s612 + $0x138] sm:$0xff]
      %v640 = vld [vmem:[%s612 + $0x140] sm:$0xff]
      %v641 = vld [vmem:[%s612 + $0x150] sm:$0xff]
      %v642 = vld [vmem:[%s612 + $0x158] sm:$0xff]
      %v643 = vld [vmem:[%s612 + $0x168] sm:$0xff]
      %v644 = vld [vmem:[%s612 + $0x170] sm:$0xff]
      %v645 = vlaneseq
      %v646 = vshrl.u32 %v645, 7
      %v647 = vsub.s32 3, %v646
      %v648 = vrot.slane %v182, %v647
      %v649 = vmul.f32 %v613, %v648
      %v650 = vmul.f32 %v614, %v648
      %v651 = vmul.f32 %v615, %v648
      %v652 = vmul.f32 %v616, %v648
      %v653 = vmul.f32 %v617, %v648
      %v654 = vmul.f32 %v618, %v648
      %v655 = vmul.f32 %v619, %v648
      %v656 = vmul.f32 %v620, %v648
      %v657 = vmul.f32 %v621, %v648
      %v658 = vmul.f32 %v622, %v648
      %v659 = vmul.f32 %v623, %v648
      %v660 = vmul.f32 %v624, %v648
      %v661 = vmul.f32 %v625, %v648
      %v662 = vmul.f32 %v626, %v648
      %v663 = vmul.f32 %v627, %v648
      %v664 = vmul.f32 %v628, %v648
      %v665 = vmul.f32 %v629, %v648
      %v666 = vmul.f32 %v630, %v648
      %v667 = vmul.f32 %v631, %v648
      %v668 = vmul.f32 %v632, %v648
      %v669 = vmul.f32 %v633, %v648
      %v670 = vmul.f32 %v634, %v648
      %v671 = vmul.f32 %v635, %v648
      %v672 = vmul.f32 %v636, %v648
      %v673 = vmul.f32 %v637, %v648
      %v674 = vmul.f32 %v638, %v648
      %v675 = vmul.f32 %v639, %v648
      %v676 = vmul.f32 %v640, %v648
      %v677 = vmul.f32 %v641, %v648
      %v678 = vmul.f32 %v642, %v648
      %v679 = vmul.f32 %v643, %v648
      %v680 = vmul.f32 %v644, %v648
      %v681 = vld [vmem:[#allocation2] sm:$0xff]
      %v682 = vld [vmem:[#allocation2 + $0x8] sm:$0xff]
      %v683 = vld [vmem:[#allocation2 + $0x10] sm:$0xff]
      %v684 = vld [vmem:[#allocation2 + $0x18] sm:$0xff]
      %v685 = vld [vmem:[#allocation2 + $0x20] sm:$0xff]
      %v686 = vld [vmem:[#allocation2 + $0x28] sm:$0xff]
      %v687 = vld [vmem:[#allocation2 + $0x30] sm:$0xff]
      %v688 = vld [vmem:[#allocation2 + $0x38] sm:$0xff]
      %v689 = vld [vmem:[#allocation2 + $0x40] sm:$0xff]
      %v690 = vld [vmem:[#allocation2 + $0x48] sm:$0xff]
      %v691 = vld [vmem:[#allocation2 + $0x50] sm:$0xff]
      %v692 = vld [vmem:[#allocation2 + $0x58] sm:$0xff]
      %v693 = vld [vmem:[#allocation2 + $0x60] sm:$0xff]
      %v694 = vld [vmem:[#allocation2 + $0x68] sm:$0xff]
      %v695 = vld [vmem:[#allocation2 + $0x70] sm:$0xff]
      %v696 = vld [vmem:[#allocation2 + $0x78] sm:$0xff]
      %v697 = vld [vmem:[#allocation2 + $0x80] sm:$0xff]
      %v698 = vld [vmem:[#allocation2 + $0x88] sm:$0xff]
      %v699 = vld [vmem:[#allocation2 + $0x90] sm:$0xff]
      %v700 = vld [vmem:[#allocation2 + $0x98] sm:$0xff]
      %v701 = vld [vmem:[#allocation2 + $0xa0] sm:$0xff]
      %v702 = vld [vmem:[#allocation2 + $0xa8] sm:$0xff]
      %v703 = vld [vmem:[#allocation2 + $0xb0] sm:$0xff]
      %v704 = vld [vmem:[#allocation2 + $0xb8] sm:$0xff]
      %v705 = vld [vmem:[#allocation2 + $0xc0] sm:$0xff]
      %v706 = vld [vmem:[#allocation2 + $0xc8] sm:$0xff]
      %v707 = vld [vmem:[#allocation2 + $0xd0] sm:$0xff]
      %v708 = vld [vmem:[#allocation2 + $0xd8] sm:$0xff]
      %v709 = vld [vmem:[#allocation2 + $0xe0] sm:$0xff]
      %v710 = vld [vmem:[#allocation2 + $0xe8] sm:$0xff]
      %v711 = vld [vmem:[#allocation2 + $0xf0] sm:$0xff]
      %v712 = vld [vmem:[#allocation2 + $0xf8] sm:$0xff]
      %v713 = vadd.f32 %v681, %v649
      %v714 = vadd.f32 %v682, %v650
      %v715 = vadd.f32 %v683, %v651
      %v716 = vadd.f32 %v684, %v652
      %v717 = vadd.f32 %v685, %v653
      %v718 = vadd.f32 %v686, %v654
      %v719 = vadd.f32 %v687, %v655
      %v720 = vadd.f32 %v688, %v656
      %v721 = vadd.f32 %v689, %v657
      %v722 = vadd.f32 %v690, %v658
      %v723 = vadd.f32 %v691, %v659
      %v724 = vadd.f32 %v692, %v660
      %v725 = vadd.f32 %v693, %v661
      %v726 = vadd.f32 %v694, %v662
      %v727 = vadd.f32 %v695, %v663
      %v728 = vadd.f32 %v696, %v664
      %v729 = vadd.f32 %v697, %v665
      %v730 = vadd.f32 %v698, %v666
      %v731 = vadd.f32 %v699, %v667
      %v732 = vadd.f32 %v700, %v668
      %v733 = vadd.f32 %v701, %v669
      %v734 = vadd.f32 %v702, %v670
      %v735 = vadd.f32 %v703, %v671
      %v736 = vadd.f32 %v704, %v672
      %v737 = vadd.f32 %v705, %v673
      %v738 = vadd.f32 %v706, %v674
      %v739 = vadd.f32 %v707, %v675
      %v740 = vadd.f32 %v708, %v676
      %v741 = vadd.f32 %v709, %v677
      %v742 = vadd.f32 %v710, %v678
      %v743 = vadd.f32 %v711, %v679
      %v744 = vadd.f32 %v712, %v680
      %745 = vst [vmem:[#allocation2] sm:$0xff] %v713
      %746 = vst [vmem:[#allocation2 + $0x8] sm:$0xff] %v714
      %747 = vst [vmem:[#allocation2 + $0x10] sm:$0xff] %v715
      %748 = vst [vmem:[#allocation2 + $0x18] sm:$0xff] %v716
      %749 = vst [vmem:[#allocation2 + $0x20] sm:$0xff] %v717
      %750 = vst [vmem:[#allocation2 + $0x28] sm:$0xff] %v718
      %751 = vst [vmem:[#allocation2 + $0x30] sm:$0xff] %v719
      %752 = vst [vmem:[#allocation2 + $0x38] sm:$0xff] %v720
      %753 = vst [vmem:[#allocation2 + $0x40] sm:$0xff] %v721
      %754 = vst [vmem:[#allocation2 + $0x48] sm:$0xff] %v722
      %755 = vst [vmem:[#allocation2 + $0x50] sm:$0xff] %v723
      %756 = vst [vmem:[#allocation2 + $0x58] sm:$0xff] %v724
      %757 = vst [vmem:[#allocation2 + $0x60] sm:$0xff] %v725
      %758 = vst [vmem:[#allocation2 + $0x68] sm:$0xff] %v726
      %759 = vst [vmem:[#allocation2 + $0x70] sm:$0xff] %v727
      %760 = vst [vmem:[#allocation2 + $0x78] sm:$0xff] %v728
      %761 = vst [vmem:[#allocation2 + $0x80] sm:$0xff] %v729
      %762 = vst [vmem:[#allocation2 + $0x88] sm:$0xff] %v730
      %763 = vst [vmem:[#allocation2 + $0x90] sm:$0xff] %v731
      %764 = vst [vmem:[#allocation2 + $0x98] sm:$0xff] %v732
      %765 = vst [vmem:[#allocation2 + $0xa0] sm:$0xff] %v733
      %766 = vst [vmem:[#allocation2 + $0xa8] sm:$0xff] %v734
      %767 = vst [vmem:[#allocation2 + $0xb0] sm:$0xff] %v735
      %768 = vst [vmem:[#allocation2 + $0xb8] sm:$0xff] %v736
      %769 = vst [vmem:[#allocation2 + $0xc0] sm:$0xff] %v737
      %770 = vst [vmem:[#allocation2 + $0xc8] sm:$0xff] %v738
      %771 = vst [vmem:[#allocation2 + $0xd0] sm:$0xff] %v739
      %772 = vst [vmem:[#allocation2 + $0xd8] sm:$0xff] %v740
      %773 = vst [vmem:[#allocation2 + $0xe0] sm:$0xff] %v741
      %774 = vst [vmem:[#allocation2 + $0xe8] sm:$0xff] %v742
      %775 = vst [vmem:[#allocation2 + $0xf0] sm:$0xff] %v743
      %776 = vst [vmem:[#allocation2 + $0xf8] sm:$0xff] %v744
      %v777 = vld [vmem:[%s612 + $0x1] sm:$0xff]
      %v778 = vld [vmem:[%s612 + $0x9] sm:$0xff]
      %v779 = vld [vmem:[%s612 + $0x19] sm:$0xff]
      %v780 = vld [vmem:[%s612 + $0x21] sm:$0xff]
      %v781 = vld [vmem:[%s612 + $0x31] sm:$0xff]
      %v782 = vld [vmem:[%s612 + $0x39] sm:$0xff]
      %v783 = vld [vmem:[%s612 + $0x49] sm:$0xff]
      %v784 = vld [vmem:[%s612 + $0x51] sm:$0xff]
      %v785 = vld [vmem:[%s612 + $0x61] sm:$0xff]
      %v786 = vld [vmem:[%s612 + $0x69] sm:$0xff]
      %v787 = vld [vmem:[%s612 + $0x79] sm:$0xff]
      %v788 = vld [vmem:[%s612 + $0x81] sm:$0xff]
      %v789 = vld [vmem:[%s612 + $0x91] sm:$0xff]
      %v790 = vld [vmem:[%s612 + $0x99] sm:$0xff]
      %v791 = vld [vmem:[%s612 + $0xa9] sm:$0xff]
      %v792 = vld [vmem:[%s612 + $0xb1] sm:$0xff]
      %v793 = vld [vmem:[%s612 + $0xc1] sm:$0xff]
      %v794 = vld [vmem:[%s612 + $0xc9] sm:$0xff]
      %v795 = vld [vmem:[%s612 + $0xd9] sm:$0xff]
      %v796 = vld [vmem:[%s612 + $0xe1] sm:$0xff]
      %v797 = vld [vmem:[%s612 + $0xf1] sm:$0xff]
      %v798 = vld [vmem:[%s612 + $0xf9] sm:$0xff]
      %v799 = vld [vmem:[%s612 + $0x109] sm:$0xff]
      %v800 = vld [vmem:[%s612 + $0x111] sm:$0xff]
      %v801 = vld [vmem:[%s612 + $0x121] sm:$0xff]
      %v802 = vld [vmem:[%s612 + $0x129] sm:$0xff]
      %v803 = vld [vmem:[%s612 + $0x139] sm:$0xff]
      %v804 = vld [vmem:[%s612 + $0x141] sm:$0xff]
      %v805 = vld [vmem:[%s612 + $0x151] sm:$0xff]
      %v806 = vld [vmem:[%s612 + $0x159] sm:$0xff]
      %v807 = vld [vmem:[%s612 + $0x169] sm:$0xff]
      %v808 = vld [vmem:[%s612 + $0x171] sm:$0xff]
      %v809 = vlaneseq
      %v810 = vshrl.u32 %v809, 7
      %v811 = vsub.s32 4, %v810
      %v812 = vrot.slane %v182, %v811
      %v813 = vmul.f32 %v777, %v812
      %v814 = vmul.f32 %v778, %v812
      %v815 = vmul.f32 %v779, %v812
      %v816 = vmul.f32 %v780, %v812
      %v817 = vmul.f32 %v781, %v812
      %v818 = vmul.f32 %v782, %v812
      %v819 = vmul.f32 %v783, %v812
      %v820 = vmul.f32 %v784, %v812
      %v821 = vmul.f32 %v785, %v812
      %v822 = vmul.f32 %v786, %v812
      %v823 = vmul.f32 %v787, %v812
      %v824 = vmul.f32 %v788, %v812
      %v825 = vmul.f32 %v789, %v812
      %v826 = vmul.f32 %v790, %v812
      %v827 = vmul.f32 %v791, %v812
      %v828 = vmul.f32 %v792, %v812
      %v829 = vmul.f32 %v793, %v812
      %v830 = vmul.f32 %v794, %v812
      %v831 = vmul.f32 %v795, %v812
      %v832 = vmul.f32 %v796, %v812
      %v833 = vmul.f32 %v797, %v812
      %v834 = vmul.f32 %v798, %v812
      %v835 = vmul.f32 %v799, %v812
      %v836 = vmul.f32 %v800, %v812
      %v837 = vmul.f32 %v801, %v812
      %v838 = vmul.f32 %v802, %v812
      %v839 = vmul.f32 %v803, %v812
      %v840 = vmul.f32 %v804, %v812
      %v841 = vmul.f32 %v805, %v812
      %v842 = vmul.f32 %v806, %v812
      %v843 = vmul.f32 %v807, %v812
      %v844 = vmul.f32 %v808, %v812
      %v845 = vld [vmem:[#allocation2] sm:$0xff]
      %v846 = vld [vmem:[#allocation2 + $0x8] sm:$0xff]
      %v847 = vld [vmem:[#allocation2 + $0x10] sm:$0xff]
      %v848 = vld [vmem:[#allocation2 + $0x18] sm:$0xff]
      %v849 = vld [vmem:[#allocation2 + $0x20] sm:$0xff]
      %v850 = vld [vmem:[#allocation2 + $0x28] sm:$0xff]
      %v851 = vld [vmem:[#allocation2 + $0x30] sm:$0xff]
      %v852 = vld [vmem:[#allocation2 + $0x38] sm:$0xff]
      %v853 = vld [vmem:[#allocation2 + $0x40] sm:$0xff]
      %v854 = vld [vmem:[#allocation2 + $0x48] sm:$0xff]
      %v855 = vld [vmem:[#allocation2 + $0x50] sm:$0xff]
      %v856 = vld [vmem:[#allocation2 + $0x58] sm:$0xff]
      %v857 = vld [vmem:[#allocation2 + $0x60] sm:$0xff]
      %v858 = vld [vmem:[#allocation2 + $0x68] sm:$0xff]
      %v859 = vld [vmem:[#allocation2 + $0x70] sm:$0xff]
      %v860 = vld [vmem:[#allocation2 + $0x78] sm:$0xff]
      %v861 = vld [vmem:[#allocation2 + $0x80] sm:$0xff]
      %v862 = vld [vmem:[#allocation2 + $0x88] sm:$0xff]
      %v863 = vld [vmem:[#allocation2 + $0x90] sm:$0xff]
      %v864 = vld [vmem:[#allocation2 + $0x98] sm:$0xff]
      %v865 = vld [vmem:[#allocation2 + $0xa0] sm:$0xff]
      %v866 = vld [vmem:[#allocation2 + $0xa8] sm:$0xff]
      %v867 = vld [vmem:[#allocation2 + $0xb0] sm:$0xff]
      %v868 = vld [vmem:[#allocation2 + $0xb8] sm:$0xff]
      %v869 = vld [vmem:[#allocation2 + $0xc0] sm:$0xff]
      %v870 = vld [vmem:[#allocation2 + $0xc8] sm:$0xff]
      %v871 = vld [vmem:[#allocation2 + $0xd0] sm:$0xff]
      %v872 = vld [vmem:[#allocation2 + $0xd8] sm:$0xff]
      %v873 = vld [vmem:[#allocation2 + $0xe0] sm:$0xff]
      %v874 = vld [vmem:[#allocation2 + $0xe8] sm:$0xff]
      %v875 = vld [vmem:[#allocation2 + $0xf0] sm:$0xff]
      %v876 = vld [vmem:[#allocation2 + $0xf8] sm:$0xff]
      %v877 = vadd.f32 %v845, %v813
      %v878 = vadd.f32 %v846, %v814
      %v879 = vadd.f32 %v847, %v815
      %v880 = vadd.f32 %v848, %v816
      %v881 = vadd.f32 %v849, %v817
      %v882 = vadd.f32 %v850, %v818
      %v883 = vadd.f32 %v851, %v819
      %v884 = vadd.f32 %v852, %v820
      %v885 = vadd.f32 %v853, %v821
      %v886 = vadd.f32 %v854, %v822
      %v887 = vadd.f32 %v855, %v823
      %v888 = vadd.f32 %v856, %v824
      %v889 = vadd.f32 %v857, %v825
      %v890 = vadd.f32 %v858, %v826
      %v891 = vadd.f32 %v859, %v827
      %v892 = vadd.f32 %v860, %v828
      %v893 = vadd.f32 %v861, %v829
      %v894 = vadd.f32 %v862, %v830
      %v895 = vadd.f32 %v863, %v831
      %v896 = vadd.f32 %v864, %v832
      %v897 = vadd.f32 %v865, %v833
      %v898 = vadd.f32 %v866, %v834
      %v899 = vadd.f32 %v867, %v835
      %v900 = vadd.f32 %v868, %v836
      %v901 = vadd.f32 %v869, %v837
      %v902 = vadd.f32 %v870, %v838
      %v903 = vadd.f32 %v871, %v839
      %v904 = vadd.f32 %v872, %v840
      %v905 = vadd.f32 %v873, %v841
      %v906 = vadd.f32 %v874, %v842
      %v907 = vadd.f32 %v875, %v843
      %v908 = vadd.f32 %v876, %v844
      %909 = vst [vmem:[#allocation2] sm:$0xff] %v877
      %910 = vst [vmem:[#allocation2 + $0x8] sm:$0xff] %v878
      %911 = vst [vmem:[#allocation2 + $0x10] sm:$0xff] %v879
      %912 = vst [vmem:[#allocation2 + $0x18] sm:$0xff] %v880
      %913 = vst [vmem:[#allocation2 + $0x20] sm:$0xff] %v881
      %914 = vst [vmem:[#allocation2 + $0x28] sm:$0xff] %v882
      %915 = vst [vmem:[#allocation2 + $0x30] sm:$0xff] %v883
      %916 = vst [vmem:[#allocation2 + $0x38] sm:$0xff] %v884
      %917 = vst [vmem:[#allocation2 + $0x40] sm:$0xff] %v885
      %918 = vst [vmem:[#allocation2 + $0x48] sm:$0xff] %v886
      %919 = vst [vmem:[#allocation2 + $0x50] sm:$0xff] %v887
      %920 = vst [vmem:[#allocation2 + $0x58] sm:$0xff] %v888
      %921 = vst [vmem:[#allocation2 + $0x60] sm:$0xff] %v889
      %922 = vst [vmem:[#allocation2 + $0x68] sm:$0xff] %v890
      %923 = vst [vmem:[#allocation2 + $0x70] sm:$0xff] %v891
      %924 = vst [vmem:[#allocation2 + $0x78] sm:$0xff] %v892
      %925 = vst [vmem:[#allocation2 + $0x80] sm:$0xff] %v893
      %926 = vst [vmem:[#allocation2 + $0x88] sm:$0xff] %v894
      %927 = vst [vmem:[#allocation2 + $0x90] sm:$0xff] %v895
      %928 = vst [vmem:[#allocation2 + $0x98] sm:$0xff] %v896
      %929 = vst [vmem:[#allocation2 + $0xa0] sm:$0xff] %v897
      %930 = vst [vmem:[#allocation2 + $0xa8] sm:$0xff] %v898
      %931 = vst [vmem:[#allocation2 + $0xb0] sm:$0xff] %v899
      %932 = vst [vmem:[#allocation2 + $0xb8] sm:$0xff] %v900
      %933 = vst [vmem:[#allocation2 + $0xc0] sm:$0xff] %v901
      %934 = vst [vmem:[#allocation2 + $0xc8] sm:$0xff] %v902
      %935 = vst [vmem:[#allocation2 + $0xd0] sm:$0xff] %v903
      %936 = vst [vmem:[#allocation2 + $0xd8] sm:$0xff] %v904
      %937 = vst [vmem:[#allocation2 + $0xe0] sm:$0xff] %v905
      %938 = vst [vmem:[#allocation2 + $0xe8] sm:$0xff] %v906
      %939 = vst [vmem:[#allocation2 + $0xf0] sm:$0xff] %v907
      %940 = vst [vmem:[#allocation2 + $0xf8] sm:$0xff] %v908
      %v941 = vld [vmem:[%s612 + $0x2] sm:$0xff]
      %v942 = vld [vmem:[%s612 + $0xa] sm:$0xff]
      %v943 = vld [vmem:[%s612 + $0x1a] sm:$0xff]
      %v944 = vld [vmem:[%s612 + $0x22] sm:$0xff]
      %v945 = vld [vmem:[%s612 + $0x32] sm:$0xff]
      %v946 = vld [vmem:[%s612 + $0x3a] sm:$0xff]
      %v947 = vld [vmem:[%s612 + $0x4a] sm:$0xff]
      %v948 = vld [vmem:[%s612 + $0x52] sm:$0xff]
      %v949 = vld [vmem:[%s612 + $0x62] sm:$0xff]
      %v950 = vld [vmem:[%s612 + $0x6a] sm:$0xff]
      %v951 = vld [vmem:[%s612 + $0x7a] sm:$0xff]
      %v952 = vld [vmem:[%s612 + $0x82] sm:$0xff]
      %v953 = vld [vmem:[%s612 + $0x92] sm:$0xff]
      %v954 = vld [vmem:[%s612 + $0x9a] sm:$0xff]
      %v955 = vld [vmem:[%s612 + $0xaa] sm:$0xff]
      %v956 = vld [vmem:[%s612 + $0xb2] sm:$0xff]
      %v957 = vld [vmem:[%s612 + $0xc2] sm:$0xff]
      %v958 = vld [vmem:[%s612 + $0xca] sm:$0xff]
      %v959 = vld [vmem:[%s612 + $0xda] sm:$0xff]
      %v960 = vld [vmem:[%s612 + $0xe2] sm:$0xff]
      %v961 = vld [vmem:[%s612 + $0xf2] sm:$0xff]
      %v962 = vld [vmem:[%s612 + $0xfa] sm:$0xff]
      %v963 = vld [vmem:[%s612 + $0x10a] sm:$0xff]
      %v964 = vld [vmem:[%s612 + $0x112] sm:$0xff]
      %v965 = vld [vmem:[%s612 + $0x122] sm:$0xff]
      %v966 = vld [vmem:[%s612 + $0x12a] sm:$0xff]
      %v967 = vld [vmem:[%s612 + $0x13a] sm:$0xff]
      %v968 = vld [vmem:[%s612 + $0x142] sm:$0xff]
      %v969 = vld [vmem:[%s612 + $0x152] sm:$0xff]
      %v970 = vld [vmem:[%s612 + $0x15a] sm:$0xff]
      %v971 = vld [vmem:[%s612 + $0x16a] sm:$0xff]
      %v972 = vld [vmem:[%s612 + $0x172] sm:$0xff]
      %v973 = vlaneseq
      %v974 = vshrl.u32 %v973, 7
      %v975 = vsub.s32 5, %v974
      %v976 = vrot.slane %v182, %v975
      %v977 = vmul.f32 %v941, %v976
      %v978 = vmul.f32 %v942, %v976
      %v979 = vmul.f32 %v943, %v976
      %v980 = vmul.f32 %v944, %v976
      %v981 = vmul.f32 %v945, %v976
      %v982 = vmul.f32 %v946, %v976
      %v983 = vmul.f32 %v947, %v976
      %v984 = vmul.f32 %v948, %v976
      %v985 = vmul.f32 %v949, %v976
      %v986 = vmul.f32 %v950, %v976
      %v987 = vmul.f32 %v951, %v976
      %v988 = vmul.f32 %v952, %v976
      %v989 = vmul.f32 %v953, %v976
      %v990 = vmul.f32 %v954, %v976
      %v991 = vmul.f32 %v955, %v976
      %v992 = vmul.f32 %v956, %v976
      %v993 = vmul.f32 %v957, %v976
      %v994 = vmul.f32 %v958, %v976
      %v995 = vmul.f32 %v959, %v976
      %v996 = vmul.f32 %v960, %v976
      %v997 = vmul.f32 %v961, %v976
      %v998 = vmul.f32 %v962, %v976
      %v999 = vmul.f32 %v963, %v976
      %v1000 = vmul.f32 %v964, %v976
      %v1001 = vmul.f32 %v965, %v976
      %v1002 = vmul.f32 %v966, %v976
      %v1003 = vmul.f32 %v967, %v976
      %v1004 = vmul.f32 %v968, %v976
      %v1005 = vmul.f32 %v969, %v976
      %v1006 = vmul.f32 %v970, %v976
      %v1007 = vmul.f32 %v971, %v976
      %v1008 = vmul.f32 %v972, %v976
      %v1009 = vld [vmem:[#allocation2] sm:$0xff]
      %v1010 = vld [vmem:[#allocation2 + $0x8] sm:$0xff]
      %v1011 = vld [vmem:[#allocation2 + $0x10] sm:$0xff]
      %v1012 = vld [vmem:[#allocation2 + $0x18] sm:$0xff]
      %v1013 = vld [vmem:[#allocation2 + $0x20] sm:$0xff]
      %v1014 = vld [vmem:[#allocation2 + $0x28] sm:$0xff]
      %v1015 = vld [vmem:[#allocation2 + $0x30] sm:$0xff]
      %v1016 = vld [vmem:[#allocation2 + $0x38] sm:$0xff]
      %v1017 = vld [vmem:[#allocation2 + $0x40] sm:$0xff]
      %v1018 = vld [vmem:[#allocation2 + $0x48] sm:$0xff]
      %v1019 = vld [vmem:[#allocation2 + $0x50] sm:$0xff]
      %v1020 = vld [vmem:[#allocation2 + $0x58] sm:$0xff]
      %v1021 = vld [vmem:[#allocation2 + $0x60] sm:$0xff]
      %v1022 = vld [vmem:[#allocation2 + $0x68] sm:$0xff]
      %v1023 = vld [vmem:[#allocation2 + $0x70] sm:$0xff]
      %v1024 = vld [vmem:[#allocation2 + $0x78] sm:$0xff]
      %v1025 = vld [vmem:[#allocation2 + $0x80] sm:$0xff]
      %v1026 = vld [vmem:[#allocation2 + $0x88] sm:$0xff]
      %v1027 = vld [vmem:[#allocation2 + $0x90] sm:$0xff]
      %v1028 = vld [vmem:[#allocation2 + $0x98] sm:$0xff]
      %v1029 = vld [vmem:[#allocation2 + $0xa0] sm:$0xff]
      %v1030 = vld [vmem:[#allocation2 + $0xa8] sm:$0xff]
      %v1031 = vld [vmem:[#allocation2 + $0xb0] sm:$0xff]
      %v1032 = vld [vmem:[#allocation2 + $0xb8] sm:$0xff]
      %v1033 = vld [vmem:[#allocation2 + $0xc0] sm:$0xff]
      %v1034 = vld [vmem:[#allocation2 + $0xc8] sm:$0xff]
      %v1035 = vld [vmem:[#allocation2 + $0xd0] sm:$0xff]
      %v1036 = vld [vmem:[#allocation2 + $0xd8] sm:$0xff]
      %v1037 = vld [vmem:[#allocation2 + $0xe0] sm:$0xff]
      %v1038 = vld [vmem:[#allocation2 + $0xe8] sm:$0xff]
      %v1039 = vld [vmem:[#allocation2 + $0xf0] sm:$0xff]
      %v1040 = vld [vmem:[#allocation2 + $0xf8] sm:$0xff]
      %v1041 = vadd.f32 %v1009, %v977
      %v1042 = vadd.f32 %v1010, %v978
      %v1043 = vadd.f32 %v1011, %v979
      %v1044 = vadd.f32 %v1012, %v980
      %v1045 = vadd.f32 %v1013, %v981
      %v1046 = vadd.f32 %v1014, %v982
      %v1047 = vadd.f32 %v1015, %v983
      %v1048 = vadd.f32 %v1016, %v984
      %v1049 = vadd.f32 %v1017, %v985
      %v1050 = vadd.f32 %v1018, %v986
      %v1051 = vadd.f32 %v1019, %v987
      %v1052 = vadd.f32 %v1020, %v988
      %v1053 = vadd.f32 %v1021, %v989
      %v1054 = vadd.f32 %v1022, %v990
      %v1055 = vadd.f32 %v1023, %v991
      %v1056 = vadd.f32 %v1024, %v992
      %v1057 = vadd.f32 %v1025, %v993
      %v1058 = vadd.f32 %v1026, %v994
      %v1059 = vadd.f32 %v1027, %v995
      %v1060 = vadd.f32 %v1028, %v996
      %v1061 = vadd.f32 %v1029, %v997
      %v1062 = vadd.f32 %v1030, %v998
      %v1063 = vadd.f32 %v1031, %v999
      %v1064 = vadd.f32 %v1032, %v1000
      %v1065 = vadd.f32 %v1033, %v1001
      %v1066 = vadd.f32 %v1034, %v1002
      %v1067 = vadd.f32 %v1035, %v1003
      %v1068 = vadd.f32 %v1036, %v1004
      %v1069 = vadd.f32 %v1037, %v1005
      %v1070 = vadd.f32 %v1038, %v1006
      %v1071 = vadd.f32 %v1039, %v1007
      %v1072 = vadd.f32 %v1040, %v1008
      %1073 = vst [vmem:[#allocation2] sm:$0xff] %v1041
      %1074 = vst [vmem:[#allocation2 + $0x8] sm:$0xff] %v1042
      %1075 = vst [vmem:[#allocation2 + $0x10] sm:$0xff] %v1043
      %1076 = vst [vmem:[#allocation2 + $0x18] sm:$0xff] %v1044
      %1077 = vst [vmem:[#allocation2 + $0x20] sm:$0xff] %v1045
      %1078 = vst [vmem:[#allocation2 + $0x28] sm:$0xff] %v1046
      %1079 = vst [vmem:[#allocation2 + $0x30] sm:$0xff] %v1047
      %1080 = vst [vmem:[#allocation2 + $0x38] sm:$0xff] %v1048
      %1081 = vst [vmem:[#allocation2 + $0x40] sm:$0xff] %v1049
      %1082 = vst [vmem:[#allocation2 + $0x48] sm:$0xff] %v1050
      %1083 = vst [vmem:[#allocation2 + $0x50] sm:$0xff] %v1051
      %1084 = vst [vmem:[#allocation2 + $0x58] sm:$0xff] %v1052
      %1085 = vst [vmem:[#allocation2 + $0x60] sm:$0xff] %v1053
      %1086 = vst [vmem:[#allocation2 + $0x68] sm:$0xff] %v1054
      %1087 = vst [vmem:[#allocation2 + $0x70] sm:$0xff] %v1055
      %1088 = vst [vmem:[#allocation2 + $0x78] sm:$0xff] %v1056
      %1089 = vst [vmem:[#allocation2 + $0x80] sm:$0xff] %v1057
      %1090 = vst [vmem:[#allocation2 + $0x88] sm:$0xff] %v1058
      %1091 = vst [vmem:[#allocation2 + $0x90] sm:$0xff] %v1059
      %1092 = vst [vmem:[#allocation2 + $0x98] sm:$0xff] %v1060
      %1093 = vst [vmem:[#allocation2 + $0xa0] sm:$0xff] %v1061
      %1094 = vst [vmem:[#allocation2 + $0xa8] sm:$0xff] %v1062
      %1095 = vst [vmem:[#allocation2 + $0xb0] sm:$0xff] %v1063
      %1096 = vst [vmem:[#allocation2 + $0xb8] sm:$0xff] %v1064
      %1097 = vst [vmem:[#allocation2 + $0xc0] sm:$0xff] %v1065
      %1098 = vst [vmem:[#allocation2 + $0xc8] sm:$0xff] %v1066
      %1099 = vst [vmem:[#allocation2 + $0xd0] sm:$0xff] %v1067
      %1100 = vst [vmem:[#allocation2 + $0xd8] sm:$0xff] %v1068
      %1101 = vst [vmem:[#allocation2 + $0xe0] sm:$0xff] %v1069
      %1102 = vst [vmem:[#allocation2 + $0xe8] sm:$0xff] %v1070
      %1103 = vst [vmem:[#allocation2 + $0xf0] sm:$0xff] %v1071
      %1104 = vst [vmem:[#allocation2 + $0xf8] sm:$0xff] %v1072
      %s1105 = scalar_lea.vmem %s172, 48
      %v1106 = vld [vmem:[%s1105] sm:$0xff]
      %v1107 = vld [vmem:[%s1105 + $0x8] sm:$0xff]
      %v1108 = vld [vmem:[%s1105 + $0x18] sm:$0xff]
      %v1109 = vld [vmem:[%s1105 + $0x20] sm:$0xff]
      %v1110 = vld [vmem:[%s1105 + $0x30] sm:$0xff]
      %v1111 = vld [vmem:[%s1105 + $0x38] sm:$0xff]
      %v1112 = vld [vmem:[%s1105 + $0x48] sm:$0xff]
      %v1113 = vld [vmem:[%s1105 + $0x50] sm:$0xff]
      %v1114 = vld [vmem:[%s1105 + $0x60] sm:$0xff]
      %v1115 = vld [vmem:[%s1105 + $0x68] sm:$0xff]
      %v1116 = vld [vmem:[%s1105 + $0x78] sm:$0xff]
      %v1117 = vld [vmem:[%s1105 + $0x80] sm:$0xff]
      %v1118 = vld [vmem:[%s1105 + $0x90] sm:$0xff]
      %v1119 = vld [vmem:[%s1105 + $0x98] sm:$0xff]
      %v1120 = vld [vmem:[%s1105 + $0xa8] sm:$0xff]
      %v1121 = vld [vmem:[%s1105 + $0xb0] sm:$0xff]
      %v1122 = vld [vmem:[%s1105 + $0xc0] sm:$0xff]
      %v1123 = vld [vmem:[%s1105 + $0xc8] sm:$0xff]
      %v1124 = vld [vmem:[%s1105 + $0xd8] sm:$0xff]
      %v1125 = vld [vmem:[%s1105 + $0xe0] sm:$0xff]
      %v1126 = vld [vmem:[%s1105 + $0xf0] sm:$0xff]
      %v1127 = vld [vmem:[%s1105 + $0xf8] sm:$0xff]
      %v1128 = vld [vmem:[%s1105 + $0x108] sm:$0xff]
      %v1129 = vld [vmem:[%s1105 + $0x110] sm:$0xff]
      %v1130 = vld [vmem:[%s1105 + $0x120] sm:$0xff]
      %v1131 = vld [vmem:[%s1105 + $0x128] sm:$0xff]
      %v1132 = vld [vmem:[%s1105 + $0x138] sm:$0xff]
      %v1133 = vld [vmem:[%s1105 + $0x140] sm:$0xff]
      %v1134 = vld [vmem:[%s1105 + $0x150] sm:$0xff]
      %v1135 = vld [vmem:[%s1105 + $0x158] sm:$0xff]
      %v1136 = vld [vmem:[%s1105 + $0x168] sm:$0xff]
      %v1137 = vld [vmem:[%s1105 + $0x170] sm:$0xff]
      %v1138 = vlaneseq
      %v1139 = vshrl.u32 %v1138, 7
      %v1140 = vsub.s32 6, %v1139
      %v1141 = vrot.slane %v182, %v1140
      %v1142 = vmul.f32 %v1106, %v1141
      %v1143 = vmul.f32 %v1107, %v1141
      %v1144 = vmul.f32 %v1108, %v1141
      %v1145 = vmul.f32 %v1109, %v1141
      %v1146 = vmul.f32 %v1110, %v1141
      %v1147 = vmul.f32 %v1111, %v1141
      %v1148 = vmul.f32 %v1112, %v1141
      %v1149 = vmul.f32 %v1113, %v1141
      %v1150 = vmul.f32 %v1114, %v1141
      %v1151 = vmul.f32 %v1115, %v1141
      %v1152 = vmul.f32 %v1116, %v1141
      %v1153 = vmul.f32 %v1117, %v1141
      %v1154 = vmul.f32 %v1118, %v1141
      %v1155 = vmul.f32 %v1119, %v1141
      %v1156 = vmul.f32 %v1120, %v1141
      %v1157 = vmul.f32 %v1121, %v1141
      %v1158 = vmul.f32 %v1122, %v1141
      %v1159 = vmul.f32 %v1123, %v1141
      %v1160 = vmul.f32 %v1124, %v1141
      %v1161 = vmul.f32 %v1125, %v1141
      %v1162 = vmul.f32 %v1126, %v1141
      %v1163 = vmul.f32 %v1127, %v1141
      %v1164 = vmul.f32 %v1128, %v1141
      %v1165 = vmul.f32 %v1129, %v1141
      %v1166 = vmul.f32 %v1130, %v1141
      %v1167 = vmul.f32 %v1131, %v1141
      %v1168 = vmul.f32 %v1132, %v1141
      %v1169 = vmul.f32 %v1133, %v1141
      %v1170 = vmul.f32 %v1134, %v1141
      %v1171 = vmul.f32 %v1135, %v1141
      %v1172 = vmul.f32 %v1136, %v1141
      %v1173 = vmul.f32 %v1137, %v1141
      %v1174 = vld [vmem:[#allocation2] sm:$0xff]
      %v1175 = vld [vmem:[#allocation2 + $0x8] sm:$0xff]
      %v1176 = vld [vmem:[#allocation2 + $0x10] sm:$0xff]
      %v1177 = vld [vmem:[#allocation2 + $0x18] sm:$0xff]
      %v1178 = vld [vmem:[#allocation2 + $0x20] sm:$0xff]
      %v1179 = vld [vmem:[#allocation2 + $0x28] sm:$0xff]
      %v1180 = vld [vmem:[#allocation2 + $0x30] sm:$0xff]
      %v1181 = vld [vmem:[#allocation2 + $0x38] sm:$0xff]
      %v1182 = vld [vmem:[#allocation2 + $0x40] sm:$0xff]
      %v1183 = vld [vmem:[#allocation2 + $0x48] sm:$0xff]
      %v1184 = vld [vmem:[#allocation2 + $0x50] sm:$0xff]
      %v1185 = vld [vmem:[#allocation2 + $0x58] sm:$0xff]
      %v1186 = vld [vmem:[#allocation2 + $0x60] sm:$0xff]
      %v1187 = vld [vmem:[#allocation2 + $0x68] sm:$0xff]
      %v1188 = vld [vmem:[#allocation2 + $0x70] sm:$0xff]
      %v1189 = vld [vmem:[#allocation2 + $0x78] sm:$0xff]
      %v1190 = vld [vmem:[#allocation2 + $0x80] sm:$0xff]
      %v1191 = vld [vmem:[#allocation2 + $0x88] sm:$0xff]
      %v1192 = vld [vmem:[#allocation2 + $0x90] sm:$0xff]
      %v1193 = vld [vmem:[#allocation2 + $0x98] sm:$0xff]
      %v1194 = vld [vmem:[#allocation2 + $0xa0] sm:$0xff]
      %v1195 = vld [vmem:[#allocation2 + $0xa8] sm:$0xff]
      %v1196 = vld [vmem:[#allocation2 + $0xb0] sm:$0xff]
      %v1197 = vld [vmem:[#allocation2 + $0xb8] sm:$0xff]
      %v1198 = vld [vmem:[#allocation2 + $0xc0] sm:$0xff]
      %v1199 = vld [vmem:[#allocation2 + $0xc8] sm:$0xff]
      %v1200 = vld [vmem:[#allocation2 + $0xd0] sm:$0xff]
      %v1201 = vld [vmem:[#allocation2 + $0xd8] sm:$0xff]
      %v1202 = vld [vmem:[#allocation2 + $0xe0] sm:$0xff]
      %v1203 = vld [vmem:[#allocation2 + $0xe8] sm:$0xff]
      %v1204 = vld [vmem:[#allocation2 + $0xf0] sm:$0xff]
      %v1205 = vld [vmem:[#allocation2 + $0xf8] sm:$0xff]
      %v1206 = vadd.f32 %v1174, %v1142
      %v1207 = vadd.f32 %v1175, %v1143
      %v1208 = vadd.f32 %v1176, %v1144
      %v1209 = vadd.f32 %v1177, %v1145
      %v1210 = vadd.f32 %v1178, %v1146
      %v1211 = vadd.f32 %v1179, %v1147
      %v1212 = vadd.f32 %v1180, %v1148
      %v1213 = vadd.f32 %v1181, %v1149
      %v1214 = vadd.f32 %v1182, %v1150
      %v1215 = vadd.f32 %v1183, %v1151
      %v1216 = vadd.f32 %v1184, %v1152
      %v1217 = vadd.f32 %v1185, %v1153
      %v1218 = vadd.f32 %v1186, %v1154
      %v1219 = vadd.f32 %v1187, %v1155
      %v1220 = vadd.f32 %v1188, %v1156
      %v1221 = vadd.f32 %v1189, %v1157
      %v1222 = vadd.f32 %v1190, %v1158
      %v1223 = vadd.f32 %v1191, %v1159
      %v1224 = vadd.f32 %v1192, %v1160
      %v1225 = vadd.f32 %v1193, %v1161
      %v1226 = vadd.f32 %v1194, %v1162
      %v1227 = vadd.f32 %v1195, %v1163
      %v1228 = vadd.f32 %v1196, %v1164
      %v1229 = vadd.f32 %v1197, %v1165
      %v1230 = vadd.f32 %v1198, %v1166
      %v1231 = vadd.f32 %v1199, %v1167
      %v1232 = vadd.f32 %v1200, %v1168
      %v1233 = vadd.f32 %v1201, %v1169
      %v1234 = vadd.f32 %v1202, %v1170
      %v1235 = vadd.f32 %v1203, %v1171
      %v1236 = vadd.f32 %v1204, %v1172
      %v1237 = vadd.f32 %v1205, %v1173
      %1238 = vst [vmem:[#allocation2] sm:$0xff] %v1206
      %1239 = vst [vmem:[#allocation2 + $0x8] sm:$0xff] %v1207
      %1240 = vst [vmem:[#allocation2 + $0x10] sm:$0xff] %v1208
      %1241 = vst [vmem:[#allocation2 + $0x18] sm:$0xff] %v1209
      %1242 = vst [vmem:[#allocation2 + $0x20] sm:$0xff] %v1210
      %1243 = vst [vmem:[#allocation2 + $0x28] sm:$0xff] %v1211
      %1244 = vst [vmem:[#allocation2 + $0x30] sm:$0xff] %v1212
      %1245 = vst [vmem:[#allocation2 + $0x38] sm:$0xff] %v1213
      %1246 = vst [vmem:[#allocation2 + $0x40] sm:$0xff] %v1214
      %1247 = vst [vmem:[#allocation2 + $0x48] sm:$0xff] %v1215
      %1248 = vst [vmem:[#allocation2 + $0x50] sm:$0xff] %v1216
      %1249 = vst [vmem:[#allocation2 + $0x58] sm:$0xff] %v1217
      %1250 = vst [vmem:[#allocation2 + $0x60] sm:$0xff] %v1218
      %1251 = vst [vmem:[#allocation2 + $0x68] sm:$0xff] %v1219
      %1252 = vst [vmem:[#allocation2 + $0x70] sm:$0xff] %v1220
      %1253 = vst [vmem:[#allocation2 + $0x78] sm:$0xff] %v1221
      %1254 = vst [vmem:[#allocation2 + $0x80] sm:$0xff] %v1222
      %1255 = vst [vmem:[#allocation2 + $0x88] sm:$0xff] %v1223
      %1256 = vst [vmem:[#allocation2 + $0x90] sm:$0xff] %v1224
      %1257 = vst [vmem:[#allocation2 + $0x98] sm:$0xff] %v1225
      %1258 = vst [vmem:[#allocation2 + $0xa0] sm:$0xff] %v1226
      %1259 = vst [vmem:[#allocation2 + $0xa8] sm:$0xff] %v1227
      %1260 = vst [vmem:[#allocation2 + $0xb0] sm:$0xff] %v1228
      %1261 = vst [vmem:[#allocation2 + $0xb8] sm:$0xff] %v1229
      %1262 = vst [vmem:[#allocation2 + $0xc0] sm:$0xff] %v1230
      %1263 = vst [vmem:[#allocation2 + $0xc8] sm:$0xff] %v1231
      %1264 = vst [vmem:[#allocation2 + $0xd0] sm:$0xff] %v1232
      %1265 = vst [vmem:[#allocation2 + $0xd8] sm:$0xff] %v1233
      %1266 = vst [vmem:[#allocation2 + $0xe0] sm:$0xff] %v1234
      %1267 = vst [vmem:[#allocation2 + $0xe8] sm:$0xff] %v1235
      %1268 = vst [vmem:[#allocation2 + $0xf0] sm:$0xff] %v1236
      %1269 = vst [vmem:[#allocation2 + $0xf8] sm:$0xff] %v1237
      %v1270 = vld [vmem:[%s1105 + $0x1] sm:$0xff]
      %v1271 = vld [vmem:[%s1105 + $0x9] sm:$0xff]
      %v1272 = vld [vmem:[%s1105 + $0x19] sm:$0xff]
      %v1273 = vld [vmem:[%s1105 + $0x21] sm:$0xff]
      %v1274 = vld [vmem:[%s1105 + $0x31] sm:$0xff]
      %v1275 = vld [vmem:[%s1105 + $0x39] sm:$0xff]
      %v1276 = vld [vmem:[%s1105 + $0x49] sm:$0xff]
      %v1277 = vld [vmem:[%s1105 + $0x51] sm:$0xff]
      %v1278 = vld [vmem:[%s1105 + $0x61] sm:$0xff]
      %v1279 = vld [vmem:[%s1105 + $0x69] sm:$0xff]
      %v1280 = vld [vmem:[%s1105 + $0x79] sm:$0xff]
      %v1281 = vld [vmem:[%s1105 + $0x81] sm:$0xff]
      %v1282 = vld [vmem:[%s1105 + $0x91] sm:$0xff]
      %v1283 = vld [vmem:[%s1105 + $0x99] sm:$0xff]
      %v1284 = vld [vmem:[%s1105 + $0xa9] sm:$0xff]
      %v1285 = vld [vmem:[%s1105 + $0xb1] sm:$0xff]
      %v1286 = vld [vmem:[%s1105 + $0xc1] sm:$0xff]
      %v1287 = vld [vmem:[%s1105 + $0xc9] sm:$0xff]
      %v1288 = vld [vmem:[%s1105 + $0xd9] sm:$0xff]
      %v1289 = vld [vmem:[%s1105 + $0xe1] sm:$0xff]
      %v1290 = vld [vmem:[%s1105 + $0xf1] sm:$0xff]
      %v1291 = vld [vmem:[%s1105 + $0xf9] sm:$0xff]
      %v1292 = vld [vmem:[%s1105 + $0x109] sm:$0xff]
      %v1293 = vld [vmem:[%s1105 + $0x111] sm:$0xff]
      %v1294 = vld [vmem:[%s1105 + $0x121] sm:$0xff]
      %v1295 = vld [vmem:[%s1105 + $0x129] sm:$0xff]
      %v1296 = vld [vmem:[%s1105 + $0x139] sm:$0xff]
      %v1297 = vld [vmem:[%s1105 + $0x141] sm:$0xff]
      %v1298 = vld [vmem:[%s1105 + $0x151] sm:$0xff]
      %v1299 = vld [vmem:[%s1105 + $0x159] sm:$0xff]
      %v1300 = vld [vmem:[%s1105 + $0x169] sm:$0xff]
      %v1301 = vld [vmem:[%s1105 + $0x171] sm:$0xff]
      %v1302 = vlaneseq
      %v1303 = vshrl.u32 %v1302, 7
      %v1304 = vsub.s32 7, %v1303
      %v1305 = vrot.slane %v182, %v1304
      %v1306 = vmul.f32 %v1270, %v1305
      %v1307 = vmul.f32 %v1271, %v1305
      %v1308 = vmul.f32 %v1272, %v1305
      %v1309 = vmul.f32 %v1273, %v1305
      %v1310 = vmul.f32 %v1274, %v1305
      %v1311 = vmul.f32 %v1275, %v1305
      %v1312 = vmul.f32 %v1276, %v1305
      %v1313 = vmul.f32 %v1277, %v1305
      %v1314 = vmul.f32 %v1278, %v1305
      %v1315 = vmul.f32 %v1279, %v1305
      %v1316 = vmul.f32 %v1280, %v1305
      %v1317 = vmul.f32 %v1281, %v1305
      %v1318 = vmul.f32 %v1282, %v1305
      %v1319 = vmul.f32 %v1283, %v1305
      %v1320 = vmul.f32 %v1284, %v1305
      %v1321 = vmul.f32 %v1285, %v1305
      %v1322 = vmul.f32 %v1286, %v1305
      %v1323 = vmul.f32 %v1287, %v1305
      %v1324 = vmul.f32 %v1288, %v1305
      %v1325 = vmul.f32 %v1289, %v1305
      %v1326 = vmul.f32 %v1290, %v1305
      %v1327 = vmul.f32 %v1291, %v1305
      %v1328 = vmul.f32 %v1292, %v1305
      %v1329 = vmul.f32 %v1293, %v1305
      %v1330 = vmul.f32 %v1294, %v1305
      %v1331 = vmul.f32 %v1295, %v1305
      %v1332 = vmul.f32 %v1296, %v1305
      %v1333 = vmul.f32 %v1297, %v1305
      %v1334 = vmul.f32 %v1298, %v1305
      %v1335 = vmul.f32 %v1299, %v1305
      %v1336 = vmul.f32 %v1300, %v1305
      %v1337 = vmul.f32 %v1301, %v1305
      %v1338 = vld [vmem:[#allocation2] sm:$0xff]
      %v1339 = vld [vmem:[#allocation2 + $0x8] sm:$0xff]
      %v1340 = vld [vmem:[#allocation2 + $0x10] sm:$0xff]
      %v1341 = vld [vmem:[#allocation2 + $0x18] sm:$0xff]
      %v1342 = vld [vmem:[#allocation2 + $0x20] sm:$0xff]
      %v1343 = vld [vmem:[#allocation2 + $0x28] sm:$0xff]
      %v1344 = vld [vmem:[#allocation2 + $0x30] sm:$0xff]
      %v1345 = vld [vmem:[#allocation2 + $0x38] sm:$0xff]
      %v1346 = vld [vmem:[#allocation2 + $0x40] sm:$0xff]
      %v1347 = vld [vmem:[#allocation2 + $0x48] sm:$0xff]
      %v1348 = vld [vmem:[#allocation2 + $0x50] sm:$0xff]
      %v1349 = vld [vmem:[#allocation2 + $0x58] sm:$0xff]
      %v1350 = vld [vmem:[#allocation2 + $0x60] sm:$0xff]
      %v1351 = vld [vmem:[#allocation2 + $0x68] sm:$0xff]
      %v1352 = vld [vmem:[#allocation2 + $0x70] sm:$0xff]
      %v1353 = vld [vmem:[#allocation2 + $0x78] sm:$0xff]
      %v1354 = vld [vmem:[#allocation2 + $0x80] sm:$0xff]
      %v1355 = vld [vmem:[#allocation2 + $0x88] sm:$0xff]
      %v1356 = vld [vmem:[#allocation2 + $0x90] sm:$0xff]
      %v1357 = vld [vmem:[#allocation2 + $0x98] sm:$0xff]
      %v1358 = vld [vmem:[#allocation2 + $0xa0] sm:$0xff]
      %v1359 = vld [vmem:[#allocation2 + $0xa8] sm:$0xff]
      %v1360 = vld [vmem:[#allocation2 + $0xb0] sm:$0xff]
      %v1361 = vld [vmem:[#allocation2 + $0xb8] sm:$0xff]
      %v1362 = vld [vmem:[#allocation2 + $0xc0] sm:$0xff]
      %v1363 = vld [vmem:[#allocation2 + $0xc8] sm:$0xff]
      %v1364 = vld [vmem:[#allocation2 + $0xd0] sm:$0xff]
      %v1365 = vld [vmem:[#allocation2 + $0xd8] sm:$0xff]
      %v1366 = vld [vmem:[#allocation2 + $0xe0] sm:$0xff]
      %v1367 = vld [vmem:[#allocation2 + $0xe8] sm:$0xff]
      %v1368 = vld [vmem:[#allocation2 + $0xf0] sm:$0xff]
      %v1369 = vld [vmem:[#allocation2 + $0xf8] sm:$0xff]
      %v1370 = vadd.f32 %v1338, %v1306
      %v1371 = vadd.f32 %v1339, %v1307
      %v1372 = vadd.f32 %v1340, %v1308
      %v1373 = vadd.f32 %v1341, %v1309
      %v1374 = vadd.f32 %v1342, %v1310
      %v1375 = vadd.f32 %v1343, %v1311
      %v1376 = vadd.f32 %v1344, %v1312
      %v1377 = vadd.f32 %v1345, %v1313
      %v1378 = vadd.f32 %v1346, %v1314
      %v1379 = vadd.f32 %v1347, %v1315
      %v1380 = vadd.f32 %v1348, %v1316
      %v1381 = vadd.f32 %v1349, %v1317
      %v1382 = vadd.f32 %v1350, %v1318
      %v1383 = vadd.f32 %v1351, %v1319
      %v1384 = vadd.f32 %v1352, %v1320
      %v1385 = vadd.f32 %v1353, %v1321
      %v1386 = vadd.f32 %v1354, %v1322
      %v1387 = vadd.f32 %v1355, %v1323
      %v1388 = vadd.f32 %v1356, %v1324
      %v1389 = vadd.f32 %v1357, %v1325
      %v1390 = vadd.f32 %v1358, %v1326
      %v1391 = vadd.f32 %v1359, %v1327
      %v1392 = vadd.f32 %v1360, %v1328
      %v1393 = vadd.f32 %v1361, %v1329
      %v1394 = vadd.f32 %v1362, %v1330
      %v1395 = vadd.f32 %v1363, %v1331
      %v1396 = vadd.f32 %v1364, %v1332
      %v1397 = vadd.f32 %v1365, %v1333
      %v1398 = vadd.f32 %v1366, %v1334
      %v1399 = vadd.f32 %v1367, %v1335
      %v1400 = vadd.f32 %v1368, %v1336
      %v1401 = vadd.f32 %v1369, %v1337
      %1402 = vst [vmem:[#allocation2] sm:$0xff] %v1370
      %1403 = vst [vmem:[#allocation2 + $0x8] sm:$0xff] %v1371
      %1404 = vst [vmem:[#allocation2 + $0x10] sm:$0xff] %v1372
      %1405 = vst [vmem:[#allocation2 + $0x18] sm:$0xff] %v1373
      %1406 = vst [vmem:[#allocation2 + $0x20] sm:$0xff] %v1374
      %1407 = vst [vmem:[#allocation2 + $0x28] sm:$0xff] %v1375
      %1408 = vst [vmem:[#allocation2 + $0x30] sm:$0xff] %v1376
      %1409 = vst [vmem:[#allocation2 + $0x38] sm:$0xff] %v1377
      %1410 = vst [vmem:[#allocation2 + $0x40] sm:$0xff] %v1378
      %1411 = vst [vmem:[#allocation2 + $0x48] sm:$0xff] %v1379
      %1412 = vst [vmem:[#allocation2 + $0x50] sm:$0xff] %v1380
      %1413 = vst [vmem:[#allocation2 + $0x58] sm:$0xff] %v1381
      %1414 = vst [vmem:[#allocation2 + $0x60] sm:$0xff] %v1382
      %1415 = vst [vmem:[#allocation2 + $0x68] sm:$0xff] %v1383
      %1416 = vst [vmem:[#allocation2 + $0x70] sm:$0xff] %v1384
      %1417 = vst [vmem:[#allocation2 + $0x78] sm:$0xff] %v1385
      %1418 = vst [vmem:[#allocation2 + $0x80] sm:$0xff] %v1386
      %1419 = vst [vmem:[#allocation2 + $0x88] sm:$0xff] %v1387
      %1420 = vst [vmem:[#allocation2 + $0x90] sm:$0xff] %v1388
      %1421 = vst [vmem:[#allocation2 + $0x98] sm:$0xff] %v1389
      %1422 = vst [vmem:[#allocation2 + $0xa0] sm:$0xff] %v1390
      %1423 = vst [vmem:[#allocation2 + $0xa8] sm:$0xff] %v1391
      %1424 = vst [vmem:[#allocation2 + $0xb0] sm:$0xff] %v1392
      %1425 = vst [vmem:[#allocation2 + $0xb8] sm:$0xff] %v1393
      %1426 = vst [vmem:[#allocation2 + $0xc0] sm:$0xff] %v1394
      %1427 = vst [vmem:[#allocation2 + $0xc8] sm:$0xff] %v1395
      %1428 = vst [vmem:[#allocation2 + $0xd0] sm:$0xff] %v1396
      %1429 = vst [vmem:[#allocation2 + $0xd8] sm:$0xff] %v1397
      %1430 = vst [vmem:[#allocation2 + $0xe0] sm:$0xff] %v1398
      %1431 = vst [vmem:[#allocation2 + $0xe8] sm:$0xff] %v1399
      %1432 = vst [vmem:[#allocation2 + $0xf0] sm:$0xff] %v1400
      %1433 = vst [vmem:[#allocation2 + $0xf8] sm:$0xff] %v1401
      %v1434 = vld [vmem:[%s1105 + $0x2] sm:$0xff]
      %v1435 = vld [vmem:[%s1105 + $0xa] sm:$0xff]
      %v1436 = vld [vmem:[%s1105 + $0x1a] sm:$0xff]
      %v1437 = vld [vmem:[%s1105 + $0x22] sm:$0xff]
      %v1438 = vld [vmem:[%s1105 + $0x32] sm:$0xff]
      %v1439 = vld [vmem:[%s1105 + $0x3a] sm:$0xff]
      %v1440 = vld [vmem:[%s1105 + $0x4a] sm:$0xff]
      %v1441 = vld [vmem:[%s1105 + $0x52] sm:$0xff]
      %v1442 = vld [vmem:[%s1105 + $0x62] sm:$0xff]
      %v1443 = vld [vmem:[%s1105 + $0x6a] sm:$0xff]
      %v1444 = vld [vmem:[%s1105 + $0x7a] sm:$0xff]
      %v1445 = vld [vmem:[%s1105 + $0x82] sm:$0xff]
      %v1446 = vld [vmem:[%s1105 + $0x92] sm:$0xff]
      %v1447 = vld [vmem:[%s1105 + $0x9a] sm:$0xff]
      %v1448 = vld [vmem:[%s1105 + $0xaa] sm:$0xff]
      %v1449 = vld [vmem:[%s1105 + $0xb2] sm:$0xff]
      %v1450 = vld [vmem:[%s1105 + $0xc2] sm:$0xff]
      %v1451 = vld [vmem:[%s1105 + $0xca] sm:$0xff]
      %v1452 = vld [vmem:[%s1105 + $0xda] sm:$0xff]
      %v1453 = vld [vmem:[%s1105 + $0xe2] sm:$0xff]
      %v1454 = vld [vmem:[%s1105 + $0xf2] sm:$0xff]
      %v1455 = vld [vmem:[%s1105 + $0xfa] sm:$0xff]
      %v1456 = vld [vmem:[%s1105 + $0x10a] sm:$0xff]
      %v1457 = vld [vmem:[%s1105 + $0x112] sm:$0xff]
      %v1458 = vld [vmem:[%s1105 + $0x122] sm:$0xff]
      %v1459 = vld [vmem:[%s1105 + $0x12a] sm:$0xff]
      %v1460 = vld [vmem:[%s1105 + $0x13a] sm:$0xff]
      %v1461 = vld [vmem:[%s1105 + $0x142] sm:$0xff]
      %v1462 = vld [vmem:[%s1105 + $0x152] sm:$0xff]
      %v1463 = vld [vmem:[%s1105 + $0x15a] sm:$0xff]
      %v1464 = vld [vmem:[%s1105 + $0x16a] sm:$0xff]
      %v1465 = vld [vmem:[%s1105 + $0x172] sm:$0xff]
      %v1466 = vlaneseq
      %v1467 = vshrl.u32 %v1466, 7
      %v1468 = vsub.s32 0, %v1467
      %v1469 = vrot.slane %v183, %v1468
      %v1470 = vmul.f32 %v1434, %v1469
      %v1471 = vmul.f32 %v1435, %v1469
      %v1472 = vmul.f32 %v1436, %v1469
      %v1473 = vmul.f32 %v1437, %v1469
      %v1474 = vmul.f32 %v1438, %v1469
      %v1475 = vmul.f32 %v1439, %v1469
      %v1476 = vmul.f32 %v1440, %v1469
      %v1477 = vmul.f32 %v1441, %v1469
      %v1478 = vmul.f32 %v1442, %v1469
      %v1479 = vmul.f32 %v1443, %v1469
      %v1480 = vmul.f32 %v1444, %v1469
      %v1481 = vmul.f32 %v1445, %v1469
      %v1482 = vmul.f32 %v1446, %v1469
      %v1483 = vmul.f32 %v1447, %v1469
      %v1484 = vmul.f32 %v1448, %v1469
      %v1485 = vmul.f32 %v1449, %v1469
      %v1486 = vmul.f32 %v1450, %v1469
      %v1487 = vmul.f32 %v1451, %v1469
      %v1488 = vmul.f32 %v1452, %v1469
      %v1489 = vmul.f32 %v1453, %v1469
      %v1490 = vmul.f32 %v1454, %v1469
      %v1491 = vmul.f32 %v1455, %v1469
      %v1492 = vmul.f32 %v1456, %v1469
      %v1493 = vmul.f32 %v1457, %v1469
      %v1494 = vmul.f32 %v1458, %v1469
      %v1495 = vmul.f32 %v1459, %v1469
      %v1496 = vmul.f32 %v1460, %v1469
      %v1497 = vmul.f32 %v1461, %v1469
      %v1498 = vmul.f32 %v1462, %v1469
      %v1499 = vmul.f32 %v1463, %v1469
      %v1500 = vmul.f32 %v1464, %v1469
      %v1501 = vmul.f32 %v1465, %v1469
      %v1502 = vld [vmem:[#allocation2] sm:$0xff]
      %v1503 = vld [vmem:[#allocation2 + $0x8] sm:$0xff]
      %v1504 = vld [vmem:[#allocation2 + $0x10] sm:$0xff]
      %v1505 = vld [vmem:[#allocation2 + $0x18] sm:$0xff]
      %v1506 = vld [vmem:[#allocation2 + $0x20] sm:$0xff]
      %v1507 = vld [vmem:[#allocation2 + $0x28] sm:$0xff]
      %v1508 = vld [vmem:[#allocation2 + $0x30] sm:$0xff]
      %v1509 = vld [vmem:[#allocation2 + $0x38] sm:$0xff]
      %v1510 = vld [vmem:[#allocation2 + $0x40] sm:$0xff]
      %v1511 = vld [vmem:[#allocation2 + $0x48] sm:$0xff]
      %v1512 = vld [vmem:[#allocation2 + $0x50] sm:$0xff]
      %v1513 = vld [vmem:[#allocation2 + $0x58] sm:$0xff]
      %v1514 = vld [vmem:[#allocation2 + $0x60] sm:$0xff]
      %v1515 = vld [vmem:[#allocation2 + $0x68] sm:$0xff]
      %v1516 = vld [vmem:[#allocation2 + $0x70] sm:$0xff]
      %v1517 = vld [vmem:[#allocation2 + $0x78] sm:$0xff]
      %v1518 = vld [vmem:[#allocation2 + $0x80] sm:$0xff]
      %v1519 = vld [vmem:[#allocation2 + $0x88] sm:$0xff]
      %v1520 = vld [vmem:[#allocation2 + $0x90] sm:$0xff]
      %v1521 = vld [vmem:[#allocation2 + $0x98] sm:$0xff]
      %v1522 = vld [vmem:[#allocation2 + $0xa0] sm:$0xff]
      %v1523 = vld [vmem:[#allocation2 + $0xa8] sm:$0xff]
      %v1524 = vld [vmem:[#allocation2 + $0xb0] sm:$0xff]
      %v1525 = vld [vmem:[#allocation2 + $0xb8] sm:$0xff]
      %v1526 = vld [vmem:[#allocation2 + $0xc0] sm:$0xff]
      %v1527 = vld [vmem:[#allocation2 + $0xc8] sm:$0xff]
      %v1528 = vld [vmem:[#allocation2 + $0xd0] sm:$0xff]
      %v1529 = vld [vmem:[#allocation2 + $0xd8] sm:$0xff]
      %v1530 = vld [vmem:[#allocation2 + $0xe0] sm:$0xff]
      %v1531 = vld [vmem:[#allocation2 + $0xe8] sm:$0xff]
      %v1532 = vld [vmem:[#allocation2 + $0xf0] sm:$0xff]
      %v1533 = vld [vmem:[#allocation2 + $0xf8] sm:$0xff]
      %v1534 = vadd.f32 %v1502, %v1470
      %v1535 = vadd.f32 %v1503, %v1471
      %v1536 = vadd.f32 %v1504, %v1472
      %v1537 = vadd.f32 %v1505, %v1473
      %v1538 = vadd.f32 %v1506, %v1474
      %v1539 = vadd.f32 %v1507, %v1475
      %v1540 = vadd.f32 %v1508, %v1476
      %v1541 = vadd.f32 %v1509, %v1477
      %v1542 = vadd.f32 %v1510, %v1478
      %v1543 = vadd.f32 %v1511, %v1479
      %v1544 = vadd.f32 %v1512, %v1480
      %v1545 = vadd.f32 %v1513, %v1481
      %v1546 = vadd.f32 %v1514, %v1482
      %v1547 = vadd.f32 %v1515, %v1483
      %v1548 = vadd.f32 %v1516, %v1484
      %v1549 = vadd.f32 %v1517, %v1485
      %v1550 = vadd.f32 %v1518, %v1486
      %v1551 = vadd.f32 %v1519, %v1487
      %v1552 = vadd.f32 %v1520, %v1488
      %v1553 = vadd.f32 %v1521, %v1489
      %v1554 = vadd.f32 %v1522, %v1490
      %v1555 = vadd.f32 %v1523, %v1491
      %v1556 = vadd.f32 %v1524, %v1492
      %v1557 = vadd.f32 %v1525, %v1493
      %v1558 = vadd.f32 %v1526, %v1494
      %v1559 = vadd.f32 %v1527, %v1495
      %v1560 = vadd.f32 %v1528, %v1496
      %v1561 = vadd.f32 %v1529, %v1497
      %v1562 = vadd.f32 %v1530, %v1498
      %v1563 = vadd.f32 %v1531, %v1499
      %v1564 = vadd.f32 %v1532, %v1500
      %v1565 = vadd.f32 %v1533, %v1501
      %1566 = vst [vmem:[#allocation2] sm:$0xff] %v1534
      %1567 = vst [vmem:[#allocation2 + $0x8] sm:$0xff] %v1535
      %1568 = vst [vmem:[#allocation2 + $0x10] sm:$0xff] %v1536
      %1569 = vst [vmem:[#allocation2 + $0x18] sm:$0xff] %v1537
      %1570 = vst [vmem:[#allocation2 + $0x20] sm:$0xff] %v1538
      %1571 = vst [vmem:[#allocation2 + $0x28] sm:$0xff] %v1539
      %1572 = vst [vmem:[#allocation2 + $0x30] sm:$0xff] %v1540
      %1573 = vst [vmem:[#allocation2 + $0x38] sm:$0xff] %v1541
      %1574 = vst [vmem:[#allocation2 + $0x40] sm:$0xff] %v1542
      %1575 = vst [vmem:[#allocation2 + $0x48] sm:$0xff] %v1543
      %1576 = vst [vmem:[#allocation2 + $0x50] sm:$0xff] %v1544
      %1577 = vst [vmem:[#allocation2 + $0x58] sm:$0xff] %v1545
      %1578 = vst [vmem:[#allocation2 + $0x60] sm:$0xff] %v1546
      %1579 = vst [vmem:[#allocation2 + $0x68] sm:$0xff] %v1547
      %1580 = vst [vmem:[#allocation2 + $0x70] sm:$0xff] %v1548
      %1581 = vst [vmem:[#allocation2 + $0x78] sm:$0xff] %v1549
      %1582 = vst [vmem:[#allocation2 + $0x80] sm:$0xff] %v1550
      %1583 = vst [vmem:[#allocation2 + $0x88] sm:$0xff] %v1551
      %1584 = vst [vmem:[#allocation2 + $0x90] sm:$0xff] %v1552
      %1585 = vst [vmem:[#allocation2 + $0x98] sm:$0xff] %v1553
      %1586 = vst [vmem:[#allocation2 + $0xa0] sm:$0xff] %v1554
      %1587 = vst [vmem:[#allocation2 + $0xa8] sm:$0xff] %v1555
      %1588 = vst [vmem:[#allocation2 + $0xb0] sm:$0xff] %v1556
      %1589 = vst [vmem:[#allocation2 + $0xb8] sm:$0xff] %v1557
      %1590 = vst [vmem:[#allocation2 + $0xc0] sm:$0xff] %v1558
      %1591 = vst [vmem:[#allocation2 + $0xc8] sm:$0xff] %v1559
      %1592 = vst [vmem:[#allocation2 + $0xd0] sm:$0xff] %v1560
      %1593 = vst [vmem:[#allocation2 + $0xd8] sm:$0xff] %v1561
      %1594 = vst [vmem:[#allocation2 + $0xe0] sm:$0xff] %v1562
      %1595 = vst [vmem:[#allocation2 + $0xe8] sm:$0xff] %v1563
      %1596 = vst [vmem:[#allocation2 + $0xf0] sm:$0xff] %v1564
      %1597 = vst [vmem:[#allocation2 + $0xf8] sm:$0xff] %v1565
      %v1598 = vld [vmem:[#allocation2] sm:$0xff]
      %v1599 = vld [vmem:[#allocation2 + $0x8] sm:$0xff]
      %v1600 = vld [vmem:[#allocation2 + $0x10] sm:$0xff]
      %v1601 = vld [vmem:[#allocation2 + $0x18] sm:$0xff]
      %v1602 = vld [vmem:[#allocation2 + $0x20] sm:$0xff]
      %v1603 = vld [vmem:[#allocation2 + $0x28] sm:$0xff]
      %v1604 = vld [vmem:[#allocation2 + $0x30] sm:$0xff]
      %v1605 = vld [vmem:[#allocation2 + $0x38] sm:$0xff]
      %v1606 = vld [vmem:[#allocation2 + $0x40] sm:$0xff]
      %v1607 = vld [vmem:[#allocation2 + $0x48] sm:$0xff]
      %v1608 = vld [vmem:[#allocation2 + $0x50] sm:$0xff]
      %v1609 = vld [vmem:[#allocation2 + $0x58] sm:$0xff]
      %v1610 = vld [vmem:[#allocation2 + $0x60] sm:$0xff]
      %v1611 = vld [vmem:[#allocation2 + $0x68] sm:$0xff]
      %v1612 = vld [vmem:[#allocation2 + $0x70] sm:$0xff]
      %v1613 = vld [vmem:[#allocation2 + $0x78] sm:$0xff]
      %v1614 = vld [vmem:[#allocation2 + $0x80] sm:$0xff]
      %v1615 = vld [vmem:[#allocation2 + $0x88] sm:$0xff]
      %v1616 = vld [vmem:[#allocation2 + $0x90] sm:$0xff]
      %v1617 = vld [vmem:[#allocation2 + $0x98] sm:$0xff]
      %v1618 = vld [vmem:[#allocation2 + $0xa0] sm:$0xff]
      %v1619 = vld [vmem:[#allocation2 + $0xa8] sm:$0xff]
      %v1620 = vld [vmem:[#allocation2 + $0xb0] sm:$0xff]
      %v1621 = vld [vmem:[#allocation2 + $0xb8] sm:$0xff]
      %v1622 = vld [vmem:[#allocation2 + $0xc0] sm:$0xff]
      %v1623 = vld [vmem:[#allocation2 + $0xc8] sm:$0xff]
      %v1624 = vld [vmem:[#allocation2 + $0xd0] sm:$0xff]
      %v1625 = vld [vmem:[#allocation2 + $0xd8] sm:$0xff]
      %v1626 = vld [vmem:[#allocation2 + $0xe0] sm:$0xff]
      %v1627 = vld [vmem:[#allocation2 + $0xe8] sm:$0xff]
      %v1628 = vld [vmem:[#allocation2 + $0xf0] sm:$0xff]
      %v1629 = vld [vmem:[#allocation2 + $0xf8] sm:$0xff]
      %v1630 = vpack.c.bf16 %v1599, %v1598
      %v1631 = vpack.c.bf16 %v1601, %v1600
      %v1632 = vpack.c.bf16 %v1603, %v1602
      %v1633 = vpack.c.bf16 %v1605, %v1604
      %v1634 = vpack.c.bf16 %v1607, %v1606
      %v1635 = vpack.c.bf16 %v1609, %v1608
      %v1636 = vpack.c.bf16 %v1611, %v1610
      %v1637 = vpack.c.bf16 %v1613, %v1612
      %v1638 = vpack.c.bf16 %v1615, %v1614
      %v1639 = vpack.c.bf16 %v1617, %v1616
      %v1640 = vpack.c.bf16 %v1619, %v1618
      %v1641 = vpack.c.bf16 %v1621, %v1620
      %v1642 = vpack.c.bf16 %v1623, %v1622
      %v1643 = vpack.c.bf16 %v1625, %v1624
      %v1644 = vpack.c.bf16 %v1627, %v1626
      %v1645 = vpack.c.bf16 %v1629, %v1628
      %v1662 = vunpack.c.l.b16 %v1630
      %v1663 = vunpack.c.h.b16 %v1630
      %v1664 = vunpack.c.l.b16 %v1631
      %v1665 = vunpack.c.h.b16 %v1631
      %v1666 = vunpack.c.l.b16 %v1632
      %v1667 = vunpack.c.h.b16 %v1632
      %v1668 = vunpack.c.l.b16 %v1633
      %v1669 = vunpack.c.h.b16 %v1633
      %v1670 = vunpack.c.l.b16 %v1634
      %v1671 = vunpack.c.h.b16 %v1634
      %v1672 = vunpack.c.l.b16 %v1635
      %v1673 = vunpack.c.h.b16 %v1635
      %v1674 = vunpack.c.l.b16 %v1636
      %v1675 = vunpack.c.h.b16 %v1636
      %v1676 = vunpack.c.l.b16 %v1637
      %v1677 = vunpack.c.h.b16 %v1637
      %v1678 = vunpack.c.l.b16 %v1638
      %v1679 = vunpack.c.h.b16 %v1638
      %v1680 = vunpack.c.l.b16 %v1639
      %v1681 = vunpack.c.h.b16 %v1639
      %v1682 = vunpack.c.l.b16 %v1640
      %v1683 = vunpack.c.h.b16 %v1640
      %v1684 = vunpack.c.l.b16 %v1641
      %v1685 = vunpack.c.h.b16 %v1641
      %v1686 = vunpack.c.l.b16 %v1642
      %v1687 = vunpack.c.h.b16 %v1642
      %v1688 = vunpack.c.l.b16 %v1643
      %v1689 = vunpack.c.h.b16 %v1643
      %v1690 = vunpack.c.l.b16 %v1644
      %v1691 = vunpack.c.h.b16 %v1644
      %v1692 = vunpack.c.l.b16 %v1645
      %v1693 = vunpack.c.h.b16 %v1645
      %v1694 = vpack.c.b16 %v1662, %v1662
      %v1695 = vpack.c.b16 %v1663, %v1663
      %v1696 = vpack.c.b16 %v1664, %v1664
      %v1697 = vpack.c.b16 %v1665, %v1665
      %v1698 = vpack.c.b16 %v1666, %v1666
      %v1699 = vpack.c.b16 %v1667, %v1667
      %v1700 = vpack.c.b16 %v1668, %v1668
      %v1701 = vpack.c.b16 %v1669, %v1669
      %v1702 = vpack.c.b16 %v1670, %v1670
      %v1703 = vpack.c.b16 %v1671, %v1671
      %v1704 = vpack.c.b16 %v1672, %v1672
      %v1705 = vpack.c.b16 %v1673, %v1673
      %v1706 = vpack.c.b16 %v1674, %v1674
      %v1707 = vpack.c.b16 %v1675, %v1675
      %v1708 = vpack.c.b16 %v1676, %v1676
      %v1709 = vpack.c.b16 %v1677, %v1677
      %v1710 = vpack.c.b16 %v1678, %v1678
      %v1711 = vpack.c.b16 %v1679, %v1679
      %v1712 = vpack.c.b16 %v1680, %v1680
      %v1713 = vpack.c.b16 %v1681, %v1681
      %v1714 = vpack.c.b16 %v1682, %v1682
      %v1715 = vpack.c.b16 %v1683, %v1683
      %v1716 = vpack.c.b16 %v1684, %v1684
      %v1717 = vpack.c.b16 %v1685, %v1685
      %v1718 = vpack.c.b16 %v1686, %v1686
      %v1719 = vpack.c.b16 %v1687, %v1687
      %v1720 = vpack.c.b16 %v1688, %v1688
      %v1721 = vpack.c.b16 %v1689, %v1689
      %v1722 = vpack.c.b16 %v1690, %v1690
      %v1723 = vpack.c.b16 %v1691, %v1691
      %v1724 = vpack.c.b16 %v1692, %v1692
      %v1725 = vpack.c.b16 %v1693, %v1693
      %1758 = vst [vmem:[%s177] sm:$0xf] %v1694
      %1759 = vst [vmem:[%s177 + $0x4] sm:$0xf] %v1695
      %1760 = vst [vmem:[%s177 + $0x8] sm:$0xf] %v1696
      %1761 = vst [vmem:[%s177 + $0xc] sm:$0xf] %v1697
      %1762 = vst [vmem:[%s177 + $0x10] sm:$0xf] %v1698
      %1763 = vst [vmem:[%s177 + $0x14] sm:$0xf] %v1699
      %1764 = vst [vmem:[%s177 + $0x18] sm:$0xf] %v1700
      %1765 = vst [vmem:[%s177 + $0x1c] sm:$0xf] %v1701
      %1766 = vst [vmem:[%s177 + $0x20] sm:$0xf] %v1702
      %1767 = vst [vmem:[%s177 + $0x24] sm:$0xf] %v1703
      %1768 = vst [vmem:[%s177 + $0x28] sm:$0xf] %v1704
      %1769 = vst [vmem:[%s177 + $0x2c] sm:$0xf] %v1705
      %1770 = vst [vmem:[%s177 + $0x30] sm:$0xf] %v1706
      %1771 = vst [vmem:[%s177 + $0x34] sm:$0xf] %v1707
      %1772 = vst [vmem:[%s177 + $0x38] sm:$0xf] %v1708
      %1773 = vst [vmem:[%s177 + $0x3c] sm:$0xf] %v1709
      %1774 = vst [vmem:[%s177 + $0x40] sm:$0xf] %v1710
      %1775 = vst [vmem:[%s177 + $0x44] sm:$0xf] %v1711
      %1776 = vst [vmem:[%s177 + $0x48] sm:$0xf] %v1712
      %1777 = vst [vmem:[%s177 + $0x4c] sm:$0xf] %v1713
      %1778 = vst [vmem:[%s177 + $0x50] sm:$0xf] %v1714
      %1779 = vst [vmem:[%s177 + $0x54] sm:$0xf] %v1715
      %1780 = vst [vmem:[%s177 + $0x58] sm:$0xf] %v1716
      %1781 = vst [vmem:[%s177 + $0x5c] sm:$0xf] %v1717
      %1782 = vst [vmem:[%s177 + $0x60] sm:$0xf] %v1718
      %1783 = vst [vmem:[%s177 + $0x64] sm:$0xf] %v1719
      %1784 = vst [vmem:[%s177 + $0x68] sm:$0xf] %v1720
      %1785 = vst [vmem:[%s177 + $0x6c] sm:$0xf] %v1721
      %1786 = vst [vmem:[%s177 + $0x70] sm:$0xf] %v1722
      %1787 = vst [vmem:[%s177 + $0x74] sm:$0xf] %v1723
      %1788 = vst [vmem:[%s177 + $0x78] sm:$0xf] %v1724
      %1789 = vst [vmem:[%s177 + $0x7c] sm:$0xf] %v1725
      %1790 = vmatprep.subr.mxu0 0.0
      %1791 = vmatpush1.msra.mxu0 %v1598
      %1792 = vmatprep.subr.mxu0 0.0
      %1793 = vmatpush1.msra.mxu0 %v1599
      %1794 = vmatprep.subr.mxu0 0.0
      %1795 = vmatpush1.msra.mxu0 %v1600
      %1796 = vmatprep.subr.mxu0 0.0
      %1797 = vmatpush1.msra.mxu0 %v1601
      %1798 = vmatprep.subr.mxu0 0.0
      %1799 = vmatpush1.msra.mxu0 %v1602
      %1800 = vmatprep.subr.mxu0 0.0
      %1801 = vmatpush1.msra.mxu0 %v1603
      %1802 = vmatprep.subr.mxu0 0.0
      %1803 = vmatpush1.msra.mxu0 %v1604
      %1804 = vmatprep.subr.mxu0 0.0
      %1805 = vmatpush1.msra.mxu0 %v1605
      %1806 = vmatprep.subr.mxu0 0.0
      %1807 = vmatpush1.msra.mxu0 %v1606
      %1808 = vmatprep.subr.mxu0 0.0
      %1809 = vmatpush1.msra.mxu0 %v1607
      %1810 = vmatprep.subr.mxu0 0.0
      %1811 = vmatpush1.msra.mxu0 %v1608
      %1812 = vmatprep.subr.mxu0 0.0
      %1813 = vmatpush1.msra.mxu0 %v1609
      %1814 = vmatprep.subr.mxu0 0.0
      %1815 = vmatpush1.msra.mxu0 %v1610
      %1816 = vmatprep.subr.mxu0 0.0
      %1817 = vmatpush1.msra.mxu0 %v1611
      %1818 = vmatprep.subr.mxu0 0.0
      %1819 = vmatpush1.msra.mxu0 %v1612
      %1820 = vmatprep.subr.mxu0 0.0
      %1821 = vmatpush1.msra.mxu0 %v1613
      %1822 = vmatprep.subr.mxu0 0.0
      %1823 = vmatpush1.msra.mxu0 %v1614
      %1824 = vmatprep.subr.mxu0 0.0
      %1825 = vmatpush1.msra.mxu0 %v1615
      %1826 = vmatprep.subr.mxu0 0.0
      %1827 = vmatpush1.msra.mxu0 %v1616
      %1828 = vmatprep.subr.mxu0 0.0
      %1829 = vmatpush1.msra.mxu0 %v1617
      %1830 = vmatprep.subr.mxu0 0.0
      %1831 = vmatpush1.msra.mxu0 %v1618
      %1832 = vmatprep.subr.mxu0 0.0
      %1833 = vmatpush1.msra.mxu0 %v1619
      %1834 = vmatprep.subr.mxu0 0.0
      %1835 = vmatpush1.msra.mxu0 %v1620
      %1836 = vmatprep.subr.mxu0 0.0
      %1837 = vmatpush1.msra.mxu0 %v1621
      %1838 = vmatprep.subr.mxu0 0.0
      %1839 = vmatpush1.msra.mxu0 %v1622
      %1840 = vmatprep.subr.mxu0 0.0
      %1841 = vmatpush1.msra.mxu0 %v1623
      %1842 = vmatprep.subr.mxu0 0.0
      %1843 = vmatpush1.msra.mxu0 %v1624
      %1844 = vmatprep.subr.mxu0 0.0
      %1845 = vmatpush1.msra.mxu0 %v1625
      %1846 = vmatprep.subr.mxu0 0.0
      %1847 = vmatpush1.msra.mxu0 %v1626
      %1848 = vmatprep.subr.mxu0 0.0
      %1849 = vmatpush1.msra.mxu0 %v1627
      %1850 = vmatprep.subr.mxu0 0.0
      %1851 = vmatpush1.msra.mxu0 %v1628
      %1852 = vmatprep.subr.mxu0 0.0
      %1853 = vmatpush1.msra.mxu0 %v1629
      %1854 = vmatprep.mubr.f32.mxu0 1.0
      %1855 = vmatmul.mubr.f32.gmra.mrb[0].mxu0 1.0
      %v1856 = vpop.f32.mrb[0].mxu0
      %v1857 = vadd.f32 0.0, %v1856
      %v1858 = vpop.f32.mrb[0].mxu0
      %1859 = vdwg.mxu0
      %v1860 = vmul.f32 %v1598, %v1598
      %v1861 = vmul.f32 %v1599, %v1599
      %v1862 = vmul.f32 %v1600, %v1600
      %v1863 = vmul.f32 %v1601, %v1601
      %v1864 = vmul.f32 %v1602, %v1602
      %v1865 = vmul.f32 %v1603, %v1603
      %v1866 = vmul.f32 %v1604, %v1604
      %v1867 = vmul.f32 %v1605, %v1605
      %v1868 = vmul.f32 %v1606, %v1606
      %v1869 = vmul.f32 %v1607, %v1607
      %v1870 = vmul.f32 %v1608, %v1608
      %v1871 = vmul.f32 %v1609, %v1609
      %v1872 = vmul.f32 %v1610, %v1610
      %v1873 = vmul.f32 %v1611, %v1611
      %v1874 = vmul.f32 %v1612, %v1612
      %v1875 = vmul.f32 %v1613, %v1613
      %v1876 = vmul.f32 %v1614, %v1614
      %v1877 = vmul.f32 %v1615, %v1615
      %v1878 = vmul.f32 %v1616, %v1616
      %v1879 = vmul.f32 %v1617, %v1617
      %v1880 = vmul.f32 %v1618, %v1618
      %v1881 = vmul.f32 %v1619, %v1619
      %v1882 = vmul.f32 %v1620, %v1620
      %v1883 = vmul.f32 %v1621, %v1621
      %v1884 = vmul.f32 %v1622, %v1622
      %v1885 = vmul.f32 %v1623, %v1623
      %v1886 = vmul.f32 %v1624, %v1624
      %v1887 = vmul.f32 %v1625, %v1625
      %v1888 = vmul.f32 %v1626, %v1626
      %v1889 = vmul.f32 %v1627, %v1627
      %v1890 = vmul.f32 %v1628, %v1628
      %v1891 = vmul.f32 %v1629, %v1629
      %1892 = vmatprep.subr.mxu0 0.0
      %1893 = vmatpush1.msra.mxu0 %v1860
      %1894 = vmatprep.subr.mxu0 0.0
      %1895 = vmatpush1.msra.mxu0 %v1861
      %1896 = vmatprep.subr.mxu0 0.0
      %1897 = vmatpush1.msra.mxu0 %v1862
      %1898 = vmatprep.subr.mxu0 0.0
      %1899 = vmatpush1.msra.mxu0 %v1863
      %1900 = vmatprep.subr.mxu0 0.0
      %1901 = vmatpush1.msra.mxu0 %v1864
      %1902 = vmatprep.subr.mxu0 0.0
      %1903 = vmatpush1.msra.mxu0 %v1865
      %1904 = vmatprep.subr.mxu0 0.0
      %1905 = vmatpush1.msra.mxu0 %v1866
      %1906 = vmatprep.subr.mxu0 0.0
      %1907 = vmatpush1.msra.mxu0 %v1867
      %1908 = vmatprep.subr.mxu0 0.0
      %1909 = vmatpush1.msra.mxu0 %v1868
      %1910 = vmatprep.subr.mxu0 0.0
      %1911 = vmatpush1.msra.mxu0 %v1869
      %1912 = vmatprep.subr.mxu0 0.0
      %1913 = vmatpush1.msra.mxu0 %v1870
      %1914 = vmatprep.subr.mxu0 0.0
      %1915 = vmatpush1.msra.mxu0 %v1871
      %1916 = vmatprep.subr.mxu0 0.0
      %1917 = vmatpush1.msra.mxu0 %v1872
      %1918 = vmatprep.subr.mxu0 0.0
      %1919 = vmatpush1.msra.mxu0 %v1873
      %1920 = vmatprep.subr.mxu0 0.0
      %1921 = vmatpush1.msra.mxu0 %v1874
      %1922 = vmatprep.subr.mxu0 0.0
      %1923 = vmatpush1.msra.mxu0 %v1875
      %1924 = vmatprep.subr.mxu0 0.0
      %1925 = vmatpush1.msra.mxu0 %v1876
      %1926 = vmatprep.subr.mxu0 0.0
      %1927 = vmatpush1.msra.mxu0 %v1877
      %1928 = vmatprep.subr.mxu0 0.0
      %1929 = vmatpush1.msra.mxu0 %v1878
      %1930 = vmatprep.subr.mxu0 0.0
      %1931 = vmatpush1.msra.mxu0 %v1879
      %1932 = vmatprep.subr.mxu0 0.0
      %1933 = vmatpush1.msra.mxu0 %v1880
      %1934 = vmatprep.subr.mxu0 0.0
      %1935 = vmatpush1.msra.mxu0 %v1881
      %1936 = vmatprep.subr.mxu0 0.0
      %1937 = vmatpush1.msra.mxu0 %v1882
      %1938 = vmatprep.subr.mxu0 0.0
      %1939 = vmatpush1.msra.mxu0 %v1883
      %1940 = vmatprep.subr.mxu0 0.0
      %1941 = vmatpush1.msra.mxu0 %v1884
      %1942 = vmatprep.subr.mxu0 0.0
      %1943 = vmatpush1.msra.mxu0 %v1885
      %1944 = vmatprep.subr.mxu0 0.0
      %1945 = vmatpush1.msra.mxu0 %v1886
      %1946 = vmatprep.subr.mxu0 0.0
      %1947 = vmatpush1.msra.mxu0 %v1887
      %1948 = vmatprep.subr.mxu0 0.0
      %1949 = vmatpush1.msra.mxu0 %v1888
      %1950 = vmatprep.subr.mxu0 0.0
      %1951 = vmatpush1.msra.mxu0 %v1889
      %1952 = vmatprep.subr.mxu0 0.0
      %1953 = vmatpush1.msra.mxu0 %v1890
      %1954 = vmatprep.subr.mxu0 0.0
      %1955 = vmatpush1.msra.mxu0 %v1891
      %1956 = vmatprep.mubr.f32.mxu0 1.0
      %1957 = vmatmul.mubr.f32.gmra.mrb[0].mxu0 1.0
      %v1958 = vpop.f32.mrb[0].mxu0
      %v1959 = vadd.f32 0.0, %v1958
      %v1960 = vpop.f32.mrb[0].mxu0
      %1961 = vdwg.mxu0
      %v1963 = vrot.slane %v1959, 7
      %vm1965 = vcmask 1040384
      %v1966 = vsel %vm1965, %v1857, %v1963
      %1967 = vst [vmem:[%s181] sm:$0x3] %v1966
      %p1968 = scmp.lt.s32.totalorder %s15, 1
      %s1969 = scalar_select %p1968, %s15, 1
      %s1970 = smul.addr %s1969, 32
      %s1971 = smul.addr %s1970, 4
      %s1972 = scalar_lea.vmem %s2, %s1971
      %p1973 = scmp.lt.s32.totalorder %s15, 1
      %s1974 = scalar_select %p1973, %s15, 1
      %s1975 = smul.addr %s1974, 2
      %s1976 = scalar_lea.vmem %s3, %s1975
      // Predicated region
      $region29: #{depthwise_separable_conv.2} parent=27 // pred_check
        %p1977 = pneg %p80
      $region30: #{depthwise_separable_conv.2} parent=27 // pred_check_branch
        %1979 = sbr.rel (%p1977) target = $region32
      $region31: #{depthwise_separable_conv.2} parent=27 // pred_region
        _
      $region32: #{depthwise_separable_conv.2} parent=27 // pred_fallthru
        _
      // Predicated region
      $region33: #{depthwise_separable_conv.2} parent=27 // pred_check
        %p1980 = pneg %p106
      $region34: #{depthwise_separable_conv.2} parent=27 // pred_check_branch
        %1982 = sbr.rel (%p1980) target = $region36
      $region35: #{depthwise_separable_conv.2} parent=27 // pred_region
        _
      $region36: #{depthwise_separable_conv.2} parent=27 // pred_fallthru
        _
    $region28: #{depthwise_separable_conv.2} parent=5 // pred_fallthru
      _
    %p1983 = scmp.le.s32.totalorder 2, %s10
    // Predicated region
    $region37: #{depthwise_separable_conv.2} parent=5 // pred_check
      %p1984 = pneg %p1983
    $region38: #{depthwise_separable_conv.2} parent=5 // pred_check_branch
      %1986 = sbr.rel (%p1984) target = $region40
    $region39: #{depthwise_separable_conv.2} parent=5 // pred_region
      %s1987 = ssub.s32 %s10, 2
      // Predicated region
      $region41: #{depthwise_separable_conv.2} parent=39 // pred_check
        %p1988 = pneg %p86
      $region42: #{depthwise_separable_conv.2} parent=39 // pred_check_branch
        %1990 = sbr.rel (%p1988) target = $region44
      $region43: #{depthwise_separable_conv.2} parent=39 // pred_region
        %p1991 = scmp.lt.s32.totalorder %s16, 1
        %s1992 = scalar_select %p1991, %s16, 1
        %s1993 = smul.addr %s1992, 32
        %s1994 = smul.addr %s1993, 4
        %s1995 = scalar_lea.vmem %s2, %s1994
      $region44: #{depthwise_separable_conv.2} parent=39 // pred_fallthru
        _
      // Predicated region
      $region45: #{depthwise_separable_conv.2} parent=39 // pred_check
        %p1996 = pneg %p112
      $region46: #{depthwise_separable_conv.2} parent=39 // pred_check_branch
        %1998 = sbr.rel (%p1996) target = $region48
      $region47: #{depthwise_separable_conv.2} parent=39 // pred_region
        %p1999 = scmp.lt.s32.totalorder %s16, 1
        %s2000 = scalar_select %p1999, %s16, 1
        %s2001 = smul.addr %s2000, 2
        %s2002 = scalar_lea.vmem %s3, %s2001
      $region48: #{depthwise_separable_conv.2} parent=39 // pred_fallthru
        _
    $region40: #{depthwise_separable_conv.2} parent=5 // pred_fallthru
      _
  $region6: #{depthwise_separable_conv.2} parent=0 // loop_footer
    %s14 = sadd.s32 1, %s10
  $region7: #{depthwise_separable_conv.2} parent=0 // loop_footer_branch
    %9 = sbr.rel target = $region3
  $region8: #{depthwise_separable_conv.2} parent=0 // loop_exit
    _

</llo_original>
